<compile_context>
chip_gen: v7x
topology: tpu7x:2x2x1
jax: 0.10.0
libtpu: 0.0.40
codegen_flags: <defaults>
</compile_context>

<pallas_src>
import numpy as np
import jax
import jax.numpy as jnp
from jax import lax
from jax.experimental import pallas as pl
from jax.experimental.pallas import tpu as pltpu


# ------------------------------ Forward pass ------------------------------

def conv_model_forward(x, params):
    N, Cin, H, W = x.shape
    wc, bc = params["conv_w"], params["conv_b"]
    w1, b1 = params["lin1_w"], params["lin1_b"]
    w2, b2 = params["lin2_w"], params["lin2_b"]
    Cout, _, KH, KW = wc.shape
    HID = w1.shape[0]
    CLS = w2.shape[0]
    assert (KH, KW) == (3, 3) and H % 2 == 0 and W % 2 == 0

    PH, PW = H + 2, W + 2                 # zero-padded spatial dims (padding=1)
    PHPW = PH * PW
    Hp, Wp = H // 2, W // 2               # pooled spatial dims
    HpWp = Hp * Wp
    assert w1.shape[1] == Cout * HpWp

    # Conv output lane for sample n, pixel (h, w):  p = n*PHPW + h*PW + w  ("padded-width grid").
    CONV_LEN = (H - 1) * PW + W           # per-sample conv extent (== 286 for 16x16)
    POOL_LEN = (H - 2) * PW + (W - 1)     # per-sample pooling-anchor extent (== 267)
    L = (N - 1) * PHPW + CONV_LEN         # batched conv lanes (== 610 for N=2)
    Lp = (N - 1) * PHPW + POOL_LEN        # batched pooling-anchor lanes (== 591)
    # exact-bounds identities (3x3 / pad=1): tap and corner slices never run off the arrays.
    assert 2 * PW + 2 + CONV_LEN == PHPW
    assert POOL_LEN + PW + 1 == CONV_LEN

    NHID, NCLS = N * HID, N * CLS

    def kernel(x_ref, wt_ref, bc_ref, w1_ref, b1_ref, w2_ref, b2_ref, o_ref):
        x_all = x_ref[...]                                        # (Cin, N*PHPW), loaded once

        # --- Conv2d: 9 accumulating MXU dots over lane-shifted views (whole batch at once) ---
        acc = jnp.dot(wt_ref[0], x_all[:, 0:L], preferred_element_type=jnp.float32)
        for t in range(1, KH * KW):
            kh, kw = divmod(t, KW)
            off = kh * PW + kw
            acc = acc + jnp.dot(wt_ref[t], x_all[:, off:off + L],
                                preferred_element_type=jnp.float32)
        conv = jnp.maximum(acc + bc_ref[...], 0.0)                # bias + ReLU, (Cout, L)

        # --- MaxPool2d(2): max of the four 2x2-window corners (4 shifts total) ---
        mx = jnp.maximum(jnp.maximum(conv[:, 0:Lp], conv[:, 1:1 + Lp]),
                         jnp.maximum(conv[:, PW:PW + Lp], conv[:, PW + 1:PW + 1 + Lp]))

        # --- pooling-anchor select + NCHW flatten + Linear1, precomposed into w1 blocks ---
        # h[0, n*HID+hid] = sum_co sum_o mx[co, o] * W1blk[co, o, n*HID+hid]
        h = jnp.dot(mx[0:1, :], w1_ref[0], preferred_element_type=jnp.float32)
        for co in range(1, Cout):
            h = h + jnp.dot(mx[co:co + 1, :], w1_ref[co],
                            preferred_element_type=jnp.float32)
        h = jnp.maximum(h + b1_ref[...], 0.0)                     # (1, N*HID)

        # --- Linear2 with block-diagonal-over-batch weight ---
        o_ref[...] = jnp.dot(h, w2_ref[...],
                             preferred_element_type=jnp.float32) + b2_ref[...]

    # --------------- Wrapper-side layout / weight plumbing (no activation FLOPs) ---------------
    # Input: pad, fold batch into the lane axis.
    xp = jnp.pad(x, ((0, 0), (0, 0), (1, 1), (1, 1)))
    x_all = xp.reshape(N, Cin, PHPW).transpose(1, 0, 2).reshape(Cin, N * PHPW)

    # Conv taps: (kh*KW+kw, Cout, Cin).
    w_taps = jnp.transpose(wc, (2, 3, 0, 1)).reshape(KH * KW, Cout, Cin)
    bc2 = bc.reshape(Cout, 1)

    # Precompose pooling-anchor selection + PyTorch view(N,-1) flatten into lin1 weight blocks:
    #   W1blk[co, n*PHPW + 2*hp*PW + 2*wp, n*HID + hid] = w1[hid, co*HpWp + hp*Wp + wp]
    # Zeros everywhere else, so garbage (row-wrap / cross-sample) lanes contribute exact 0.
    q = np.arange(HpWp)
    anchor = 2 * (q // Wp) * PW + 2 * (q % Wp)                    # (HpWp,) numpy, static
    w1t = jnp.transpose(w1.reshape(HID, Cout, HpWp), (1, 2, 0))   # (Cout, HpWp, HID)
    w1blk = jnp.zeros((Cout, Lp, NHID), jnp.float32)
    for n in range(N):
        w1blk = w1blk.at[:, n * PHPW + anchor, n * HID:(n + 1) * HID].set(w1t)
    b1blk = jnp.tile(b1, N).reshape(1, NHID)

    # Block-diagonal-over-batch lin2 weight (already in (K, N) layout -> no in-kernel transpose).
    w2blk = jnp.zeros((NHID, NCLS), jnp.float32)
    for n in range(N):
        w2blk = w2blk.at[n * HID:(n + 1) * HID, n * CLS:(n + 1) * CLS].set(w2.T)
    b2blk = jnp.tile(b2, N).reshape(1, NCLS)

    out_flat = pl.pallas_call(
        kernel,
        out_shape=jax.ShapeDtypeStruct((1, NCLS), jnp.float32),
        in_specs=[pl.BlockSpec(memory_space=pltpu.MemorySpace.VMEM)] * 7,
        out_specs=pl.BlockSpec(memory_space=pltpu.MemorySpace.VMEM),
    )(x_all, w_taps, bc2, w1blk, b1blk, w2blk, b2blk)

    return out_flat.reshape(N, CLS)


# ------------------------------ Pure-JAX reference ------------------------------

def reference_forward(x, params):
    conv = lax.conv_general_dilated(
        x, params["conv_w"], window_strides=(1, 1), padding="SAME",
        dimension_numbers=("NCHW", "OIHW", "NCHW"))
    conv = jnp.maximum(conv + params["conv_b"][None, :, None, None], 0.0)
    N, C, H, W = conv.shape
    pooled = conv.reshape(N, C, H // 2, 2, W // 2, 2).max(axis=(3, 5))
    flat = pooled.reshape(N, -1)
    h = jnp.maximum(flat @ params["lin1_w"].T + params["lin1_b"], 0.0)
    return h @ params["lin2_w"].T + params["lin2_b"]


# ------------------------------ Parameters ------------------------------

def init_params(key, Cin=4, Cout=8, H=16, W=16, hidden=32, classes=10):
    ks = jax.random.split(key, 6)
    flat_dim = Cout * (H // 2) * (W // 2)

    def u(k, shape, fan_in):
        bound = 1.0 / jnp.sqrt(jnp.float32(fan_in))
        return jax.random.uniform(k, shape, jnp.float32, -bound, bound)

    return {
        "conv_w": u(ks[0], (Cout, Cin, 3, 3), Cin * 9),
        "conv_b": u(ks[1], (Cout,), Cin * 9),
        "lin1_w": u(ks[2], (hidden, flat_dim), flat_dim),
        "lin1_b": u(ks[3], (hidden,), flat_dim),
        "lin2_w": u(ks[4], (classes, hidden), hidden),
        "lin2_b": u(ks[5], (classes,), hidden),
    }


if __name__ == "__main__":
    key = jax.random.PRNGKey(0)
    k_x, k_p = jax.random.split(key)

    N, Cin, H, W = 2, 4, 16, 16
    x = jax.random.normal(k_x, (N, Cin, H, W), jnp.float32)
    params = init_params(k_p, Cin=Cin, H=H, W=W)

    fwd = jax.jit(conv_model_forward)
    out = fwd(x, params)
    jax.block_until_ready(out)

    ref = reference_forward(x, params)
    assert out.shape == (N, 10) and out.dtype == jnp.float32
    assert jnp.allclose(out, ref, atol=1e-3, rtol=1e-3), (out, ref)
    print("KERNEL_OK")
</pallas_src>

<mosaic_0001>
module attributes {stable_mosaic.version = 11 : i64} {
  func.func @kernel(%arg0: memref<4x648xf32, #tpu.memory_space<vmem>>, %arg1: memref<9x8x4xf32, #tpu.memory_space<vmem>>, %arg2: memref<8x1xf32, #tpu.memory_space<vmem>>, %arg3: memref<8x591x64xf32, #tpu.memory_space<vmem>>, %arg4: memref<1x64xf32, #tpu.memory_space<vmem>>, %arg5: memref<64x20xf32, #tpu.memory_space<vmem>>, %arg6: memref<1x20xf32, #tpu.memory_space<vmem>>, %arg7: memref<1x20xf32, #tpu.memory_space<vmem>>) attributes {dimension_semantics = [], scalar_prefetch = 0 : i64, scratch_operands = 0 : i64, tpu.core_type = #tpu.core_type<tc>} {
    %c0 = arith.constant 0 : index
    %c0_0 = arith.constant 0 : index
    %0 = vector.load %arg0[%c0, %c0_0] : memref<4x648xf32, #tpu.memory_space<vmem>>, vector<4x648xf32>
    %c0_1 = arith.constant 0 : index
    %c0_2 = arith.constant 0 : index
    %c0_3 = arith.constant 0 : index
    %1 = vector.load %arg1[%c0_1, %c0_2, %c0_3] : memref<9x8x4xf32, #tpu.memory_space<vmem>>, vector<1x8x4xf32>
    %2 = vector.shape_cast %1 : vector<1x8x4xf32> to vector<8x4xf32>
    %3 = vector.extract_strided_slice %0 {offsets = [0, 0], sizes = [4, 610], strides = [1, 1]} : vector<4x648xf32> to vector<4x610xf32>
    %cst = arith.constant dense<0.000000e+00> : vector<8x610xf32>
    %4 = tpu.matmul %2, %3, %cst {dimension_numbers = #tpu.dot_dimension_numbers<[1], [0], [0], [1], [0, 0, 1, 1], [], []>} : vector<8x4xf32>, vector<4x610xf32>, vector<8x610xf32> -> vector<8x610xf32>
    %c1 = arith.constant 1 : index
    %c0_4 = arith.constant 0 : index
    %c0_5 = arith.constant 0 : index
    %5 = vector.load %arg1[%c1, %c0_4, %c0_5] : memref<9x8x4xf32, #tpu.memory_space<vmem>>, vector<1x8x4xf32>
    %6 = vector.shape_cast %5 : vector<1x8x4xf32> to vector<8x4xf32>
    %7 = vector.extract_strided_slice %0 {offsets = [0, 1], sizes = [4, 610], strides = [1, 1]} : vector<4x648xf32> to vector<4x610xf32>
    %cst_6 = arith.constant dense<0.000000e+00> : vector<8x610xf32>
    %8 = tpu.matmul %6, %7, %cst_6 {dimension_numbers = #tpu.dot_dimension_numbers<[1], [0], [0], [1], [0, 0, 1, 1], [], []>} : vector<8x4xf32>, vector<4x610xf32>, vector<8x610xf32> -> vector<8x610xf32>
    %9 = arith.addf %4, %8 : vector<8x610xf32>
    %c2 = arith.constant 2 : index
    %c0_7 = arith.constant 0 : index
    %c0_8 = arith.constant 0 : index
    %10 = vector.load %arg1[%c2, %c0_7, %c0_8] : memref<9x8x4xf32, #tpu.memory_space<vmem>>, vector<1x8x4xf32>
    %11 = vector.shape_cast %10 : vector<1x8x4xf32> to vector<8x4xf32>
    %12 = vector.extract_strided_slice %0 {offsets = [0, 2], sizes = [4, 610], strides = [1, 1]} : vector<4x648xf32> to vector<4x610xf32>
    %cst_9 = arith.constant dense<0.000000e+00> : vector<8x610xf32>
    %13 = tpu.matmul %11, %12, %cst_9 {dimension_numbers = #tpu.dot_dimension_numbers<[1], [0], [0], [1], [0, 0, 1, 1], [], []>} : vector<8x4xf32>, vector<4x610xf32>, vector<8x610xf32> -> vector<8x610xf32>
    %14 = arith.addf %9, %13 : vector<8x610xf32>
    %c3 = arith.constant 3 : index
    %c0_10 = arith.constant 0 : index
    %c0_11 = arith.constant 0 : index
    %15 = vector.load %arg1[%c3, %c0_10, %c0_11] : memref<9x8x4xf32, #tpu.memory_space<vmem>>, vector<1x8x4xf32>
    %16 = vector.shape_cast %15 : vector<1x8x4xf32> to vector<8x4xf32>
    %17 = vector.extract_strided_slice %0 {offsets = [0, 18], sizes = [4, 610], strides = [1, 1]} : vector<4x648xf32> to vector<4x610xf32>
    %cst_12 = arith.constant dense<0.000000e+00> : vector<8x610xf32>
    %18 = tpu.matmul %16, %17, %cst_12 {dimension_numbers = #tpu.dot_dimension_numbers<[1], [0], [0], [1], [0, 0, 1, 1], [], []>} : vector<8x4xf32>, vector<4x610xf32>, vector<8x610xf32> -> vector<8x610xf32>
    %19 = arith.addf %14, %18 : vector<8x610xf32>
    %c4 = arith.constant 4 : index
    %c0_13 = arith.constant 0 : index
    %c0_14 = arith.constant 0 : index
    %20 = vector.load %arg1[%c4, %c0_13, %c0_14] : memref<9x8x4xf32, #tpu.memory_space<vmem>>, vector<1x8x4xf32>
    %21 = vector.shape_cast %20 : vector<1x8x4xf32> to vector<8x4xf32>
    %22 = vector.extract_strided_slice %0 {offsets = [0, 19], sizes = [4, 610], strides = [1, 1]} : vector<4x648xf32> to vector<4x610xf32>
    %cst_15 = arith.constant dense<0.000000e+00> : vector<8x610xf32>
    %23 = tpu.matmul %21, %22, %cst_15 {dimension_numbers = #tpu.dot_dimension_numbers<[1], [0], [0], [1], [0, 0, 1, 1], [], []>} : vector<8x4xf32>, vector<4x610xf32>, vector<8x610xf32> -> vector<8x610xf32>
    %24 = arith.addf %19, %23 : vector<8x610xf32>
    %c5 = arith.constant 5 : index
    %c0_16 = arith.constant 0 : index
    %c0_17 = arith.constant 0 : index
    %25 = vector.load %arg1[%c5, %c0_16, %c0_17] : memref<9x8x4xf32, #tpu.memory_space<vmem>>, vector<1x8x4xf32>
    %26 = vector.shape_cast %25 : vector<1x8x4xf32> to vector<8x4xf32>
    %27 = vector.extract_strided_slice %0 {offsets = [0, 20], sizes = [4, 610], strides = [1, 1]} : vector<4x648xf32> to vector<4x610xf32>
    %cst_18 = arith.constant dense<0.000000e+00> : vector<8x610xf32>
    %28 = tpu.matmul %26, %27, %cst_18 {dimension_numbers = #tpu.dot_dimension_numbers<[1], [0], [0], [1], [0, 0, 1, 1], [], []>} : vector<8x4xf32>, vector<4x610xf32>, vector<8x610xf32> -> vector<8x610xf32>
    %29 = arith.addf %24, %28 : vector<8x610xf32>
    %c6 = arith.constant 6 : index
    %c0_19 = arith.constant 0 : index
    %c0_20 = arith.constant 0 : index
    %30 = vector.load %arg1[%c6, %c0_19, %c0_20] : memref<9x8x4xf32, #tpu.memory_space<vmem>>, vector<1x8x4xf32>
    %31 = vector.shape_cast %30 : vector<1x8x4xf32> to vector<8x4xf32>
    %32 = vector.extract_strided_slice %0 {offsets = [0, 36], sizes = [4, 610], strides = [1, 1]} : vector<4x648xf32> to vector<4x610xf32>
    %cst_21 = arith.constant dense<0.000000e+00> : vector<8x610xf32>
    %33 = tpu.matmul %31, %32, %cst_21 {dimension_numbers = #tpu.dot_dimension_numbers<[1], [0], [0], [1], [0, 0, 1, 1], [], []>} : vector<8x4xf32>, vector<4x610xf32>, vector<8x610xf32> -> vector<8x610xf32>
    %34 = arith.addf %29, %33 : vector<8x610xf32>
    %c7 = arith.constant 7 : index
    %c0_22 = arith.constant 0 : index
    %c0_23 = arith.constant 0 : index
    %35 = vector.load %arg1[%c7, %c0_22, %c0_23] : memref<9x8x4xf32, #tpu.memory_space<vmem>>, vector<1x8x4xf32>
    %36 = vector.shape_cast %35 : vector<1x8x4xf32> to vector<8x4xf32>
    %37 = vector.extract_strided_slice %0 {offsets = [0, 37], sizes = [4, 610], strides = [1, 1]} : vector<4x648xf32> to vector<4x610xf32>
    %cst_24 = arith.constant dense<0.000000e+00> : vector<8x610xf32>
    %38 = tpu.matmul %36, %37, %cst_24 {dimension_numbers = #tpu.dot_dimension_numbers<[1], [0], [0], [1], [0, 0, 1, 1], [], []>} : vector<8x4xf32>, vector<4x610xf32>, vector<8x610xf32> -> vector<8x610xf32>
    %39 = arith.addf %34, %38 : vector<8x610xf32>
    %c8 = arith.constant 8 : index
    %c0_25 = arith.constant 0 : index
    %c0_26 = arith.constant 0 : index
    %40 = vector.load %arg1[%c8, %c0_25, %c0_26] : memref<9x8x4xf32, #tpu.memory_space<vmem>>, vector<1x8x4xf32>
    %41 = vector.shape_cast %40 : vector<1x8x4xf32> to vector<8x4xf32>
    %42 = vector.extract_strided_slice %0 {offsets = [0, 38], sizes = [4, 610], strides = [1, 1]} : vector<4x648xf32> to vector<4x610xf32>
    %cst_27 = arith.constant dense<0.000000e+00> : vector<8x610xf32>
    %43 = tpu.matmul %41, %42, %cst_27 {dimension_numbers = #tpu.dot_dimension_numbers<[1], [0], [0], [1], [0, 0, 1, 1], [], []>} : vector<8x4xf32>, vector<4x610xf32>, vector<8x610xf32> -> vector<8x610xf32>
    %44 = arith.addf %39, %43 : vector<8x610xf32>
    %c0_28 = arith.constant 0 : index
    %c0_29 = arith.constant 0 : index
    %45 = vector.load %arg2[%c0_28, %c0_29] : memref<8x1xf32, #tpu.memory_space<vmem>>, vector<8x1xf32>
    %46 = vector.broadcast %45 : vector<8x1xf32> to vector<8x610xf32>
    %47 = arith.addf %44, %46 : vector<8x610xf32>
    %cst_30 = arith.constant 0.000000e+00 : f32
    %48 = vector.broadcast %cst_30 : f32 to vector<8x610xf32>
    %49 = arith.maximumf %47, %48 : vector<8x610xf32>
    %50 = vector.extract_strided_slice %49 {offsets = [0, 0], sizes = [8, 591], strides = [1, 1]} : vector<8x610xf32> to vector<8x591xf32>
    %51 = vector.extract_strided_slice %49 {offsets = [0, 1], sizes = [8, 591], strides = [1, 1]} : vector<8x610xf32> to vector<8x591xf32>
    %52 = arith.maximumf %50, %51 : vector<8x591xf32>
    %53 = vector.extract_strided_slice %49 {offsets = [0, 18], sizes = [8, 591], strides = [1, 1]} : vector<8x610xf32> to vector<8x591xf32>
    %54 = vector.extract_strided_slice %49 {offsets = [0, 19], sizes = [8, 591], strides = [1, 1]} : vector<8x610xf32> to vector<8x591xf32>
    %55 = arith.maximumf %53, %54 : vector<8x591xf32>
    %56 = arith.maximumf %52, %55 : vector<8x591xf32>
    %57 = vector.extract_strided_slice %56 {offsets = [0, 0], sizes = [1, 591], strides = [1, 1]} : vector<8x591xf32> to vector<1x591xf32>
    %c0_31 = arith.constant 0 : index
    %c0_32 = arith.constant 0 : index
    %c0_33 = arith.constant 0 : index
    %58 = vector.load %arg3[%c0_31, %c0_32, %c0_33] : memref<8x591x64xf32, #tpu.memory_space<vmem>>, vector<1x591x64xf32>
    %59 = vector.shape_cast %58 : vector<1x591x64xf32> to vector<591x64xf32>
    %cst_34 = arith.constant dense<0.000000e+00> : vector<1x64xf32>
    %60 = tpu.matmul %57, %59, %cst_34 {dimension_numbers = #tpu.dot_dimension_numbers<[1], [0], [0], [1], [0, 0, 1, 1], [], []>} : vector<1x591xf32>, vector<591x64xf32>, vector<1x64xf32> -> vector<1x64xf32>
    %61 = vector.extract_strided_slice %56 {offsets = [1, 0], sizes = [1, 591], strides = [1, 1]} : vector<8x591xf32> to vector<1x591xf32>
    %c1_35 = arith.constant 1 : index
    %c0_36 = arith.constant 0 : index
    %c0_37 = arith.constant 0 : index
    %62 = vector.load %arg3[%c1_35, %c0_36, %c0_37] : memref<8x591x64xf32, #tpu.memory_space<vmem>>, vector<1x591x64xf32>
    %63 = vector.shape_cast %62 : vector<1x591x64xf32> to vector<591x64xf32>
    %cst_38 = arith.constant dense<0.000000e+00> : vector<1x64xf32>
    %64 = tpu.matmul %61, %63, %cst_38 {dimension_numbers = #tpu.dot_dimension_numbers<[1], [0], [0], [1], [0, 0, 1, 1], [], []>} : vector<1x591xf32>, vector<591x64xf32>, vector<1x64xf32> -> vector<1x64xf32>
    %65 = arith.addf %60, %64 : vector<1x64xf32>
    %66 = vector.extract_strided_slice %56 {offsets = [2, 0], sizes = [1, 591], strides = [1, 1]} : vector<8x591xf32> to vector<1x591xf32>
    %c2_39 = arith.constant 2 : index
    %c0_40 = arith.constant 0 : index
    %c0_41 = arith.constant 0 : index
    %67 = vector.load %arg3[%c2_39, %c0_40, %c0_41] : memref<8x591x64xf32, #tpu.memory_space<vmem>>, vector<1x591x64xf32>
    %68 = vector.shape_cast %67 : vector<1x591x64xf32> to vector<591x64xf32>
    %cst_42 = arith.constant dense<0.000000e+00> : vector<1x64xf32>
    %69 = tpu.matmul %66, %68, %cst_42 {dimension_numbers = #tpu.dot_dimension_numbers<[1], [0], [0], [1], [0, 0, 1, 1], [], []>} : vector<1x591xf32>, vector<591x64xf32>, vector<1x64xf32> -> vector<1x64xf32>
    %70 = arith.addf %65, %69 : vector<1x64xf32>
    %71 = vector.extract_strided_slice %56 {offsets = [3, 0], sizes = [1, 591], strides = [1, 1]} : vector<8x591xf32> to vector<1x591xf32>
    %c3_43 = arith.constant 3 : index
    %c0_44 = arith.constant 0 : index
    %c0_45 = arith.constant 0 : index
    %72 = vector.load %arg3[%c3_43, %c0_44, %c0_45] : memref<8x591x64xf32, #tpu.memory_space<vmem>>, vector<1x591x64xf32>
    %73 = vector.shape_cast %72 : vector<1x591x64xf32> to vector<591x64xf32>
    %cst_46 = arith.constant dense<0.000000e+00> : vector<1x64xf32>
    %74 = tpu.matmul %71, %73, %cst_46 {dimension_numbers = #tpu.dot_dimension_numbers<[1], [0], [0], [1], [0, 0, 1, 1], [], []>} : vector<1x591xf32>, vector<591x64xf32>, vector<1x64xf32> -> vector<1x64xf32>
    %75 = arith.addf %70, %74 : vector<1x64xf32>
    %76 = vector.extract_strided_slice %56 {offsets = [4, 0], sizes = [1, 591], strides = [1, 1]} : vector<8x591xf32> to vector<1x591xf32>
    %c4_47 = arith.constant 4 : index
    %c0_48 = arith.constant 0 : index
    %c0_49 = arith.constant 0 : index
    %77 = vector.load %arg3[%c4_47, %c0_48, %c0_49] : memref<8x591x64xf32, #tpu.memory_space<vmem>>, vector<1x591x64xf32>
    %78 = vector.shape_cast %77 : vector<1x591x64xf32> to vector<591x64xf32>
    %cst_50 = arith.constant dense<0.000000e+00> : vector<1x64xf32>
    %79 = tpu.matmul %76, %78, %cst_50 {dimension_numbers = #tpu.dot_dimension_numbers<[1], [0], [0], [1], [0, 0, 1, 1], [], []>} : vector<1x591xf32>, vector<591x64xf32>, vector<1x64xf32> -> vector<1x64xf32>
    %80 = arith.addf %75, %79 : vector<1x64xf32>
    %81 = vector.extract_strided_slice %56 {offsets = [5, 0], sizes = [1, 591], strides = [1, 1]} : vector<8x591xf32> to vector<1x591xf32>
    %c5_51 = arith.constant 5 : index
    %c0_52 = arith.constant 0 : index
    %c0_53 = arith.constant 0 : index
    %82 = vector.load %arg3[%c5_51, %c0_52, %c0_53] : memref<8x591x64xf32, #tpu.memory_space<vmem>>, vector<1x591x64xf32>
    %83 = vector.shape_cast %82 : vector<1x591x64xf32> to vector<591x64xf32>
    %cst_54 = arith.constant dense<0.000000e+00> : vector<1x64xf32>
    %84 = tpu.matmul %81, %83, %cst_54 {dimension_numbers = #tpu.dot_dimension_numbers<[1], [0], [0], [1], [0, 0, 1, 1], [], []>} : vector<1x591xf32>, vector<591x64xf32>, vector<1x64xf32> -> vector<1x64xf32>
    %85 = arith.addf %80, %84 : vector<1x64xf32>
    %86 = vector.extract_strided_slice %56 {offsets = [6, 0], sizes = [1, 591], strides = [1, 1]} : vector<8x591xf32> to vector<1x591xf32>
    %c6_55 = arith.constant 6 : index
    %c0_56 = arith.constant 0 : index
    %c0_57 = arith.constant 0 : index
    %87 = vector.load %arg3[%c6_55, %c0_56, %c0_57] : memref<8x591x64xf32, #tpu.memory_space<vmem>>, vector<1x591x64xf32>
    %88 = vector.shape_cast %87 : vector<1x591x64xf32> to vector<591x64xf32>
    %cst_58 = arith.constant dense<0.000000e+00> : vector<1x64xf32>
    %89 = tpu.matmul %86, %88, %cst_58 {dimension_numbers = #tpu.dot_dimension_numbers<[1], [0], [0], [1], [0, 0, 1, 1], [], []>} : vector<1x591xf32>, vector<591x64xf32>, vector<1x64xf32> -> vector<1x64xf32>
    %90 = arith.addf %85, %89 : vector<1x64xf32>
    %91 = vector.extract_strided_slice %56 {offsets = [7, 0], sizes = [1, 591], strides = [1, 1]} : vector<8x591xf32> to vector<1x591xf32>
    %c7_59 = arith.constant 7 : index
    %c0_60 = arith.constant 0 : index
    %c0_61 = arith.constant 0 : index
    %92 = vector.load %arg3[%c7_59, %c0_60, %c0_61] : memref<8x591x64xf32, #tpu.memory_space<vmem>>, vector<1x591x64xf32>
    %93 = vector.shape_cast %92 : vector<1x591x64xf32> to vector<591x64xf32>
    %cst_62 = arith.constant dense<0.000000e+00> : vector<1x64xf32>
    %94 = tpu.matmul %91, %93, %cst_62 {dimension_numbers = #tpu.dot_dimension_numbers<[1], [0], [0], [1], [0, 0, 1, 1], [], []>} : vector<1x591xf32>, vector<591x64xf32>, vector<1x64xf32> -> vector<1x64xf32>
    %95 = arith.addf %90, %94 : vector<1x64xf32>
    %c0_63 = arith.constant 0 : index
    %c0_64 = arith.constant 0 : index
    %96 = vector.load %arg4[%c0_63, %c0_64] : memref<1x64xf32, #tpu.memory_space<vmem>>, vector<1x64xf32>
    %97 = arith.addf %95, %96 : vector<1x64xf32>
    %cst_65 = arith.constant 0.000000e+00 : f32
    %98 = vector.broadcast %cst_65 : f32 to vector<1x64xf32>
    %99 = arith.maximumf %97, %98 : vector<1x64xf32>
    %c0_66 = arith.constant 0 : index
    %c0_67 = arith.constant 0 : index
    %100 = vector.load %arg5[%c0_66, %c0_67] : memref<64x20xf32, #tpu.memory_space<vmem>>, vector<64x20xf32>
    %cst_68 = arith.constant dense<0.000000e+00> : vector<1x20xf32>
    %101 = tpu.matmul %99, %100, %cst_68 {dimension_numbers = #tpu.dot_dimension_numbers<[1], [0], [0], [1], [0, 0, 1, 1], [], []>} : vector<1x64xf32>, vector<64x20xf32>, vector<1x20xf32> -> vector<1x20xf32>
    %c0_69 = arith.constant 0 : index
    %c0_70 = arith.constant 0 : index
    %102 = vector.load %arg6[%c0_69, %c0_70] : memref<1x20xf32, #tpu.memory_space<vmem>>, vector<1x20xf32>
    %103 = arith.addf %101, %102 : vector<1x20xf32>
    %c0_71 = arith.constant 0 : index
    %c0_72 = arith.constant 0 : index
    %104 = vector.load %arg7[%c0_71, %c0_72] : memref<1x20xf32, #tpu.memory_space<vmem>>, vector<1x20xf32>
    tpu.vector_store %arg7[%c0_71, %c0_72], %103 {strides = array<i32>} : memref<1x20xf32, #tpu.memory_space<vmem>>, vector<1x20xf32>,
    return
  }
}

</mosaic_0001>

<llo_original>
// kernel: tile.13
$region0: #{tile.13}
  #allocation0 [shape = 's32[1]{0}', space=sflag, size = 0x4, scoped, tag = 'scoped memory for tile.13']
  %s0 = inlined_call_operand.vmem [shape: f32[32], index: 0, kind: input, shape index: {}]
  %s1 = inlined_call_operand.vmem [shape: f32[2,32], index: 1, kind: output, shape index: {}]
  // Predicated region
  $region2: #{tile.13} parent=0 // pred_check
    _
  $region3: #{tile.13} parent=0 // pred_check_branch
    %3 = sbr.rel (0) target = $region5
  $region4: #{tile.13} parent=0 // pred_region
    _
  $region5: #{tile.13} parent=0 // pred_fallthru
    _
  %v4 = vld [vmem:[%s0] ss:$0 sm:$0xff]
  %5 = vst [vmem:[%s1] sm:$0x3] %v4

// kernel: tile.14
$region0: #{tile.14}
  %s0 = inlined_call_operand.vmem [shape: f32[2,32], index: 0, kind: input, shape index: {}]
  %s1 = inlined_call_operand.vmem [shape: f32[1,64], index: 1, kind: output, shape index: {}]
  $region1: #{tile.14} parent=0
    #allocation0 [shape = 'u8[4096]{0}', space=vmem, size = 0x1000, scoped, tag = 'scoped mem for output reshape']
    #allocation1 [shape = 'u8[4096]{0}', space=vmem, size = 0x1000, scoped, tag = 'scoped mem for input reshape']
    %s3 = sshllo.u32 0, 2
    %v4 = vld [vmem:[%s0] sm:%s3]
    %5 = vst [vmem:[#allocation1] sm:%s3] %v4
    %v6 = vld [vmem:[#allocation1] sm:$0x1]
    %vm7 = vcmask 261120
    %8 = vst.msk [vmem:[#allocation0] sm:$0x1] %vm7, %v6
    %s9 = scalar_lea.vmem [#allocation1], 1
    %v10 = vld [vmem:[%s9] sm:$0x1]
    %11 = vrot.lane.b32.xlu0 %v10, 32
    %v12 = vpop.permute.xlu0 %11
    %vm13 = vcmask 523520
    %14 = vst.msk [vmem:[#allocation0] sm:$0x1] %vm13, %v12
    %s16 = sshllo.u32 0, 1
    %v18 = vld [vmem:[#allocation0] sm:%s16]
    %s19 = sshllo.u32 0, 1
    %20 = vst [vmem:[%s1] sm:%s19] %v18

// kernel: tile.18
$region0: #{tile.18}
  #allocation0 [shape = 's32[1]{0}', space=sflag, size = 0x4, scoped, tag = 'scoped memory for tile.18']
  %s0 = inlined_call_operand.vmem [shape: f32[10], index: 0, kind: input, shape index: {}]
  %s1 = inlined_call_operand.vmem [shape: f32[2,10], index: 1, kind: output, shape index: {}]
  // Predicated region
  $region2: #{tile.18} parent=0 // pred_check
    _
  $region3: #{tile.18} parent=0 // pred_check_branch
    %3 = sbr.rel (0) target = $region5
  $region4: #{tile.18} parent=0 // pred_region
    _
  $region5: #{tile.18} parent=0 // pred_fallthru
    _
  %v4 = vld [vmem:[%s0] ss:$0 sm:$0xff]
  %5 = vst [vmem:[%s1] sm:$0x3] %v4

// kernel: tile.19
$region0: #{tile.19}
  %s0 = inlined_call_operand.vmem [shape: f32[2,10], index: 0, kind: input, shape index: {}]
  %s1 = inlined_call_operand.vmem [shape: f32[1,20], index: 1, kind: output, shape index: {}]
  $region1: #{tile.19} parent=0
    #allocation0 [shape = 'u8[4096]{0}', space=vmem, size = 0x1000, scoped, tag = 'scoped mem for output reshape']
    #allocation1 [shape = 'u8[4096]{0}', space=vmem, size = 0x1000, scoped, tag = 'scoped mem for input reshape']
    %s3 = sshllo.u32 0, 2
    %v4 = vld [vmem:[%s0] sm:%s3]
    %5 = vst [vmem:[#allocation1] sm:%s3] %v4
    %v6 = vld [vmem:[#allocation1] sm:$0x1]
    %vm7 = vcmask 80896
    %8 = vst.msk [vmem:[#allocation0] sm:$0x1] %vm7, %v6
    %s9 = scalar_lea.vmem [#allocation1], 1
    %v10 = vld [vmem:[%s9] sm:$0x1]
    %11 = vrot.lane.b32.xlu0 %v10, 10
    %v12 = vpop.permute.xlu0 %11
    %vm13 = vcmask 162896
    %14 = vst.msk [vmem:[#allocation0] sm:$0x1] %vm13, %v12
    %s16 = sshllo.u32 0, 1
    %v18 = vld [vmem:[#allocation0] sm:%s16]
    %s19 = sshllo.u32 0, 1
    %20 = vst [vmem:[%s1] sm:%s19] %v18

// kernel: conv_model_forward.1
$region0: #{conv_model_forward.1}
  #allocation0 [shape = 'u32[]', space=smem, size = 0x4, offset = 0x4, fixed_abs, tag = 'smem constant byte address 0x4 - core index']
  #allocation1 [shape = 'u32[144,128]{1,0:T(1,128)}', space=vmem, size = 0x12000, scoped, tag = 'internal scratch']
  %s0 = inlined_call_operand.vmem [shape: f32[4,648], index: 0, kind: input, shape index: {}]
  %s1 = inlined_call_operand.vmem [shape: f32[9,8,4], index: 1, kind: input, shape index: {}]
  %s2 = inlined_call_operand.vmem [shape: f32[8,1], index: 2, kind: input, shape index: {}]
  %s3 = inlined_call_operand.vmem [shape: f32[8,591,64], index: 3, kind: input, shape index: {}]
  %s4 = inlined_call_operand.vmem [shape: f32[1,64], index: 4, kind: input, shape index: {}]
  %s5 = inlined_call_operand.vmem [shape: f32[64,20], index: 5, kind: input, shape index: {}]
  %s6 = inlined_call_operand.vmem [shape: f32[1,20], index: 6, kind: input, shape index: {}]
  %s7 = inlined_call_operand.vmem [shape: f32[1,20], index: 7, kind: output, shape index: {}]
  %s8 = sld [smem:[#allocation0]]
  $region38: #{conv_model_forward.1} parent=0
    _
  %s10 = ssub.s32 1, %s8
  %s11 = scalar_select 0, %s10, %s8
  // Predicated region
  $region2: #{conv_model_forward.1} parent=0 // pred_check
    _
  $region3: #{conv_model_forward.1} parent=0 // pred_check_branch
    %13 = sbr.rel (0) target = $region5
  $region4: #{conv_model_forward.1} parent=0 // pred_region
    _
  $region5: #{conv_model_forward.1} parent=0 // pred_fallthru
    _
  // Predicated region
  $region6: #{conv_model_forward.1} parent=0 // pred_check
    _
  $region7: #{conv_model_forward.1} parent=0 // pred_check_branch
    %15 = sbr.rel (0) target = $region9
  $region8: #{conv_model_forward.1} parent=0 // pred_region
    _
  $region9: #{conv_model_forward.1} parent=0 // pred_fallthru
    _
  // Predicated region
  $region10: #{conv_model_forward.1} parent=0 // pred_check
    _
  $region11: #{conv_model_forward.1} parent=0 // pred_check_branch
    %17 = sbr.rel (0) target = $region13
  $region12: #{conv_model_forward.1} parent=0 // pred_region
    _
  $region13: #{conv_model_forward.1} parent=0 // pred_fallthru
    _
  // Predicated region
  $region14: #{conv_model_forward.1} parent=0 // pred_check
    _
  $region15: #{conv_model_forward.1} parent=0 // pred_check_branch
    %19 = sbr.rel (0) target = $region17
  $region16: #{conv_model_forward.1} parent=0 // pred_region
    _
  $region17: #{conv_model_forward.1} parent=0 // pred_fallthru
    _
  // Predicated region
  $region18: #{conv_model_forward.1} parent=0 // pred_check
    _
  $region19: #{conv_model_forward.1} parent=0 // pred_check_branch
    %21 = sbr.rel (0) target = $region21
  $region20: #{conv_model_forward.1} parent=0 // pred_region
    _
  $region21: #{conv_model_forward.1} parent=0 // pred_fallthru
    _
  // Predicated region
  $region22: #{conv_model_forward.1} parent=0 // pred_check
    _
  $region23: #{conv_model_forward.1} parent=0 // pred_check_branch
    %23 = sbr.rel (0) target = $region25
  $region24: #{conv_model_forward.1} parent=0 // pred_region
    _
  $region25: #{conv_model_forward.1} parent=0 // pred_fallthru
    _
  // Predicated region
  $region26: #{conv_model_forward.1} parent=0 // pred_check
    _
  $region27: #{conv_model_forward.1} parent=0 // pred_check_branch
    %25 = sbr.rel (0) target = $region29
  $region28: #{conv_model_forward.1} parent=0 // pred_region
    _
  $region29: #{conv_model_forward.1} parent=0 // pred_fallthru
    _
  %v26 = vld [vmem:[%s0] sm:$0xff]
  %v27 = vld [vmem:[%s0 + $0x8] sm:$0xff]
  %v28 = vld [vmem:[%s0 + $0x10] sm:$0xff]
  %v29 = vld [vmem:[%s1] sm:$0xff]
  %s30 = scalar_lea.vmem %s1, 8
  %v31 = vld [vmem:[%s30] sm:$0xff]
  %v35 = vcombine.high %v26, %v26
  %v36 = vcombine.high %v27, %v27
  %37 = vrot.lane.b32.xlu0 %v26, 127
  %v38 = vpop.permute.xlu0 %37
  %39 = vrot.lane.b32.xlu0 %v35, 127
  %v40 = vpop.permute.xlu0 %39
  %41 = vrot.lane.b32.xlu0 %v27, 127
  %v42 = vpop.permute.xlu0 %41
  %43 = vrot.lane.b32.xlu0 %v36, 127
  %v44 = vpop.permute.xlu0 %43
  %45 = vrot.lane.b32.xlu0 %v28, 127
  %v46 = vpop.permute.xlu0 %45
  %vm47 = vcmask 1039360
  %v48 = vsel %vm47, %v38, %v40
  %v49 = vsel %vm47, %v40, %v42
  %v50 = vsel %vm47, %v42, %v44
  %v51 = vsel %vm47, %v44, %v46
  %vm52 = vcmask 31744
  %v54 = vsel %vm52, %v31, 0
  %vm56 = vcmask 1043456
  %v57 = vsel %vm56, %v48, 0
  %v59 = vsel %vm56, %v49, 0
  %v61 = vsel %vm56, %v50, 0
  %v63 = vsel %vm56, %v51, 0
  %v65 = vsel %vm56, %v46, 0
  %67 = vmatprep.subr.mxu0 %v59
  %68 = vmatpush1.msra.mxu0 %v57
  %69 = vmatprep.subr.mxu0 0.0
  %70 = vmatpush1.msra.mxu0 0.0
  %71 = vmatprep.subr.mxu0 0.0
  %72 = vmatpush1.msra.mxu0 0.0
  %73 = vmatprep.subr.mxu0 0.0
  %74 = vmatpush1.msra.mxu0 0.0
  %75 = vmatprep.subr.mxu0 0.0
  %76 = vmatpush1.msra.mxu0 0.0
  %77 = vmatprep.subr.mxu0 0.0
  %78 = vmatpush1.msra.mxu0 0.0
  %79 = vmatprep.subr.mxu0 0.0
  %80 = vmatpush1.msra.mxu0 0.0
  %81 = vmatprep.subr.mxu0 0.0
  %82 = vmatpush1.msra.mxu0 0.0
  %83 = vmatprep.subr.mxu0 0.0
  %84 = vmatpush1.msra.mxu0 0.0
  %85 = vmatprep.subr.mxu0 0.0
  %86 = vmatpush1.msra.mxu0 0.0
  %87 = vmatprep.subr.mxu0 0.0
  %88 = vmatpush1.msra.mxu0 0.0
  %89 = vmatprep.subr.mxu0 0.0
  %90 = vmatpush1.msra.mxu0 0.0
  %91 = vmatprep.subr.mxu0 0.0
  %92 = vmatpush1.msra.mxu0 0.0
  %93 = vmatprep.subr.mxu0 0.0
  %94 = vmatpush1.msra.mxu0 0.0
  %95 = vmatprep.subr.mxu0 0.0
  %96 = vmatpush1.msra.mxu0 0.0
  %97 = vmatprep.subr.mxu0 0.0
  %98 = vmatpush1.msra.mxu0 0.0
  %99 = vmatprep.subr.mxu0 0.0
  %100 = vmatpush1.msra.mxu0 0.0
  %101 = vmatprep.subr.mxu0 0.0
  %102 = vmatpush1.msra.mxu0 0.0
  %103 = vmatprep.subr.mxu0 0.0
  %104 = vmatpush1.msra.mxu0 0.0
  %105 = vmatprep.subr.mxu0 0.0
  %106 = vmatpush1.msra.mxu0 0.0
  %107 = vmatprep.subr.mxu0 0.0
  %108 = vmatpush1.msra.mxu0 0.0
  %109 = vmatprep.subr.mxu0 0.0
  %110 = vmatpush1.msra.mxu0 0.0
  %111 = vmatprep.subr.mxu0 0.0
  %112 = vmatpush1.msra.mxu0 0.0
  %113 = vmatprep.subr.mxu0 0.0
  %114 = vmatpush1.msra.mxu0 0.0
  %115 = vmatprep.subr.mxu0 0.0
  %116 = vmatpush1.msra.mxu0 0.0
  %117 = vmatprep.subr.mxu0 0.0
  %118 = vmatpush1.msra.mxu0 0.0
  %119 = vmatprep.subr.mxu0 0.0
  %120 = vmatpush1.msra.mxu0 0.0
  %121 = vmatprep.subr.mxu0 0.0
  %122 = vmatpush1.msra.mxu0 0.0
  %123 = vmatprep.subr.mxu0 0.0
  %124 = vmatpush1.msra.mxu0 0.0
  %125 = vmatprep.subr.mxu0 0.0
  %126 = vmatpush1.msra.mxu0 0.0
  %127 = vmatprep.subr.mxu0 0.0
  %128 = vmatpush1.msra.mxu0 0.0
  %129 = vmatprep.subr.mxu0 0.0
  %130 = vmatpush1.msra.mxu0 0.0
  %131 = vmatprep.mubr.f32.mxu0 0.0
  %132 = vmatmul.mubr.f32.gmra.mrb[0].mxu0 %v54
  %v133 = vpop.f32.mrb[0].mxu0
  %v134 = vadd.f32 0.0, %v133
  %v135 = vpop.f32.mrb[0].mxu0
  %v136 = vadd.f32 0.0, %v135
  %137 = vdwg.mxu0
  %138 = vmatprep.subr.mxu0 %v63
  %139 = vmatpush1.msra.mxu0 %v61
  %140 = vmatprep.subr.mxu0 0.0
  %141 = vmatpush1.msra.mxu0 0.0
  %142 = vmatprep.subr.mxu0 0.0
  %143 = vmatpush1.msra.mxu0 0.0
  %144 = vmatprep.subr.mxu0 0.0
  %145 = vmatpush1.msra.mxu0 0.0
  %146 = vmatprep.subr.mxu0 0.0
  %147 = vmatpush1.msra.mxu0 0.0
  %148 = vmatprep.subr.mxu0 0.0
  %149 = vmatpush1.msra.mxu0 0.0
  %150 = vmatprep.subr.mxu0 0.0
  %151 = vmatpush1.msra.mxu0 0.0
  %152 = vmatprep.subr.mxu0 0.0
  %153 = vmatpush1.msra.mxu0 0.0
  %154 = vmatprep.subr.mxu0 0.0
  %155 = vmatpush1.msra.mxu0 0.0
  %156 = vmatprep.subr.mxu0 0.0
  %157 = vmatpush1.msra.mxu0 0.0
  %158 = vmatprep.subr.mxu0 0.0
  %159 = vmatpush1.msra.mxu0 0.0
  %160 = vmatprep.subr.mxu0 0.0
  %161 = vmatpush1.msra.mxu0 0.0
  %162 = vmatprep.subr.mxu0 0.0
  %163 = vmatpush1.msra.mxu0 0.0
  %164 = vmatprep.subr.mxu0 0.0
  %165 = vmatpush1.msra.mxu0 0.0
  %166 = vmatprep.subr.mxu0 0.0
  %167 = vmatpush1.msra.mxu0 0.0
  %168 = vmatprep.subr.mxu0 0.0
  %169 = vmatpush1.msra.mxu0 0.0
  %170 = vmatprep.subr.mxu0 0.0
  %171 = vmatpush1.msra.mxu0 0.0
  %172 = vmatprep.subr.mxu0 0.0
  %173 = vmatpush1.msra.mxu0 0.0
  %174 = vmatprep.subr.mxu0 0.0
  %175 = vmatpush1.msra.mxu0 0.0
  %176 = vmatprep.subr.mxu0 0.0
  %177 = vmatpush1.msra.mxu0 0.0
  %178 = vmatprep.subr.mxu0 0.0
  %179 = vmatpush1.msra.mxu0 0.0
  %180 = vmatprep.subr.mxu0 0.0
  %181 = vmatpush1.msra.mxu0 0.0
  %182 = vmatprep.subr.mxu0 0.0
  %183 = vmatpush1.msra.mxu0 0.0
  %184 = vmatprep.subr.mxu0 0.0
  %185 = vmatpush1.msra.mxu0 0.0
  %186 = vmatprep.subr.mxu0 0.0
  %187 = vmatpush1.msra.mxu0 0.0
  %188 = vmatprep.subr.mxu0 0.0
  %189 = vmatpush1.msra.mxu0 0.0
  %190 = vmatprep.subr.mxu0 0.0
  %191 = vmatpush1.msra.mxu0 0.0
  %192 = vmatprep.subr.mxu0 0.0
  %193 = vmatpush1.msra.mxu0 0.0
  %194 = vmatprep.subr.mxu0 0.0
  %195 = vmatpush1.msra.mxu0 0.0
  %196 = vmatprep.subr.mxu0 0.0
  %197 = vmatpush1.msra.mxu0 0.0
  %198 = vmatprep.subr.mxu0 0.0
  %199 = vmatpush1.msra.mxu0 0.0
  %200 = vmatprep.subr.mxu0 0.0
  %201 = vmatpush1.msra.mxu0 0.0
  %202 = vmatprep.mubr.f32.mxu0 0.0
  %203 = vmatmul.mubr.f32.gmra.mrb[0].mxu0 %v54
  %v204 = vpop.f32.mrb[0].mxu0
  %v205 = vadd.f32 0.0, %v204
  %v206 = vpop.f32.mrb[0].mxu0
  %v207 = vadd.f32 0.0, %v206
  %208 = vdwg.mxu0
  %209 = vmatprep.subr.mxu0 0.0
  %210 = vmatpush1.msra.mxu0 %v65
  %211 = vmatprep.subr.mxu0 0.0
  %212 = vmatpush1.msra.mxu0 0.0
  %213 = vmatprep.subr.mxu0 0.0
  %214 = vmatpush1.msra.mxu0 0.0
  %215 = vmatprep.subr.mxu0 0.0
  %216 = vmatpush1.msra.mxu0 0.0
  %217 = vmatprep.subr.mxu0 0.0
  %218 = vmatpush1.msra.mxu0 0.0
  %219 = vmatprep.subr.mxu0 0.0
  %220 = vmatpush1.msra.mxu0 0.0
  %221 = vmatprep.subr.mxu0 0.0
  %222 = vmatpush1.msra.mxu0 0.0
  %223 = vmatprep.subr.mxu0 0.0
  %224 = vmatpush1.msra.mxu0 0.0
  %225 = vmatprep.subr.mxu0 0.0
  %226 = vmatpush1.msra.mxu0 0.0
  %227 = vmatprep.subr.mxu0 0.0
  %228 = vmatpush1.msra.mxu0 0.0
  %229 = vmatprep.subr.mxu0 0.0
  %230 = vmatpush1.msra.mxu0 0.0
  %231 = vmatprep.subr.mxu0 0.0
  %232 = vmatpush1.msra.mxu0 0.0
  %233 = vmatprep.subr.mxu0 0.0
  %234 = vmatpush1.msra.mxu0 0.0
  %235 = vmatprep.subr.mxu0 0.0
  %236 = vmatpush1.msra.mxu0 0.0
  %237 = vmatprep.subr.mxu0 0.0
  %238 = vmatpush1.msra.mxu0 0.0
  %239 = vmatprep.subr.mxu0 0.0
  %240 = vmatpush1.msra.mxu0 0.0
  %241 = vmatprep.subr.mxu0 0.0
  %242 = vmatpush1.msra.mxu0 0.0
  %243 = vmatprep.subr.mxu0 0.0
  %244 = vmatpush1.msra.mxu0 0.0
  %245 = vmatprep.subr.mxu0 0.0
  %246 = vmatpush1.msra.mxu0 0.0
  %247 = vmatprep.subr.mxu0 0.0
  %248 = vmatpush1.msra.mxu0 0.0
  %249 = vmatprep.subr.mxu0 0.0
  %250 = vmatpush1.msra.mxu0 0.0
  %251 = vmatprep.subr.mxu0 0.0
  %252 = vmatpush1.msra.mxu0 0.0
  %253 = vmatprep.subr.mxu0 0.0
  %254 = vmatpush1.msra.mxu0 0.0
  %255 = vmatprep.subr.mxu0 0.0
  %256 = vmatpush1.msra.mxu0 0.0
  %257 = vmatprep.subr.mxu0 0.0
  %258 = vmatpush1.msra.mxu0 0.0
  %259 = vmatprep.subr.mxu0 0.0
  %260 = vmatpush1.msra.mxu0 0.0
  %261 = vmatprep.subr.mxu0 0.0
  %262 = vmatpush1.msra.mxu0 0.0
  %263 = vmatprep.subr.mxu0 0.0
  %264 = vmatpush1.msra.mxu0 0.0
  %265 = vmatprep.subr.mxu0 0.0
  %266 = vmatpush1.msra.mxu0 0.0
  %267 = vmatprep.subr.mxu0 0.0
  %268 = vmatpush1.msra.mxu0 0.0
  %269 = vmatprep.subr.mxu0 0.0
  %270 = vmatpush1.msra.mxu0 0.0
  %271 = vmatprep.subr.mxu0 0.0
  %272 = vmatpush1.msra.mxu0 0.0
  %273 = vmatprep.mubr.f32.mxu0 0.0
  %274 = vmatmul.mubr.f32.gmra.mrb[0].mxu0 %v54
  %v275 = vpop.f32.mrb[0].mxu0
  %v276 = vadd.f32 0.0, %v275
  %v277 = vpop.f32.mrb[0].mxu0
  %278 = vdwg.mxu0
  %v280 = vsel %vm52, %v29, 0
  %v282 = vsel %vm56, %v26, 0
  %v284 = vsel %vm56, %v35, 0
  %v286 = vsel %vm56, %v27, 0
  %v288 = vsel %vm56, %v36, 0
  %v290 = vsel %vm56, %v28, 0
  %292 = vmatprep.subr.mxu0 %v284
  %293 = vmatpush1.msra.mxu0 %v282
  %294 = vmatprep.subr.mxu0 0.0
  %295 = vmatpush1.msra.mxu0 0.0
  %296 = vmatprep.subr.mxu0 0.0
  %297 = vmatpush1.msra.mxu0 0.0
  %298 = vmatprep.subr.mxu0 0.0
  %299 = vmatpush1.msra.mxu0 0.0
  %300 = vmatprep.subr.mxu0 0.0
  %301 = vmatpush1.msra.mxu0 0.0
  %302 = vmatprep.subr.mxu0 0.0
  %303 = vmatpush1.msra.mxu0 0.0
  %304 = vmatprep.subr.mxu0 0.0
  %305 = vmatpush1.msra.mxu0 0.0
  %306 = vmatprep.subr.mxu0 0.0
  %307 = vmatpush1.msra.mxu0 0.0
  %308 = vmatprep.subr.mxu0 0.0
  %309 = vmatpush1.msra.mxu0 0.0
  %310 = vmatprep.subr.mxu0 0.0
  %311 = vmatpush1.msra.mxu0 0.0
  %312 = vmatprep.subr.mxu0 0.0
  %313 = vmatpush1.msra.mxu0 0.0
  %314 = vmatprep.subr.mxu0 0.0
  %315 = vmatpush1.msra.mxu0 0.0
  %316 = vmatprep.subr.mxu0 0.0
  %317 = vmatpush1.msra.mxu0 0.0
  %318 = vmatprep.subr.mxu0 0.0
  %319 = vmatpush1.msra.mxu0 0.0
  %320 = vmatprep.subr.mxu0 0.0
  %321 = vmatpush1.msra.mxu0 0.0
  %322 = vmatprep.subr.mxu0 0.0
  %323 = vmatpush1.msra.mxu0 0.0
  %324 = vmatprep.subr.mxu0 0.0
  %325 = vmatpush1.msra.mxu0 0.0
  %326 = vmatprep.subr.mxu0 0.0
  %327 = vmatpush1.msra.mxu0 0.0
  %328 = vmatprep.subr.mxu0 0.0
  %329 = vmatpush1.msra.mxu0 0.0
  %330 = vmatprep.subr.mxu0 0.0
  %331 = vmatpush1.msra.mxu0 0.0
  %332 = vmatprep.subr.mxu0 0.0
  %333 = vmatpush1.msra.mxu0 0.0
  %334 = vmatprep.subr.mxu0 0.0
  %335 = vmatpush1.msra.mxu0 0.0
  %336 = vmatprep.subr.mxu0 0.0
  %337 = vmatpush1.msra.mxu0 0.0
  %338 = vmatprep.subr.mxu0 0.0
  %339 = vmatpush1.msra.mxu0 0.0
  %340 = vmatprep.subr.mxu0 0.0
  %341 = vmatpush1.msra.mxu0 0.0
  %342 = vmatprep.subr.mxu0 0.0
  %343 = vmatpush1.msra.mxu0 0.0
  %344 = vmatprep.subr.mxu0 0.0
  %345 = vmatpush1.msra.mxu0 0.0
  %346 = vmatprep.subr.mxu0 0.0
  %347 = vmatpush1.msra.mxu0 0.0
  %348 = vmatprep.subr.mxu0 0.0
  %349 = vmatpush1.msra.mxu0 0.0
  %350 = vmatprep.subr.mxu0 0.0
  %351 = vmatpush1.msra.mxu0 0.0
  %352 = vmatprep.subr.mxu0 0.0
  %353 = vmatpush1.msra.mxu0 0.0
  %354 = vmatprep.subr.mxu0 0.0
  %355 = vmatpush1.msra.mxu0 0.0
  %356 = vmatprep.mubr.f32.mxu0 0.0
  %357 = vmatmul.mubr.f32.gmra.mrb[0].mxu0 %v280
  %v358 = vpop.f32.mrb[0].mxu0
  %v359 = vadd.f32 %v134, %v358
  %v360 = vpop.f32.mrb[0].mxu0
  %v361 = vadd.f32 %v136, %v360
  %362 = vdwg.mxu0
  %363 = vmatprep.subr.mxu0 %v288
  %364 = vmatpush1.msra.mxu0 %v286
  %365 = vmatprep.subr.mxu0 0.0
  %366 = vmatpush1.msra.mxu0 0.0
  %367 = vmatprep.subr.mxu0 0.0
  %368 = vmatpush1.msra.mxu0 0.0
  %369 = vmatprep.subr.mxu0 0.0
  %370 = vmatpush1.msra.mxu0 0.0
  %371 = vmatprep.subr.mxu0 0.0
  %372 = vmatpush1.msra.mxu0 0.0
  %373 = vmatprep.subr.mxu0 0.0
  %374 = vmatpush1.msra.mxu0 0.0
  %375 = vmatprep.subr.mxu0 0.0
  %376 = vmatpush1.msra.mxu0 0.0
  %377 = vmatprep.subr.mxu0 0.0
  %378 = vmatpush1.msra.mxu0 0.0
  %379 = vmatprep.subr.mxu0 0.0
  %380 = vmatpush1.msra.mxu0 0.0
  %381 = vmatprep.subr.mxu0 0.0
  %382 = vmatpush1.msra.mxu0 0.0
  %383 = vmatprep.subr.mxu0 0.0
  %384 = vmatpush1.msra.mxu0 0.0
  %385 = vmatprep.subr.mxu0 0.0
  %386 = vmatpush1.msra.mxu0 0.0
  %387 = vmatprep.subr.mxu0 0.0
  %388 = vmatpush1.msra.mxu0 0.0
  %389 = vmatprep.subr.mxu0 0.0
  %390 = vmatpush1.msra.mxu0 0.0
  %391 = vmatprep.subr.mxu0 0.0
  %392 = vmatpush1.msra.mxu0 0.0
  %393 = vmatprep.subr.mxu0 0.0
  %394 = vmatpush1.msra.mxu0 0.0
  %395 = vmatprep.subr.mxu0 0.0
  %396 = vmatpush1.msra.mxu0 0.0
  %397 = vmatprep.subr.mxu0 0.0
  %398 = vmatpush1.msra.mxu0 0.0
  %399 = vmatprep.subr.mxu0 0.0
  %400 = vmatpush1.msra.mxu0 0.0
  %401 = vmatprep.subr.mxu0 0.0
  %402 = vmatpush1.msra.mxu0 0.0
  %403 = vmatprep.subr.mxu0 0.0
  %404 = vmatpush1.msra.mxu0 0.0
  %405 = vmatprep.subr.mxu0 0.0
  %406 = vmatpush1.msra.mxu0 0.0
  %407 = vmatprep.subr.mxu0 0.0
  %408 = vmatpush1.msra.mxu0 0.0
  %409 = vmatprep.subr.mxu0 0.0
  %410 = vmatpush1.msra.mxu0 0.0
  %411 = vmatprep.subr.mxu0 0.0
  %412 = vmatpush1.msra.mxu0 0.0
  %413 = vmatprep.subr.mxu0 0.0
  %414 = vmatpush1.msra.mxu0 0.0
  %415 = vmatprep.subr.mxu0 0.0
  %416 = vmatpush1.msra.mxu0 0.0
  %417 = vmatprep.subr.mxu0 0.0
  %418 = vmatpush1.msra.mxu0 0.0
  %419 = vmatprep.subr.mxu0 0.0
  %420 = vmatpush1.msra.mxu0 0.0
  %421 = vmatprep.subr.mxu0 0.0
  %422 = vmatpush1.msra.mxu0 0.0
  %423 = vmatprep.subr.mxu0 0.0
  %424 = vmatpush1.msra.mxu0 0.0
  %425 = vmatprep.subr.mxu0 0.0
  %426 = vmatpush1.msra.mxu0 0.0
  %427 = vmatprep.mubr.f32.mxu0 0.0
  %428 = vmatmul.mubr.f32.gmra.mrb[0].mxu0 %v280
  %v429 = vpop.f32.mrb[0].mxu0
  %v430 = vadd.f32 %v205, %v429
  %v431 = vpop.f32.mrb[0].mxu0
  %v432 = vadd.f32 %v207, %v431
  %433 = vdwg.mxu0
  %434 = vmatprep.subr.mxu0 0.0
  %435 = vmatpush1.msra.mxu0 %v290
  %436 = vmatprep.subr.mxu0 0.0
  %437 = vmatpush1.msra.mxu0 0.0
  %438 = vmatprep.subr.mxu0 0.0
  %439 = vmatpush1.msra.mxu0 0.0
  %440 = vmatprep.subr.mxu0 0.0
  %441 = vmatpush1.msra.mxu0 0.0
  %442 = vmatprep.subr.mxu0 0.0
  %443 = vmatpush1.msra.mxu0 0.0
  %444 = vmatprep.subr.mxu0 0.0
  %445 = vmatpush1.msra.mxu0 0.0
  %446 = vmatprep.subr.mxu0 0.0
  %447 = vmatpush1.msra.mxu0 0.0
  %448 = vmatprep.subr.mxu0 0.0
  %449 = vmatpush1.msra.mxu0 0.0
  %450 = vmatprep.subr.mxu0 0.0
  %451 = vmatpush1.msra.mxu0 0.0
  %452 = vmatprep.subr.mxu0 0.0
  %453 = vmatpush1.msra.mxu0 0.0
  %454 = vmatprep.subr.mxu0 0.0
  %455 = vmatpush1.msra.mxu0 0.0
  %456 = vmatprep.subr.mxu0 0.0
  %457 = vmatpush1.msra.mxu0 0.0
  %458 = vmatprep.subr.mxu0 0.0
  %459 = vmatpush1.msra.mxu0 0.0
  %460 = vmatprep.subr.mxu0 0.0
  %461 = vmatpush1.msra.mxu0 0.0
  %462 = vmatprep.subr.mxu0 0.0
  %463 = vmatpush1.msra.mxu0 0.0
  %464 = vmatprep.subr.mxu0 0.0
  %465 = vmatpush1.msra.mxu0 0.0
  %466 = vmatprep.subr.mxu0 0.0
  %467 = vmatpush1.msra.mxu0 0.0
  %468 = vmatprep.subr.mxu0 0.0
  %469 = vmatpush1.msra.mxu0 0.0
  %470 = vmatprep.subr.mxu0 0.0
  %471 = vmatpush1.msra.mxu0 0.0
  %472 = vmatprep.subr.mxu0 0.0
  %473 = vmatpush1.msra.mxu0 0.0
  %474 = vmatprep.subr.mxu0 0.0
  %475 = vmatpush1.msra.mxu0 0.0
  %476 = vmatprep.subr.mxu0 0.0
  %477 = vmatpush1.msra.mxu0 0.0
  %478 = vmatprep.subr.mxu0 0.0
  %479 = vmatpush1.msra.mxu0 0.0
  %480 = vmatprep.subr.mxu0 0.0
  %481 = vmatpush1.msra.mxu0 0.0
  %482 = vmatprep.subr.mxu0 0.0
  %483 = vmatpush1.msra.mxu0 0.0
  %484 = vmatprep.subr.mxu0 0.0
  %485 = vmatpush1.msra.mxu0 0.0
  %486 = vmatprep.subr.mxu0 0.0
  %487 = vmatpush1.msra.mxu0 0.0
  %488 = vmatprep.subr.mxu0 0.0
  %489 = vmatpush1.msra.mxu0 0.0
  %490 = vmatprep.subr.mxu0 0.0
  %491 = vmatpush1.msra.mxu0 0.0
  %492 = vmatprep.subr.mxu0 0.0
  %493 = vmatpush1.msra.mxu0 0.0
  %494 = vmatprep.subr.mxu0 0.0
  %495 = vmatpush1.msra.mxu0 0.0
  %496 = vmatprep.subr.mxu0 0.0
  %497 = vmatpush1.msra.mxu0 0.0
  %498 = vmatprep.mubr.f32.mxu0 0.0
  %499 = vmatmul.mubr.f32.gmra.mrb[0].mxu0 %v280
  %v500 = vpop.f32.mrb[0].mxu0
  %v501 = vadd.f32 %v276, %v500
  %v502 = vpop.f32.mrb[0].mxu0
  %503 = vdwg.mxu0
  %s504 = scalar_lea.vmem %s1, 16
  %v505 = vld [vmem:[%s504] sm:$0xff]
  %506 = vrot.lane.b32.xlu0 %v26, 126
  %v507 = vpop.permute.xlu0 %506
  %508 = vrot.lane.b32.xlu0 %v35, 126
  %v509 = vpop.permute.xlu0 %508
  %510 = vrot.lane.b32.xlu0 %v27, 126
  %v511 = vpop.permute.xlu0 %510
  %512 = vrot.lane.b32.xlu0 %v36, 126
  %v513 = vpop.permute.xlu0 %512
  %514 = vrot.lane.b32.xlu0 %v28, 126
  %v515 = vpop.permute.xlu0 %514
  %vm516 = vcmask 1031168
  %v517 = vsel %vm516, %v507, %v509
  %v518 = vsel %vm516, %v509, %v511
  %v519 = vsel %vm516, %v511, %v513
  %v520 = vsel %vm516, %v513, %v515
  %v522 = vsel %vm52, %v505, 0
  %v524 = vsel %vm56, %v517, 0
  %v526 = vsel %vm56, %v518, 0
  %v528 = vsel %vm56, %v519, 0
  %v530 = vsel %vm56, %v520, 0
  %v532 = vsel %vm56, %v515, 0
  %534 = vmatprep.subr.mxu0 %v526
  %535 = vmatpush1.msra.mxu0 %v524
  %536 = vmatprep.subr.mxu0 0.0
  %537 = vmatpush1.msra.mxu0 0.0
  %538 = vmatprep.subr.mxu0 0.0
  %539 = vmatpush1.msra.mxu0 0.0
  %540 = vmatprep.subr.mxu0 0.0
  %541 = vmatpush1.msra.mxu0 0.0
  %542 = vmatprep.subr.mxu0 0.0
  %543 = vmatpush1.msra.mxu0 0.0
  %544 = vmatprep.subr.mxu0 0.0
  %545 = vmatpush1.msra.mxu0 0.0
  %546 = vmatprep.subr.mxu0 0.0
  %547 = vmatpush1.msra.mxu0 0.0
  %548 = vmatprep.subr.mxu0 0.0
  %549 = vmatpush1.msra.mxu0 0.0
  %550 = vmatprep.subr.mxu0 0.0
  %551 = vmatpush1.msra.mxu0 0.0
  %552 = vmatprep.subr.mxu0 0.0
  %553 = vmatpush1.msra.mxu0 0.0
  %554 = vmatprep.subr.mxu0 0.0
  %555 = vmatpush1.msra.mxu0 0.0
  %556 = vmatprep.subr.mxu0 0.0
  %557 = vmatpush1.msra.mxu0 0.0
  %558 = vmatprep.subr.mxu0 0.0
  %559 = vmatpush1.msra.mxu0 0.0
  %560 = vmatprep.subr.mxu0 0.0
  %561 = vmatpush1.msra.mxu0 0.0
  %562 = vmatprep.subr.mxu0 0.0
  %563 = vmatpush1.msra.mxu0 0.0
  %564 = vmatprep.subr.mxu0 0.0
  %565 = vmatpush1.msra.mxu0 0.0
  %566 = vmatprep.subr.mxu0 0.0
  %567 = vmatpush1.msra.mxu0 0.0
  %568 = vmatprep.subr.mxu0 0.0
  %569 = vmatpush1.msra.mxu0 0.0
  %570 = vmatprep.subr.mxu0 0.0
  %571 = vmatpush1.msra.mxu0 0.0
  %572 = vmatprep.subr.mxu0 0.0
  %573 = vmatpush1.msra.mxu0 0.0
  %574 = vmatprep.subr.mxu0 0.0
  %575 = vmatpush1.msra.mxu0 0.0
  %576 = vmatprep.subr.mxu0 0.0
  %577 = vmatpush1.msra.mxu0 0.0
  %578 = vmatprep.subr.mxu0 0.0
  %579 = vmatpush1.msra.mxu0 0.0
  %580 = vmatprep.subr.mxu0 0.0
  %581 = vmatpush1.msra.mxu0 0.0
  %582 = vmatprep.subr.mxu0 0.0
  %583 = vmatpush1.msra.mxu0 0.0
  %584 = vmatprep.subr.mxu0 0.0
  %585 = vmatpush1.msra.mxu0 0.0
  %586 = vmatprep.subr.mxu0 0.0
  %587 = vmatpush1.msra.mxu0 0.0
  %588 = vmatprep.subr.mxu0 0.0
  %589 = vmatpush1.msra.mxu0 0.0
  %590 = vmatprep.subr.mxu0 0.0
  %591 = vmatpush1.msra.mxu0 0.0
  %592 = vmatprep.subr.mxu0 0.0
  %593 = vmatpush1.msra.mxu0 0.0
  %594 = vmatprep.subr.mxu0 0.0
  %595 = vmatpush1.msra.mxu0 0.0
  %596 = vmatprep.subr.mxu0 0.0
  %597 = vmatpush1.msra.mxu0 0.0
  %598 = vmatprep.mubr.f32.mxu0 0.0
  %599 = vmatmul.mubr.f32.gmra.mrb[0].mxu0 %v522
  %v600 = vpop.f32.mrb[0].mxu0
  %v601 = vadd.f32 0.0, %v600
  %v602 = vpop.f32.mrb[0].mxu0
  %v603 = vadd.f32 0.0, %v602
  %604 = vdwg.mxu0
  %605 = vmatprep.subr.mxu0 %v530
  %606 = vmatpush1.msra.mxu0 %v528
  %607 = vmatprep.subr.mxu0 0.0
  %608 = vmatpush1.msra.mxu0 0.0
  %609 = vmatprep.subr.mxu0 0.0
  %610 = vmatpush1.msra.mxu0 0.0
  %611 = vmatprep.subr.mxu0 0.0
  %612 = vmatpush1.msra.mxu0 0.0
  %613 = vmatprep.subr.mxu0 0.0
  %614 = vmatpush1.msra.mxu0 0.0
  %615 = vmatprep.subr.mxu0 0.0
  %616 = vmatpush1.msra.mxu0 0.0
  %617 = vmatprep.subr.mxu0 0.0
  %618 = vmatpush1.msra.mxu0 0.0
  %619 = vmatprep.subr.mxu0 0.0
  %620 = vmatpush1.msra.mxu0 0.0
  %621 = vmatprep.subr.mxu0 0.0
  %622 = vmatpush1.msra.mxu0 0.0
  %623 = vmatprep.subr.mxu0 0.0
  %624 = vmatpush1.msra.mxu0 0.0
  %625 = vmatprep.subr.mxu0 0.0
  %626 = vmatpush1.msra.mxu0 0.0
  %627 = vmatprep.subr.mxu0 0.0
  %628 = vmatpush1.msra.mxu0 0.0
  %629 = vmatprep.subr.mxu0 0.0
  %630 = vmatpush1.msra.mxu0 0.0
  %631 = vmatprep.subr.mxu0 0.0
  %632 = vmatpush1.msra.mxu0 0.0
  %633 = vmatprep.subr.mxu0 0.0
  %634 = vmatpush1.msra.mxu0 0.0
  %635 = vmatprep.subr.mxu0 0.0
  %636 = vmatpush1.msra.mxu0 0.0
  %637 = vmatprep.subr.mxu0 0.0
  %638 = vmatpush1.msra.mxu0 0.0
  %639 = vmatprep.subr.mxu0 0.0
  %640 = vmatpush1.msra.mxu0 0.0
  %641 = vmatprep.subr.mxu0 0.0
  %642 = vmatpush1.msra.mxu0 0.0
  %643 = vmatprep.subr.mxu0 0.0
  %644 = vmatpush1.msra.mxu0 0.0
  %645 = vmatprep.subr.mxu0 0.0
  %646 = vmatpush1.msra.mxu0 0.0
  %647 = vmatprep.subr.mxu0 0.0
  %648 = vmatpush1.msra.mxu0 0.0
  %649 = vmatprep.subr.mxu0 0.0
  %650 = vmatpush1.msra.mxu0 0.0
  %651 = vmatprep.subr.mxu0 0.0
  %652 = vmatpush1.msra.mxu0 0.0
  %653 = vmatprep.subr.mxu0 0.0
  %654 = vmatpush1.msra.mxu0 0.0
  %655 = vmatprep.subr.mxu0 0.0
  %656 = vmatpush1.msra.mxu0 0.0
  %657 = vmatprep.subr.mxu0 0.0
  %658 = vmatpush1.msra.mxu0 0.0
  %659 = vmatprep.subr.mxu0 0.0
  %660 = vmatpush1.msra.mxu0 0.0
  %661 = vmatprep.subr.mxu0 0.0
  %662 = vmatpush1.msra.mxu0 0.0
  %663 = vmatprep.subr.mxu0 0.0
  %664 = vmatpush1.msra.mxu0 0.0
  %665 = vmatprep.subr.mxu0 0.0
  %666 = vmatpush1.msra.mxu0 0.0
  %667 = vmatprep.subr.mxu0 0.0
  %668 = vmatpush1.msra.mxu0 0.0
  %669 = vmatprep.mubr.f32.mxu0 0.0
  %670 = vmatmul.mubr.f32.gmra.mrb[0].mxu0 %v522
  %v671 = vpop.f32.mrb[0].mxu0
  %v672 = vadd.f32 0.0, %v671
  %v673 = vpop.f32.mrb[0].mxu0
  %v674 = vadd.f32 0.0, %v673
  %675 = vdwg.mxu0
  %676 = vmatprep.subr.mxu0 0.0
  %677 = vmatpush1.msra.mxu0 %v532
  %678 = vmatprep.subr.mxu0 0.0
  %679 = vmatpush1.msra.mxu0 0.0
  %680 = vmatprep.subr.mxu0 0.0
  %681 = vmatpush1.msra.mxu0 0.0
  %682 = vmatprep.subr.mxu0 0.0
  %683 = vmatpush1.msra.mxu0 0.0
  %684 = vmatprep.subr.mxu0 0.0
  %685 = vmatpush1.msra.mxu0 0.0
  %686 = vmatprep.subr.mxu0 0.0
  %687 = vmatpush1.msra.mxu0 0.0
  %688 = vmatprep.subr.mxu0 0.0
  %689 = vmatpush1.msra.mxu0 0.0
  %690 = vmatprep.subr.mxu0 0.0
  %691 = vmatpush1.msra.mxu0 0.0
  %692 = vmatprep.subr.mxu0 0.0
  %693 = vmatpush1.msra.mxu0 0.0
  %694 = vmatprep.subr.mxu0 0.0
  %695 = vmatpush1.msra.mxu0 0.0
  %696 = vmatprep.subr.mxu0 0.0
  %697 = vmatpush1.msra.mxu0 0.0
  %698 = vmatprep.subr.mxu0 0.0
  %699 = vmatpush1.msra.mxu0 0.0
  %700 = vmatprep.subr.mxu0 0.0
  %701 = vmatpush1.msra.mxu0 0.0
  %702 = vmatprep.subr.mxu0 0.0
  %703 = vmatpush1.msra.mxu0 0.0
  %704 = vmatprep.subr.mxu0 0.0
  %705 = vmatpush1.msra.mxu0 0.0
  %706 = vmatprep.subr.mxu0 0.0
  %707 = vmatpush1.msra.mxu0 0.0
  %708 = vmatprep.subr.mxu0 0.0
  %709 = vmatpush1.msra.mxu0 0.0
  %710 = vmatprep.subr.mxu0 0.0
  %711 = vmatpush1.msra.mxu0 0.0
  %712 = vmatprep.subr.mxu0 0.0
  %713 = vmatpush1.msra.mxu0 0.0
  %714 = vmatprep.subr.mxu0 0.0
  %715 = vmatpush1.msra.mxu0 0.0
  %716 = vmatprep.subr.mxu0 0.0
  %717 = vmatpush1.msra.mxu0 0.0
  %718 = vmatprep.subr.mxu0 0.0
  %719 = vmatpush1.msra.mxu0 0.0
  %720 = vmatprep.subr.mxu0 0.0
  %721 = vmatpush1.msra.mxu0 0.0
  %722 = vmatprep.subr.mxu0 0.0
  %723 = vmatpush1.msra.mxu0 0.0
  %724 = vmatprep.subr.mxu0 0.0
  %725 = vmatpush1.msra.mxu0 0.0
  %726 = vmatprep.subr.mxu0 0.0
  %727 = vmatpush1.msra.mxu0 0.0
  %728 = vmatprep.subr.mxu0 0.0
  %729 = vmatpush1.msra.mxu0 0.0
  %730 = vmatprep.subr.mxu0 0.0
  %731 = vmatpush1.msra.mxu0 0.0
  %732 = vmatprep.subr.mxu0 0.0
  %733 = vmatpush1.msra.mxu0 0.0
  %734 = vmatprep.subr.mxu0 0.0
  %735 = vmatpush1.msra.mxu0 0.0
  %736 = vmatprep.subr.mxu0 0.0
  %737 = vmatpush1.msra.mxu0 0.0
  %738 = vmatprep.subr.mxu0 0.0
  %739 = vmatpush1.msra.mxu0 0.0
  %740 = vmatprep.mubr.f32.mxu0 0.0
  %741 = vmatmul.mubr.f32.gmra.mrb[0].mxu0 %v522
  %v742 = vpop.f32.mrb[0].mxu0
  %v743 = vadd.f32 0.0, %v742
  %v744 = vpop.f32.mrb[0].mxu0
  %745 = vdwg.mxu0
  %v746 = vadd.f32 %v359, %v601
  %v747 = vadd.f32 %v361, %v603
  %v748 = vadd.f32 %v430, %v672
  %v749 = vadd.f32 %v432, %v674
  %v750 = vadd.f32 %v501, %v743
  %s751 = scalar_lea.vmem %s1, 24
  %v752 = vld [vmem:[%s751] sm:$0xff]
  %753 = vrot.lane.b32.xlu0 %v26, 110
  %v754 = vpop.permute.xlu0 %753
  %755 = vrot.lane.b32.xlu0 %v35, 110
  %v756 = vpop.permute.xlu0 %755
  %757 = vrot.lane.b32.xlu0 %v27, 110
  %v758 = vpop.permute.xlu0 %757
  %759 = vrot.lane.b32.xlu0 %v36, 110
  %v760 = vpop.permute.xlu0 %759
  %761 = vrot.lane.b32.xlu0 %v28, 110
  %v762 = vpop.permute.xlu0 %761
  %vm763 = vcmask 900096
  %v764 = vsel %vm763, %v754, %v756
  %v765 = vsel %vm763, %v756, %v758
  %v766 = vsel %vm763, %v758, %v760
  %v767 = vsel %vm763, %v760, %v762
  %v769 = vsel %vm52, %v752, 0
  %v771 = vsel %vm56, %v764, 0
  %v773 = vsel %vm56, %v765, 0
  %v775 = vsel %vm56, %v766, 0
  %v777 = vsel %vm56, %v767, 0
  %v779 = vsel %vm56, %v762, 0
  %781 = vmatprep.subr.mxu0 %v773
  %782 = vmatpush1.msra.mxu0 %v771
  %783 = vmatprep.subr.mxu0 0.0
  %784 = vmatpush1.msra.mxu0 0.0
  %785 = vmatprep.subr.mxu0 0.0
  %786 = vmatpush1.msra.mxu0 0.0
  %787 = vmatprep.subr.mxu0 0.0
  %788 = vmatpush1.msra.mxu0 0.0
  %789 = vmatprep.subr.mxu0 0.0
  %790 = vmatpush1.msra.mxu0 0.0
  %791 = vmatprep.subr.mxu0 0.0
  %792 = vmatpush1.msra.mxu0 0.0
  %793 = vmatprep.subr.mxu0 0.0
  %794 = vmatpush1.msra.mxu0 0.0
  %795 = vmatprep.subr.mxu0 0.0
  %796 = vmatpush1.msra.mxu0 0.0
  %797 = vmatprep.subr.mxu0 0.0
  %798 = vmatpush1.msra.mxu0 0.0
  %799 = vmatprep.subr.mxu0 0.0
  %800 = vmatpush1.msra.mxu0 0.0
  %801 = vmatprep.subr.mxu0 0.0
  %802 = vmatpush1.msra.mxu0 0.0
  %803 = vmatprep.subr.mxu0 0.0
  %804 = vmatpush1.msra.mxu0 0.0
  %805 = vmatprep.subr.mxu0 0.0
  %806 = vmatpush1.msra.mxu0 0.0
  %807 = vmatprep.subr.mxu0 0.0
  %808 = vmatpush1.msra.mxu0 0.0
  %809 = vmatprep.subr.mxu0 0.0
  %810 = vmatpush1.msra.mxu0 0.0
  %811 = vmatprep.subr.mxu0 0.0
  %812 = vmatpush1.msra.mxu0 0.0
  %813 = vmatprep.subr.mxu0 0.0
  %814 = vmatpush1.msra.mxu0 0.0
  %815 = vmatprep.subr.mxu0 0.0
  %816 = vmatpush1.msra.mxu0 0.0
  %817 = vmatprep.subr.mxu0 0.0
  %818 = vmatpush1.msra.mxu0 0.0
  %819 = vmatprep.subr.mxu0 0.0
  %820 = vmatpush1.msra.mxu0 0.0
  %821 = vmatprep.subr.mxu0 0.0
  %822 = vmatpush1.msra.mxu0 0.0
  %823 = vmatprep.subr.mxu0 0.0
  %824 = vmatpush1.msra.mxu0 0.0
  %825 = vmatprep.subr.mxu0 0.0
  %826 = vmatpush1.msra.mxu0 0.0
  %827 = vmatprep.subr.mxu0 0.0
  %828 = vmatpush1.msra.mxu0 0.0
  %829 = vmatprep.subr.mxu0 0.0
  %830 = vmatpush1.msra.mxu0 0.0
  %831 = vmatprep.subr.mxu0 0.0
  %832 = vmatpush1.msra.mxu0 0.0
  %833 = vmatprep.subr.mxu0 0.0
  %834 = vmatpush1.msra.mxu0 0.0
  %835 = vmatprep.subr.mxu0 0.0
  %836 = vmatpush1.msra.mxu0 0.0
  %837 = vmatprep.subr.mxu0 0.0
  %838 = vmatpush1.msra.mxu0 0.0
  %839 = vmatprep.subr.mxu0 0.0
  %840 = vmatpush1.msra.mxu0 0.0
  %841 = vmatprep.subr.mxu0 0.0
  %842 = vmatpush1.msra.mxu0 0.0
  %843 = vmatprep.subr.mxu0 0.0
  %844 = vmatpush1.msra.mxu0 0.0
  %845 = vmatprep.mubr.f32.mxu0 0.0
  %846 = vmatmul.mubr.f32.gmra.mrb[0].mxu0 %v769
  %v847 = vpop.f32.mrb[0].mxu0
  %v848 = vadd.f32 0.0, %v847
  %v849 = vpop.f32.mrb[0].mxu0
  %v850 = vadd.f32 0.0, %v849
  %851 = vdwg.mxu0
  %852 = vmatprep.subr.mxu0 %v777
  %853 = vmatpush1.msra.mxu0 %v775
  %854 = vmatprep.subr.mxu0 0.0
  %855 = vmatpush1.msra.mxu0 0.0
  %856 = vmatprep.subr.mxu0 0.0
  %857 = vmatpush1.msra.mxu0 0.0
  %858 = vmatprep.subr.mxu0 0.0
  %859 = vmatpush1.msra.mxu0 0.0
  %860 = vmatprep.subr.mxu0 0.0
  %861 = vmatpush1.msra.mxu0 0.0
  %862 = vmatprep.subr.mxu0 0.0
  %863 = vmatpush1.msra.mxu0 0.0
  %864 = vmatprep.subr.mxu0 0.0
  %865 = vmatpush1.msra.mxu0 0.0
  %866 = vmatprep.subr.mxu0 0.0
  %867 = vmatpush1.msra.mxu0 0.0
  %868 = vmatprep.subr.mxu0 0.0
  %869 = vmatpush1.msra.mxu0 0.0
  %870 = vmatprep.subr.mxu0 0.0
  %871 = vmatpush1.msra.mxu0 0.0
  %872 = vmatprep.subr.mxu0 0.0
  %873 = vmatpush1.msra.mxu0 0.0
  %874 = vmatprep.subr.mxu0 0.0
  %875 = vmatpush1.msra.mxu0 0.0
  %876 = vmatprep.subr.mxu0 0.0
  %877 = vmatpush1.msra.mxu0 0.0
  %878 = vmatprep.subr.mxu0 0.0
  %879 = vmatpush1.msra.mxu0 0.0
  %880 = vmatprep.subr.mxu0 0.0
  %881 = vmatpush1.msra.mxu0 0.0
  %882 = vmatprep.subr.mxu0 0.0
  %883 = vmatpush1.msra.mxu0 0.0
  %884 = vmatprep.subr.mxu0 0.0
  %885 = vmatpush1.msra.mxu0 0.0
  %886 = vmatprep.subr.mxu0 0.0
  %887 = vmatpush1.msra.mxu0 0.0
  %888 = vmatprep.subr.mxu0 0.0
  %889 = vmatpush1.msra.mxu0 0.0
  %890 = vmatprep.subr.mxu0 0.0
  %891 = vmatpush1.msra.mxu0 0.0
  %892 = vmatprep.subr.mxu0 0.0
  %893 = vmatpush1.msra.mxu0 0.0
  %894 = vmatprep.subr.mxu0 0.0
  %895 = vmatpush1.msra.mxu0 0.0
  %896 = vmatprep.subr.mxu0 0.0
  %897 = vmatpush1.msra.mxu0 0.0
  %898 = vmatprep.subr.mxu0 0.0
  %899 = vmatpush1.msra.mxu0 0.0
  %900 = vmatprep.subr.mxu0 0.0
  %901 = vmatpush1.msra.mxu0 0.0
  %902 = vmatprep.subr.mxu0 0.0
  %903 = vmatpush1.msra.mxu0 0.0
  %904 = vmatprep.subr.mxu0 0.0
  %905 = vmatpush1.msra.mxu0 0.0
  %906 = vmatprep.subr.mxu0 0.0
  %907 = vmatpush1.msra.mxu0 0.0
  %908 = vmatprep.subr.mxu0 0.0
  %909 = vmatpush1.msra.mxu0 0.0
  %910 = vmatprep.subr.mxu0 0.0
  %911 = vmatpush1.msra.mxu0 0.0
  %912 = vmatprep.subr.mxu0 0.0
  %913 = vmatpush1.msra.mxu0 0.0
  %914 = vmatprep.subr.mxu0 0.0
  %915 = vmatpush1.msra.mxu0 0.0
  %916 = vmatprep.mubr.f32.mxu0 0.0
  %917 = vmatmul.mubr.f32.gmra.mrb[0].mxu0 %v769
  %v918 = vpop.f32.mrb[0].mxu0
  %v919 = vadd.f32 0.0, %v918
  %v920 = vpop.f32.mrb[0].mxu0
  %v921 = vadd.f32 0.0, %v920
  %922 = vdwg.mxu0
  %923 = vmatprep.subr.mxu0 0.0
  %924 = vmatpush1.msra.mxu0 %v779
  %925 = vmatprep.subr.mxu0 0.0
  %926 = vmatpush1.msra.mxu0 0.0
  %927 = vmatprep.subr.mxu0 0.0
  %928 = vmatpush1.msra.mxu0 0.0
  %929 = vmatprep.subr.mxu0 0.0
  %930 = vmatpush1.msra.mxu0 0.0
  %931 = vmatprep.subr.mxu0 0.0
  %932 = vmatpush1.msra.mxu0 0.0
  %933 = vmatprep.subr.mxu0 0.0
  %934 = vmatpush1.msra.mxu0 0.0
  %935 = vmatprep.subr.mxu0 0.0
  %936 = vmatpush1.msra.mxu0 0.0
  %937 = vmatprep.subr.mxu0 0.0
  %938 = vmatpush1.msra.mxu0 0.0
  %939 = vmatprep.subr.mxu0 0.0
  %940 = vmatpush1.msra.mxu0 0.0
  %941 = vmatprep.subr.mxu0 0.0
  %942 = vmatpush1.msra.mxu0 0.0
  %943 = vmatprep.subr.mxu0 0.0
  %944 = vmatpush1.msra.mxu0 0.0
  %945 = vmatprep.subr.mxu0 0.0
  %946 = vmatpush1.msra.mxu0 0.0
  %947 = vmatprep.subr.mxu0 0.0
  %948 = vmatpush1.msra.mxu0 0.0
  %949 = vmatprep.subr.mxu0 0.0
  %950 = vmatpush1.msra.mxu0 0.0
  %951 = vmatprep.subr.mxu0 0.0
  %952 = vmatpush1.msra.mxu0 0.0
  %953 = vmatprep.subr.mxu0 0.0
  %954 = vmatpush1.msra.mxu0 0.0
  %955 = vmatprep.subr.mxu0 0.0
  %956 = vmatpush1.msra.mxu0 0.0
  %957 = vmatprep.subr.mxu0 0.0
  %958 = vmatpush1.msra.mxu0 0.0
  %959 = vmatprep.subr.mxu0 0.0
  %960 = vmatpush1.msra.mxu0 0.0
  %961 = vmatprep.subr.mxu0 0.0
  %962 = vmatpush1.msra.mxu0 0.0
  %963 = vmatprep.subr.mxu0 0.0
  %964 = vmatpush1.msra.mxu0 0.0
  %965 = vmatprep.subr.mxu0 0.0
  %966 = vmatpush1.msra.mxu0 0.0
  %967 = vmatprep.subr.mxu0 0.0
  %968 = vmatpush1.msra.mxu0 0.0
  %969 = vmatprep.subr.mxu0 0.0
  %970 = vmatpush1.msra.mxu0 0.0
  %971 = vmatprep.subr.mxu0 0.0
  %972 = vmatpush1.msra.mxu0 0.0
  %973 = vmatprep.subr.mxu0 0.0
  %974 = vmatpush1.msra.mxu0 0.0
  %975 = vmatprep.subr.mxu0 0.0
  %976 = vmatpush1.msra.mxu0 0.0
  %977 = vmatprep.subr.mxu0 0.0
  %978 = vmatpush1.msra.mxu0 0.0
  %979 = vmatprep.subr.mxu0 0.0
  %980 = vmatpush1.msra.mxu0 0.0
  %981 = vmatprep.subr.mxu0 0.0
  %982 = vmatpush1.msra.mxu0 0.0
  %983 = vmatprep.subr.mxu0 0.0
  %984 = vmatpush1.msra.mxu0 0.0
  %985 = vmatprep.subr.mxu0 0.0
  %986 = vmatpush1.msra.mxu0 0.0
  %987 = vmatprep.mubr.f32.mxu0 0.0
  %988 = vmatmul.mubr.f32.gmra.mrb[0].mxu0 %v769
  %v989 = vpop.f32.mrb[0].mxu0
  %v990 = vadd.f32 0.0, %v989
  %v991 = vpop.f32.mrb[0].mxu0
  %992 = vdwg.mxu0
  %v993 = vadd.f32 %v746, %v848
  %v994 = vadd.f32 %v747, %v850
  %v995 = vadd.f32 %v748, %v919
  %v996 = vadd.f32 %v749, %v921
  %v997 = vadd.f32 %v750, %v990
  %s998 = scalar_lea.vmem %s1, 32
  %v999 = vld [vmem:[%s998] sm:$0xff]
  %1000 = vrot.lane.b32.xlu0 %v26, 109
  %v1001 = vpop.permute.xlu0 %1000
  %1002 = vrot.lane.b32.xlu0 %v35, 109
  %v1003 = vpop.permute.xlu0 %1002
  %1004 = vrot.lane.b32.xlu0 %v27, 109
  %v1005 = vpop.permute.xlu0 %1004
  %1006 = vrot.lane.b32.xlu0 %v36, 109
  %v1007 = vpop.permute.xlu0 %1006
  %1008 = vrot.lane.b32.xlu0 %v28, 109
  %v1009 = vpop.permute.xlu0 %1008
  %vm1010 = vcmask 891904
  %v1011 = vsel %vm1010, %v1001, %v1003
  %v1012 = vsel %vm1010, %v1003, %v1005
  %v1013 = vsel %vm1010, %v1005, %v1007
  %v1014 = vsel %vm1010, %v1007, %v1009
  %v1016 = vsel %vm52, %v999, 0
  %v1018 = vsel %vm56, %v1011, 0
  %v1020 = vsel %vm56, %v1012, 0
  %v1022 = vsel %vm56, %v1013, 0
  %v1024 = vsel %vm56, %v1014, 0
  %v1026 = vsel %vm56, %v1009, 0
  %1028 = vmatprep.subr.mxu0 %v1020
  %1029 = vmatpush1.msra.mxu0 %v1018
  %1030 = vmatprep.subr.mxu0 0.0
  %1031 = vmatpush1.msra.mxu0 0.0
  %1032 = vmatprep.subr.mxu0 0.0
  %1033 = vmatpush1.msra.mxu0 0.0
  %1034 = vmatprep.subr.mxu0 0.0
  %1035 = vmatpush1.msra.mxu0 0.0
  %1036 = vmatprep.subr.mxu0 0.0
  %1037 = vmatpush1.msra.mxu0 0.0
  %1038 = vmatprep.subr.mxu0 0.0
  %1039 = vmatpush1.msra.mxu0 0.0
  %1040 = vmatprep.subr.mxu0 0.0
  %1041 = vmatpush1.msra.mxu0 0.0
  %1042 = vmatprep.subr.mxu0 0.0
  %1043 = vmatpush1.msra.mxu0 0.0
  %1044 = vmatprep.subr.mxu0 0.0
  %1045 = vmatpush1.msra.mxu0 0.0
  %1046 = vmatprep.subr.mxu0 0.0
  %1047 = vmatpush1.msra.mxu0 0.0
  %1048 = vmatprep.subr.mxu0 0.0
  %1049 = vmatpush1.msra.mxu0 0.0
  %1050 = vmatprep.subr.mxu0 0.0
  %1051 = vmatpush1.msra.mxu0 0.0
  %1052 = vmatprep.subr.mxu0 0.0
  %1053 = vmatpush1.msra.mxu0 0.0
  %1054 = vmatprep.subr.mxu0 0.0
  %1055 = vmatpush1.msra.mxu0 0.0
  %1056 = vmatprep.subr.mxu0 0.0
  %1057 = vmatpush1.msra.mxu0 0.0
  %1058 = vmatprep.subr.mxu0 0.0
  %1059 = vmatpush1.msra.mxu0 0.0
  %1060 = vmatprep.subr.mxu0 0.0
  %1061 = vmatpush1.msra.mxu0 0.0
  %1062 = vmatprep.subr.mxu0 0.0
  %1063 = vmatpush1.msra.mxu0 0.0
  %1064 = vmatprep.subr.mxu0 0.0
  %1065 = vmatpush1.msra.mxu0 0.0
  %1066 = vmatprep.subr.mxu0 0.0
  %1067 = vmatpush1.msra.mxu0 0.0
  %1068 = vmatprep.subr.mxu0 0.0
  %1069 = vmatpush1.msra.mxu0 0.0
  %1070 = vmatprep.subr.mxu0 0.0
  %1071 = vmatpush1.msra.mxu0 0.0
  %1072 = vmatprep.subr.mxu0 0.0
  %1073 = vmatpush1.msra.mxu0 0.0
  %1074 = vmatprep.subr.mxu0 0.0
  %1075 = vmatpush1.msra.mxu0 0.0
  %1076 = vmatprep.subr.mxu0 0.0
  %1077 = vmatpush1.msra.mxu0 0.0
  %1078 = vmatprep.subr.mxu0 0.0
  %1079 = vmatpush1.msra.mxu0 0.0
  %1080 = vmatprep.subr.mxu0 0.0
  %1081 = vmatpush1.msra.mxu0 0.0
  %1082 = vmatprep.subr.mxu0 0.0
  %1083 = vmatpush1.msra.mxu0 0.0
  %1084 = vmatprep.subr.mxu0 0.0
  %1085 = vmatpush1.msra.mxu0 0.0
  %1086 = vmatprep.subr.mxu0 0.0
  %1087 = vmatpush1.msra.mxu0 0.0
  %1088 = vmatprep.subr.mxu0 0.0
  %1089 = vmatpush1.msra.mxu0 0.0
  %1090 = vmatprep.subr.mxu0 0.0
  %1091 = vmatpush1.msra.mxu0 0.0
  %1092 = vmatprep.mubr.f32.mxu0 0.0
  %1093 = vmatmul.mubr.f32.gmra.mrb[0].mxu0 %v1016
  %v1094 = vpop.f32.mrb[0].mxu0
  %v1095 = vadd.f32 0.0, %v1094
  %v1096 = vpop.f32.mrb[0].mxu0
  %v1097 = vadd.f32 0.0, %v1096
  %1098 = vdwg.mxu0
  %1099 = vmatprep.subr.mxu0 %v1024
  %1100 = vmatpush1.msra.mxu0 %v1022
  %1101 = vmatprep.subr.mxu0 0.0
  %1102 = vmatpush1.msra.mxu0 0.0
  %1103 = vmatprep.subr.mxu0 0.0
  %1104 = vmatpush1.msra.mxu0 0.0
  %1105 = vmatprep.subr.mxu0 0.0
  %1106 = vmatpush1.msra.mxu0 0.0
  %1107 = vmatprep.subr.mxu0 0.0
  %1108 = vmatpush1.msra.mxu0 0.0
  %1109 = vmatprep.subr.mxu0 0.0
  %1110 = vmatpush1.msra.mxu0 0.0
  %1111 = vmatprep.subr.mxu0 0.0
  %1112 = vmatpush1.msra.mxu0 0.0
  %1113 = vmatprep.subr.mxu0 0.0
  %1114 = vmatpush1.msra.mxu0 0.0
  %1115 = vmatprep.subr.mxu0 0.0
  %1116 = vmatpush1.msra.mxu0 0.0
  %1117 = vmatprep.subr.mxu0 0.0
  %1118 = vmatpush1.msra.mxu0 0.0
  %1119 = vmatprep.subr.mxu0 0.0
  %1120 = vmatpush1.msra.mxu0 0.0
  %1121 = vmatprep.subr.mxu0 0.0
  %1122 = vmatpush1.msra.mxu0 0.0
  %1123 = vmatprep.subr.mxu0 0.0
  %1124 = vmatpush1.msra.mxu0 0.0
  %1125 = vmatprep.subr.mxu0 0.0
  %1126 = vmatpush1.msra.mxu0 0.0
  %1127 = vmatprep.subr.mxu0 0.0
  %1128 = vmatpush1.msra.mxu0 0.0
  %1129 = vmatprep.subr.mxu0 0.0
  %1130 = vmatpush1.msra.mxu0 0.0
  %1131 = vmatprep.subr.mxu0 0.0
  %1132 = vmatpush1.msra.mxu0 0.0
  %1133 = vmatprep.subr.mxu0 0.0
  %1134 = vmatpush1.msra.mxu0 0.0
  %1135 = vmatprep.subr.mxu0 0.0
  %1136 = vmatpush1.msra.mxu0 0.0
  %1137 = vmatprep.subr.mxu0 0.0
  %1138 = vmatpush1.msra.mxu0 0.0
  %1139 = vmatprep.subr.mxu0 0.0
  %1140 = vmatpush1.msra.mxu0 0.0
  %1141 = vmatprep.subr.mxu0 0.0
  %1142 = vmatpush1.msra.mxu0 0.0
  %1143 = vmatprep.subr.mxu0 0.0
  %1144 = vmatpush1.msra.mxu0 0.0
  %1145 = vmatprep.subr.mxu0 0.0
  %1146 = vmatpush1.msra.mxu0 0.0
  %1147 = vmatprep.subr.mxu0 0.0
  %1148 = vmatpush1.msra.mxu0 0.0
  %1149 = vmatprep.subr.mxu0 0.0
  %1150 = vmatpush1.msra.mxu0 0.0
  %1151 = vmatprep.subr.mxu0 0.0
  %1152 = vmatpush1.msra.mxu0 0.0
  %1153 = vmatprep.subr.mxu0 0.0
  %1154 = vmatpush1.msra.mxu0 0.0
  %1155 = vmatprep.subr.mxu0 0.0
  %1156 = vmatpush1.msra.mxu0 0.0
  %1157 = vmatprep.subr.mxu0 0.0
  %1158 = vmatpush1.msra.mxu0 0.0
  %1159 = vmatprep.subr.mxu0 0.0
  %1160 = vmatpush1.msra.mxu0 0.0
  %1161 = vmatprep.subr.mxu0 0.0
  %1162 = vmatpush1.msra.mxu0 0.0
  %1163 = vmatprep.mubr.f32.mxu0 0.0
  %1164 = vmatmul.mubr.f32.gmra.mrb[0].mxu0 %v1016
  %v1165 = vpop.f32.mrb[0].mxu0
  %v1166 = vadd.f32 0.0, %v1165
  %v1167 = vpop.f32.mrb[0].mxu0
  %v1168 = vadd.f32 0.0, %v1167
  %1169 = vdwg.mxu0
  %1170 = vmatprep.subr.mxu0 0.0
  %1171 = vmatpush1.msra.mxu0 %v1026
  %1172 = vmatprep.subr.mxu0 0.0
  %1173 = vmatpush1.msra.mxu0 0.0
  %1174 = vmatprep.subr.mxu0 0.0
  %1175 = vmatpush1.msra.mxu0 0.0
  %1176 = vmatprep.subr.mxu0 0.0
  %1177 = vmatpush1.msra.mxu0 0.0
  %1178 = vmatprep.subr.mxu0 0.0
  %1179 = vmatpush1.msra.mxu0 0.0
  %1180 = vmatprep.subr.mxu0 0.0
  %1181 = vmatpush1.msra.mxu0 0.0
  %1182 = vmatprep.subr.mxu0 0.0
  %1183 = vmatpush1.msra.mxu0 0.0
  %1184 = vmatprep.subr.mxu0 0.0
  %1185 = vmatpush1.msra.mxu0 0.0
  %1186 = vmatprep.subr.mxu0 0.0
  %1187 = vmatpush1.msra.mxu0 0.0
  %1188 = vmatprep.subr.mxu0 0.0
  %1189 = vmatpush1.msra.mxu0 0.0
  %1190 = vmatprep.subr.mxu0 0.0
  %1191 = vmatpush1.msra.mxu0 0.0
  %1192 = vmatprep.subr.mxu0 0.0
  %1193 = vmatpush1.msra.mxu0 0.0
  %1194 = vmatprep.subr.mxu0 0.0
  %1195 = vmatpush1.msra.mxu0 0.0
  %1196 = vmatprep.subr.mxu0 0.0
  %1197 = vmatpush1.msra.mxu0 0.0
  %1198 = vmatprep.subr.mxu0 0.0
  %1199 = vmatpush1.msra.mxu0 0.0
  %1200 = vmatprep.subr.mxu0 0.0
  %1201 = vmatpush1.msra.mxu0 0.0
  %1202 = vmatprep.subr.mxu0 0.0
  %1203 = vmatpush1.msra.mxu0 0.0
  %1204 = vmatprep.subr.mxu0 0.0
  %1205 = vmatpush1.msra.mxu0 0.0
  %1206 = vmatprep.subr.mxu0 0.0
  %1207 = vmatpush1.msra.mxu0 0.0
  %1208 = vmatprep.subr.mxu0 0.0
  %1209 = vmatpush1.msra.mxu0 0.0
  %1210 = vmatprep.subr.mxu0 0.0
  %1211 = vmatpush1.msra.mxu0 0.0
  %1212 = vmatprep.subr.mxu0 0.0
  %1213 = vmatpush1.msra.mxu0 0.0
  %1214 = vmatprep.subr.mxu0 0.0
  %1215 = vmatpush1.msra.mxu0 0.0
  %1216 = vmatprep.subr.mxu0 0.0
  %1217 = vmatpush1.msra.mxu0 0.0
  %1218 = vmatprep.subr.mxu0 0.0
  %1219 = vmatpush1.msra.mxu0 0.0
  %1220 = vmatprep.subr.mxu0 0.0
  %1221 = vmatpush1.msra.mxu0 0.0
  %1222 = vmatprep.subr.mxu0 0.0
  %1223 = vmatpush1.msra.mxu0 0.0
  %1224 = vmatprep.subr.mxu0 0.0
  %1225 = vmatpush1.msra.mxu0 0.0
  %1226 = vmatprep.subr.mxu0 0.0
  %1227 = vmatpush1.msra.mxu0 0.0
  %1228 = vmatprep.subr.mxu0 0.0
  %1229 = vmatpush1.msra.mxu0 0.0
  %1230 = vmatprep.subr.mxu0 0.0
  %1231 = vmatpush1.msra.mxu0 0.0
  %1232 = vmatprep.subr.mxu0 0.0
  %1233 = vmatpush1.msra.mxu0 0.0
  %1234 = vmatprep.mubr.f32.mxu0 0.0
  %1235 = vmatmul.mubr.f32.gmra.mrb[0].mxu0 %v1016
  %v1236 = vpop.f32.mrb[0].mxu0
  %v1237 = vadd.f32 0.0, %v1236
  %v1238 = vpop.f32.mrb[0].mxu0
  %1239 = vdwg.mxu0
  %v1240 = vadd.f32 %v993, %v1095
  %v1241 = vadd.f32 %v994, %v1097
  %v1242 = vadd.f32 %v995, %v1166
  %v1243 = vadd.f32 %v996, %v1168
  %v1244 = vadd.f32 %v997, %v1237
  %s1245 = scalar_lea.vmem %s1, 40
  %v1246 = vld [vmem:[%s1245] sm:$0xff]
  %1247 = vrot.lane.b32.xlu0 %v26, 108
  %v1248 = vpop.permute.xlu0 %1247
  %1249 = vrot.lane.b32.xlu0 %v35, 108
  %v1250 = vpop.permute.xlu0 %1249
  %1251 = vrot.lane.b32.xlu0 %v27, 108
  %v1252 = vpop.permute.xlu0 %1251
  %1253 = vrot.lane.b32.xlu0 %v36, 108
  %v1254 = vpop.permute.xlu0 %1253
  %1255 = vrot.lane.b32.xlu0 %v28, 108
  %v1256 = vpop.permute.xlu0 %1255
  %vm1257 = vcmask 883712
  %v1258 = vsel %vm1257, %v1248, %v1250
  %v1259 = vsel %vm1257, %v1250, %v1252
  %v1260 = vsel %vm1257, %v1252, %v1254
  %v1261 = vsel %vm1257, %v1254, %v1256
  %v1263 = vsel %vm52, %v1246, 0
  %v1265 = vsel %vm56, %v1258, 0
  %v1267 = vsel %vm56, %v1259, 0
  %v1269 = vsel %vm56, %v1260, 0
  %v1271 = vsel %vm56, %v1261, 0
  %v1273 = vsel %vm56, %v1256, 0
  %1275 = vmatprep.subr.mxu0 %v1267
  %1276 = vmatpush1.msra.mxu0 %v1265
  %1277 = vmatprep.subr.mxu0 0.0
  %1278 = vmatpush1.msra.mxu0 0.0
  %1279 = vmatprep.subr.mxu0 0.0
  %1280 = vmatpush1.msra.mxu0 0.0
  %1281 = vmatprep.subr.mxu0 0.0
  %1282 = vmatpush1.msra.mxu0 0.0
  %1283 = vmatprep.subr.mxu0 0.0
  %1284 = vmatpush1.msra.mxu0 0.0
  %1285 = vmatprep.subr.mxu0 0.0
  %1286 = vmatpush1.msra.mxu0 0.0
  %1287 = vmatprep.subr.mxu0 0.0
  %1288 = vmatpush1.msra.mxu0 0.0
  %1289 = vmatprep.subr.mxu0 0.0
  %1290 = vmatpush1.msra.mxu0 0.0
  %1291 = vmatprep.subr.mxu0 0.0
  %1292 = vmatpush1.msra.mxu0 0.0
  %1293 = vmatprep.subr.mxu0 0.0
  %1294 = vmatpush1.msra.mxu0 0.0
  %1295 = vmatprep.subr.mxu0 0.0
  %1296 = vmatpush1.msra.mxu0 0.0
  %1297 = vmatprep.subr.mxu0 0.0
  %1298 = vmatpush1.msra.mxu0 0.0
  %1299 = vmatprep.subr.mxu0 0.0
  %1300 = vmatpush1.msra.mxu0 0.0
  %1301 = vmatprep.subr.mxu0 0.0
  %1302 = vmatpush1.msra.mxu0 0.0
  %1303 = vmatprep.subr.mxu0 0.0
  %1304 = vmatpush1.msra.mxu0 0.0
  %1305 = vmatprep.subr.mxu0 0.0
  %1306 = vmatpush1.msra.mxu0 0.0
  %1307 = vmatprep.subr.mxu0 0.0
  %1308 = vmatpush1.msra.mxu0 0.0
  %1309 = vmatprep.subr.mxu0 0.0
  %1310 = vmatpush1.msra.mxu0 0.0
  %1311 = vmatprep.subr.mxu0 0.0
  %1312 = vmatpush1.msra.mxu0 0.0
  %1313 = vmatprep.subr.mxu0 0.0
  %1314 = vmatpush1.msra.mxu0 0.0
  %1315 = vmatprep.subr.mxu0 0.0
  %1316 = vmatpush1.msra.mxu0 0.0
  %1317 = vmatprep.subr.mxu0 0.0
  %1318 = vmatpush1.msra.mxu0 0.0
  %1319 = vmatprep.subr.mxu0 0.0
  %1320 = vmatpush1.msra.mxu0 0.0
  %1321 = vmatprep.subr.mxu0 0.0
  %1322 = vmatpush1.msra.mxu0 0.0
  %1323 = vmatprep.subr.mxu0 0.0
  %1324 = vmatpush1.msra.mxu0 0.0
  %1325 = vmatprep.subr.mxu0 0.0
  %1326 = vmatpush1.msra.mxu0 0.0
  %1327 = vmatprep.subr.mxu0 0.0
  %1328 = vmatpush1.msra.mxu0 0.0
  %1329 = vmatprep.subr.mxu0 0.0
  %1330 = vmatpush1.msra.mxu0 0.0
  %1331 = vmatprep.subr.mxu0 0.0
  %1332 = vmatpush1.msra.mxu0 0.0
  %1333 = vmatprep.subr.mxu0 0.0
  %1334 = vmatpush1.msra.mxu0 0.0
  %1335 = vmatprep.subr.mxu0 0.0
  %1336 = vmatpush1.msra.mxu0 0.0
  %1337 = vmatprep.subr.mxu0 0.0
  %1338 = vmatpush1.msra.mxu0 0.0
  %1339 = vmatprep.mubr.f32.mxu0 0.0
  %1340 = vmatmul.mubr.f32.gmra.mrb[0].mxu0 %v1263
  %v1341 = vpop.f32.mrb[0].mxu0
  %v1342 = vadd.f32 0.0, %v1341
  %v1343 = vpop.f32.mrb[0].mxu0
  %v1344 = vadd.f32 0.0, %v1343
  %1345 = vdwg.mxu0
  %1346 = vmatprep.subr.mxu0 %v1271
  %1347 = vmatpush1.msra.mxu0 %v1269
  %1348 = vmatprep.subr.mxu0 0.0
  %1349 = vmatpush1.msra.mxu0 0.0
  %1350 = vmatprep.subr.mxu0 0.0
  %1351 = vmatpush1.msra.mxu0 0.0
  %1352 = vmatprep.subr.mxu0 0.0
  %1353 = vmatpush1.msra.mxu0 0.0
  %1354 = vmatprep.subr.mxu0 0.0
  %1355 = vmatpush1.msra.mxu0 0.0
  %1356 = vmatprep.subr.mxu0 0.0
  %1357 = vmatpush1.msra.mxu0 0.0
  %1358 = vmatprep.subr.mxu0 0.0
  %1359 = vmatpush1.msra.mxu0 0.0
  %1360 = vmatprep.subr.mxu0 0.0
  %1361 = vmatpush1.msra.mxu0 0.0
  %1362 = vmatprep.subr.mxu0 0.0
  %1363 = vmatpush1.msra.mxu0 0.0
  %1364 = vmatprep.subr.mxu0 0.0
  %1365 = vmatpush1.msra.mxu0 0.0
  %1366 = vmatprep.subr.mxu0 0.0
  %1367 = vmatpush1.msra.mxu0 0.0
  %1368 = vmatprep.subr.mxu0 0.0
  %1369 = vmatpush1.msra.mxu0 0.0
  %1370 = vmatprep.subr.mxu0 0.0
  %1371 = vmatpush1.msra.mxu0 0.0
  %1372 = vmatprep.subr.mxu0 0.0
  %1373 = vmatpush1.msra.mxu0 0.0
  %1374 = vmatprep.subr.mxu0 0.0
  %1375 = vmatpush1.msra.mxu0 0.0
  %1376 = vmatprep.subr.mxu0 0.0
  %1377 = vmatpush1.msra.mxu0 0.0
  %1378 = vmatprep.subr.mxu0 0.0
  %1379 = vmatpush1.msra.mxu0 0.0
  %1380 = vmatprep.subr.mxu0 0.0
  %1381 = vmatpush1.msra.mxu0 0.0
  %1382 = vmatprep.subr.mxu0 0.0
  %1383 = vmatpush1.msra.mxu0 0.0
  %1384 = vmatprep.subr.mxu0 0.0
  %1385 = vmatpush1.msra.mxu0 0.0
  %1386 = vmatprep.subr.mxu0 0.0
  %1387 = vmatpush1.msra.mxu0 0.0
  %1388 = vmatprep.subr.mxu0 0.0
  %1389 = vmatpush1.msra.mxu0 0.0
  %1390 = vmatprep.subr.mxu0 0.0
  %1391 = vmatpush1.msra.mxu0 0.0
  %1392 = vmatprep.subr.mxu0 0.0
  %1393 = vmatpush1.msra.mxu0 0.0
  %1394 = vmatprep.subr.mxu0 0.0
  %1395 = vmatpush1.msra.mxu0 0.0
  %1396 = vmatprep.subr.mxu0 0.0
  %1397 = vmatpush1.msra.mxu0 0.0
  %1398 = vmatprep.subr.mxu0 0.0
  %1399 = vmatpush1.msra.mxu0 0.0
  %1400 = vmatprep.subr.mxu0 0.0
  %1401 = vmatpush1.msra.mxu0 0.0
  %1402 = vmatprep.subr.mxu0 0.0
  %1403 = vmatpush1.msra.mxu0 0.0
  %1404 = vmatprep.subr.mxu0 0.0
  %1405 = vmatpush1.msra.mxu0 0.0
  %1406 = vmatprep.subr.mxu0 0.0
  %1407 = vmatpush1.msra.mxu0 0.0
  %1408 = vmatprep.subr.mxu0 0.0
  %1409 = vmatpush1.msra.mxu0 0.0
  %1410 = vmatprep.mubr.f32.mxu0 0.0
  %1411 = vmatmul.mubr.f32.gmra.mrb[0].mxu0 %v1263
  %v1412 = vpop.f32.mrb[0].mxu0
  %v1413 = vadd.f32 0.0, %v1412
  %v1414 = vpop.f32.mrb[0].mxu0
  %v1415 = vadd.f32 0.0, %v1414
  %1416 = vdwg.mxu0
  %1417 = vmatprep.subr.mxu0 0.0
  %1418 = vmatpush1.msra.mxu0 %v1273
  %1419 = vmatprep.subr.mxu0 0.0
  %1420 = vmatpush1.msra.mxu0 0.0
  %1421 = vmatprep.subr.mxu0 0.0
  %1422 = vmatpush1.msra.mxu0 0.0
  %1423 = vmatprep.subr.mxu0 0.0
  %1424 = vmatpush1.msra.mxu0 0.0
  %1425 = vmatprep.subr.mxu0 0.0
  %1426 = vmatpush1.msra.mxu0 0.0
  %1427 = vmatprep.subr.mxu0 0.0
  %1428 = vmatpush1.msra.mxu0 0.0
  %1429 = vmatprep.subr.mxu0 0.0
  %1430 = vmatpush1.msra.mxu0 0.0
  %1431 = vmatprep.subr.mxu0 0.0
  %1432 = vmatpush1.msra.mxu0 0.0
  %1433 = vmatprep.subr.mxu0 0.0
  %1434 = vmatpush1.msra.mxu0 0.0
  %1435 = vmatprep.subr.mxu0 0.0
  %1436 = vmatpush1.msra.mxu0 0.0
  %1437 = vmatprep.subr.mxu0 0.0
  %1438 = vmatpush1.msra.mxu0 0.0
  %1439 = vmatprep.subr.mxu0 0.0
  %1440 = vmatpush1.msra.mxu0 0.0
  %1441 = vmatprep.subr.mxu0 0.0
  %1442 = vmatpush1.msra.mxu0 0.0
  %1443 = vmatprep.subr.mxu0 0.0
  %1444 = vmatpush1.msra.mxu0 0.0
  %1445 = vmatprep.subr.mxu0 0.0
  %1446 = vmatpush1.msra.mxu0 0.0
  %1447 = vmatprep.subr.mxu0 0.0
  %1448 = vmatpush1.msra.mxu0 0.0
  %1449 = vmatprep.subr.mxu0 0.0
  %1450 = vmatpush1.msra.mxu0 0.0
  %1451 = vmatprep.subr.mxu0 0.0
  %1452 = vmatpush1.msra.mxu0 0.0
  %1453 = vmatprep.subr.mxu0 0.0
  %1454 = vmatpush1.msra.mxu0 0.0
  %1455 = vmatprep.subr.mxu0 0.0
  %1456 = vmatpush1.msra.mxu0 0.0
  %1457 = vmatprep.subr.mxu0 0.0
  %1458 = vmatpush1.msra.mxu0 0.0
  %1459 = vmatprep.subr.mxu0 0.0
  %1460 = vmatpush1.msra.mxu0 0.0
  %1461 = vmatprep.subr.mxu0 0.0
  %1462 = vmatpush1.msra.mxu0 0.0
  %1463 = vmatprep.subr.mxu0 0.0
  %1464 = vmatpush1.msra.mxu0 0.0
  %1465 = vmatprep.subr.mxu0 0.0
  %1466 = vmatpush1.msra.mxu0 0.0
  %1467 = vmatprep.subr.mxu0 0.0
  %1468 = vmatpush1.msra.mxu0 0.0
  %1469 = vmatprep.subr.mxu0 0.0
  %1470 = vmatpush1.msra.mxu0 0.0
  %1471 = vmatprep.subr.mxu0 0.0
  %1472 = vmatpush1.msra.mxu0 0.0
  %1473 = vmatprep.subr.mxu0 0.0
  %1474 = vmatpush1.msra.mxu0 0.0
  %1475 = vmatprep.subr.mxu0 0.0
  %1476 = vmatpush1.msra.mxu0 0.0
  %1477 = vmatprep.subr.mxu0 0.0
  %1478 = vmatpush1.msra.mxu0 0.0
  %1479 = vmatprep.subr.mxu0 0.0
  %1480 = vmatpush1.msra.mxu0 0.0
  %1481 = vmatprep.mubr.f32.mxu0 0.0
  %1482 = vmatmul.mubr.f32.gmra.mrb[0].mxu0 %v1263
  %v1483 = vpop.f32.mrb[0].mxu0
  %v1484 = vadd.f32 0.0, %v1483
  %v1485 = vpop.f32.mrb[0].mxu0
  %1486 = vdwg.mxu0
  %v1487 = vadd.f32 %v1240, %v1342
  %v1488 = vadd.f32 %v1241, %v1344
  %v1489 = vadd.f32 %v1242, %v1413
  %v1490 = vadd.f32 %v1243, %v1415
  %v1491 = vadd.f32 %v1244, %v1484
  %s1492 = scalar_lea.vmem %s1, 48
  %v1493 = vld [vmem:[%s1492] sm:$0xff]
  %v1494 = vcombine.high %v28, %v28
  %1495 = vrot.lane.b32.xlu0 %v26, 92
  %v1496 = vpop.permute.xlu0 %1495
  %1497 = vrot.lane.b32.xlu0 %v35, 92
  %v1498 = vpop.permute.xlu0 %1497
  %1499 = vrot.lane.b32.xlu0 %v27, 92
  %v1500 = vpop.permute.xlu0 %1499
  %1501 = vrot.lane.b32.xlu0 %v36, 92
  %v1502 = vpop.permute.xlu0 %1501
  %1503 = vrot.lane.b32.xlu0 %v28, 92
  %v1504 = vpop.permute.xlu0 %1503
  %1505 = vrot.lane.b32.xlu0 %v1494, 92
  %v1506 = vpop.permute.xlu0 %1505
  %vm1507 = vcmask 752640
  %v1508 = vsel %vm1507, %v1496, %v1498
  %v1509 = vsel %vm1507, %v1498, %v1500
  %v1510 = vsel %vm1507, %v1500, %v1502
  %v1511 = vsel %vm1507, %v1502, %v1504
  %v1512 = vsel %vm1507, %v1504, %v1506
  %v1514 = vsel %vm52, %v1493, 0
  %v1516 = vsel %vm56, %v1508, 0
  %v1518 = vsel %vm56, %v1509, 0
  %v1520 = vsel %vm56, %v1510, 0
  %v1522 = vsel %vm56, %v1511, 0
  %v1524 = vsel %vm56, %v1512, 0
  %1526 = vmatprep.subr.mxu0 %v1518
  %1527 = vmatpush1.msra.mxu0 %v1516
  %1528 = vmatprep.subr.mxu0 0.0
  %1529 = vmatpush1.msra.mxu0 0.0
  %1530 = vmatprep.subr.mxu0 0.0
  %1531 = vmatpush1.msra.mxu0 0.0
  %1532 = vmatprep.subr.mxu0 0.0
  %1533 = vmatpush1.msra.mxu0 0.0
  %1534 = vmatprep.subr.mxu0 0.0
  %1535 = vmatpush1.msra.mxu0 0.0
  %1536 = vmatprep.subr.mxu0 0.0
  %1537 = vmatpush1.msra.mxu0 0.0
  %1538 = vmatprep.subr.mxu0 0.0
  %1539 = vmatpush1.msra.mxu0 0.0
  %1540 = vmatprep.subr.mxu0 0.0
  %1541 = vmatpush1.msra.mxu0 0.0
  %1542 = vmatprep.subr.mxu0 0.0
  %1543 = vmatpush1.msra.mxu0 0.0
  %1544 = vmatprep.subr.mxu0 0.0
  %1545 = vmatpush1.msra.mxu0 0.0
  %1546 = vmatprep.subr.mxu0 0.0
  %1547 = vmatpush1.msra.mxu0 0.0
  %1548 = vmatprep.subr.mxu0 0.0
  %1549 = vmatpush1.msra.mxu0 0.0
  %1550 = vmatprep.subr.mxu0 0.0
  %1551 = vmatpush1.msra.mxu0 0.0
  %1552 = vmatprep.subr.mxu0 0.0
  %1553 = vmatpush1.msra.mxu0 0.0
  %1554 = vmatprep.subr.mxu0 0.0
  %1555 = vmatpush1.msra.mxu0 0.0
  %1556 = vmatprep.subr.mxu0 0.0
  %1557 = vmatpush1.msra.mxu0 0.0
  %1558 = vmatprep.subr.mxu0 0.0
  %1559 = vmatpush1.msra.mxu0 0.0
  %1560 = vmatprep.subr.mxu0 0.0
  %1561 = vmatpush1.msra.mxu0 0.0
  %1562 = vmatprep.subr.mxu0 0.0
  %1563 = vmatpush1.msra.mxu0 0.0
  %1564 = vmatprep.subr.mxu0 0.0
  %1565 = vmatpush1.msra.mxu0 0.0
  %1566 = vmatprep.subr.mxu0 0.0
  %1567 = vmatpush1.msra.mxu0 0.0
  %1568 = vmatprep.subr.mxu0 0.0
  %1569 = vmatpush1.msra.mxu0 0.0
  %1570 = vmatprep.subr.mxu0 0.0
  %1571 = vmatpush1.msra.mxu0 0.0
  %1572 = vmatprep.subr.mxu0 0.0
  %1573 = vmatpush1.msra.mxu0 0.0
  %1574 = vmatprep.subr.mxu0 0.0
  %1575 = vmatpush1.msra.mxu0 0.0
  %1576 = vmatprep.subr.mxu0 0.0
  %1577 = vmatpush1.msra.mxu0 0.0
  %1578 = vmatprep.subr.mxu0 0.0
  %1579 = vmatpush1.msra.mxu0 0.0
  %1580 = vmatprep.subr.mxu0 0.0
  %1581 = vmatpush1.msra.mxu0 0.0
  %1582 = vmatprep.subr.mxu0 0.0
  %1583 = vmatpush1.msra.mxu0 0.0
  %1584 = vmatprep.subr.mxu0 0.0
  %1585 = vmatpush1.msra.mxu0 0.0
  %1586 = vmatprep.subr.mxu0 0.0
  %1587 = vmatpush1.msra.mxu0 0.0
  %1588 = vmatprep.subr.mxu0 0.0
  %1589 = vmatpush1.msra.mxu0 0.0
  %1590 = vmatprep.mubr.f32.mxu0 0.0
  %1591 = vmatmul.mubr.f32.gmra.mrb[0].mxu0 %v1514
  %v1592 = vpop.f32.mrb[0].mxu0
  %v1593 = vadd.f32 0.0, %v1592
  %v1594 = vpop.f32.mrb[0].mxu0
  %v1595 = vadd.f32 0.0, %v1594
  %1596 = vdwg.mxu0
  %1597 = vmatprep.subr.mxu0 %v1522
  %1598 = vmatpush1.msra.mxu0 %v1520
  %1599 = vmatprep.subr.mxu0 0.0
  %1600 = vmatpush1.msra.mxu0 0.0
  %1601 = vmatprep.subr.mxu0 0.0
  %1602 = vmatpush1.msra.mxu0 0.0
  %1603 = vmatprep.subr.mxu0 0.0
  %1604 = vmatpush1.msra.mxu0 0.0
  %1605 = vmatprep.subr.mxu0 0.0
  %1606 = vmatpush1.msra.mxu0 0.0
  %1607 = vmatprep.subr.mxu0 0.0
  %1608 = vmatpush1.msra.mxu0 0.0
  %1609 = vmatprep.subr.mxu0 0.0
  %1610 = vmatpush1.msra.mxu0 0.0
  %1611 = vmatprep.subr.mxu0 0.0
  %1612 = vmatpush1.msra.mxu0 0.0
  %1613 = vmatprep.subr.mxu0 0.0
  %1614 = vmatpush1.msra.mxu0 0.0
  %1615 = vmatprep.subr.mxu0 0.0
  %1616 = vmatpush1.msra.mxu0 0.0
  %1617 = vmatprep.subr.mxu0 0.0
  %1618 = vmatpush1.msra.mxu0 0.0
  %1619 = vmatprep.subr.mxu0 0.0
  %1620 = vmatpush1.msra.mxu0 0.0
  %1621 = vmatprep.subr.mxu0 0.0
  %1622 = vmatpush1.msra.mxu0 0.0
  %1623 = vmatprep.subr.mxu0 0.0
  %1624 = vmatpush1.msra.mxu0 0.0
  %1625 = vmatprep.subr.mxu0 0.0
  %1626 = vmatpush1.msra.mxu0 0.0
  %1627 = vmatprep.subr.mxu0 0.0
  %1628 = vmatpush1.msra.mxu0 0.0
  %1629 = vmatprep.subr.mxu0 0.0
  %1630 = vmatpush1.msra.mxu0 0.0
  %1631 = vmatprep.subr.mxu0 0.0
  %1632 = vmatpush1.msra.mxu0 0.0
  %1633 = vmatprep.subr.mxu0 0.0
  %1634 = vmatpush1.msra.mxu0 0.0
  %1635 = vmatprep.subr.mxu0 0.0
  %1636 = vmatpush1.msra.mxu0 0.0
  %1637 = vmatprep.subr.mxu0 0.0
  %1638 = vmatpush1.msra.mxu0 0.0
  %1639 = vmatprep.subr.mxu0 0.0
  %1640 = vmatpush1.msra.mxu0 0.0
  %1641 = vmatprep.subr.mxu0 0.0
  %1642 = vmatpush1.msra.mxu0 0.0
  %1643 = vmatprep.subr.mxu0 0.0
  %1644 = vmatpush1.msra.mxu0 0.0
  %1645 = vmatprep.subr.mxu0 0.0
  %1646 = vmatpush1.msra.mxu0 0.0
  %1647 = vmatprep.subr.mxu0 0.0
  %1648 = vmatpush1.msra.mxu0 0.0
  %1649 = vmatprep.subr.mxu0 0.0
  %1650 = vmatpush1.msra.mxu0 0.0
  %1651 = vmatprep.subr.mxu0 0.0
  %1652 = vmatpush1.msra.mxu0 0.0
  %1653 = vmatprep.subr.mxu0 0.0
  %1654 = vmatpush1.msra.mxu0 0.0
  %1655 = vmatprep.subr.mxu0 0.0
  %1656 = vmatpush1.msra.mxu0 0.0
  %1657 = vmatprep.subr.mxu0 0.0
  %1658 = vmatpush1.msra.mxu0 0.0
  %1659 = vmatprep.subr.mxu0 0.0
  %1660 = vmatpush1.msra.mxu0 0.0
  %1661 = vmatprep.mubr.f32.mxu0 0.0
  %1662 = vmatmul.mubr.f32.gmra.mrb[0].mxu0 %v1514
  %v1663 = vpop.f32.mrb[0].mxu0
  %v1664 = vadd.f32 0.0, %v1663
  %v1665 = vpop.f32.mrb[0].mxu0
  %v1666 = vadd.f32 0.0, %v1665
  %1667 = vdwg.mxu0
  %1668 = vmatprep.subr.mxu0 0.0
  %1669 = vmatpush1.msra.mxu0 %v1524
  %1670 = vmatprep.subr.mxu0 0.0
  %1671 = vmatpush1.msra.mxu0 0.0
  %1672 = vmatprep.subr.mxu0 0.0
  %1673 = vmatpush1.msra.mxu0 0.0
  %1674 = vmatprep.subr.mxu0 0.0
  %1675 = vmatpush1.msra.mxu0 0.0
  %1676 = vmatprep.subr.mxu0 0.0
  %1677 = vmatpush1.msra.mxu0 0.0
  %1678 = vmatprep.subr.mxu0 0.0
  %1679 = vmatpush1.msra.mxu0 0.0
  %1680 = vmatprep.subr.mxu0 0.0
  %1681 = vmatpush1.msra.mxu0 0.0
  %1682 = vmatprep.subr.mxu0 0.0
  %1683 = vmatpush1.msra.mxu0 0.0
  %1684 = vmatprep.subr.mxu0 0.0
  %1685 = vmatpush1.msra.mxu0 0.0
  %1686 = vmatprep.subr.mxu0 0.0
  %1687 = vmatpush1.msra.mxu0 0.0
  %1688 = vmatprep.subr.mxu0 0.0
  %1689 = vmatpush1.msra.mxu0 0.0
  %1690 = vmatprep.subr.mxu0 0.0
  %1691 = vmatpush1.msra.mxu0 0.0
  %1692 = vmatprep.subr.mxu0 0.0
  %1693 = vmatpush1.msra.mxu0 0.0
  %1694 = vmatprep.subr.mxu0 0.0
  %1695 = vmatpush1.msra.mxu0 0.0
  %1696 = vmatprep.subr.mxu0 0.0
  %1697 = vmatpush1.msra.mxu0 0.0
  %1698 = vmatprep.subr.mxu0 0.0
  %1699 = vmatpush1.msra.mxu0 0.0
  %1700 = vmatprep.subr.mxu0 0.0
  %1701 = vmatpush1.msra.mxu0 0.0
  %1702 = vmatprep.subr.mxu0 0.0
  %1703 = vmatpush1.msra.mxu0 0.0
  %1704 = vmatprep.subr.mxu0 0.0
  %1705 = vmatpush1.msra.mxu0 0.0
  %1706 = vmatprep.subr.mxu0 0.0
  %1707 = vmatpush1.msra.mxu0 0.0
  %1708 = vmatprep.subr.mxu0 0.0
  %1709 = vmatpush1.msra.mxu0 0.0
  %1710 = vmatprep.subr.mxu0 0.0
  %1711 = vmatpush1.msra.mxu0 0.0
  %1712 = vmatprep.subr.mxu0 0.0
  %1713 = vmatpush1.msra.mxu0 0.0
  %1714 = vmatprep.subr.mxu0 0.0
  %1715 = vmatpush1.msra.mxu0 0.0
  %1716 = vmatprep.subr.mxu0 0.0
  %1717 = vmatpush1.msra.mxu0 0.0
  %1718 = vmatprep.subr.mxu0 0.0
  %1719 = vmatpush1.msra.mxu0 0.0
  %1720 = vmatprep.subr.mxu0 0.0
  %1721 = vmatpush1.msra.mxu0 0.0
  %1722 = vmatprep.subr.mxu0 0.0
  %1723 = vmatpush1.msra.mxu0 0.0
  %1724 = vmatprep.subr.mxu0 0.0
  %1725 = vmatpush1.msra.mxu0 0.0
  %1726 = vmatprep.subr.mxu0 0.0
  %1727 = vmatpush1.msra.mxu0 0.0
  %1728 = vmatprep.subr.mxu0 0.0
  %1729 = vmatpush1.msra.mxu0 0.0
  %1730 = vmatprep.subr.mxu0 0.0
  %1731 = vmatpush1.msra.mxu0 0.0
  %1732 = vmatprep.mubr.f32.mxu0 0.0
  %1733 = vmatmul.mubr.f32.gmra.mrb[0].mxu0 %v1514
  %v1734 = vpop.f32.mrb[0].mxu0
  %v1735 = vadd.f32 0.0, %v1734
  %v1736 = vpop.f32.mrb[0].mxu0
  %1737 = vdwg.mxu0
  %v1738 = vadd.f32 %v1487, %v1593
  %v1739 = vadd.f32 %v1488, %v1595
  %v1740 = vadd.f32 %v1489, %v1664
  %v1741 = vadd.f32 %v1490, %v1666
  %v1742 = vadd.f32 %v1491, %v1735
  %s1743 = scalar_lea.vmem %s1, 56
  %v1744 = vld [vmem:[%s1743] sm:$0xff]
  %1745 = vrot.lane.b32.xlu0 %v26, 91
  %v1746 = vpop.permute.xlu0 %1745
  %1747 = vrot.lane.b32.xlu0 %v35, 91
  %v1748 = vpop.permute.xlu0 %1747
  %1749 = vrot.lane.b32.xlu0 %v27, 91
  %v1750 = vpop.permute.xlu0 %1749
  %1751 = vrot.lane.b32.xlu0 %v36, 91
  %v1752 = vpop.permute.xlu0 %1751
  %1753 = vrot.lane.b32.xlu0 %v28, 91
  %v1754 = vpop.permute.xlu0 %1753
  %1755 = vrot.lane.b32.xlu0 %v1494, 91
  %v1756 = vpop.permute.xlu0 %1755
  %vm1757 = vcmask 744448
  %v1758 = vsel %vm1757, %v1746, %v1748
  %v1759 = vsel %vm1757, %v1748, %v1750
  %v1760 = vsel %vm1757, %v1750, %v1752
  %v1761 = vsel %vm1757, %v1752, %v1754
  %v1762 = vsel %vm1757, %v1754, %v1756
  %v1764 = vsel %vm52, %v1744, 0
  %v1766 = vsel %vm56, %v1758, 0
  %v1768 = vsel %vm56, %v1759, 0
  %v1770 = vsel %vm56, %v1760, 0
  %v1772 = vsel %vm56, %v1761, 0
  %v1774 = vsel %vm56, %v1762, 0
  %1776 = vmatprep.subr.mxu0 %v1768
  %1777 = vmatpush1.msra.mxu0 %v1766
  %1778 = vmatprep.subr.mxu0 0.0
  %1779 = vmatpush1.msra.mxu0 0.0
  %1780 = vmatprep.subr.mxu0 0.0
  %1781 = vmatpush1.msra.mxu0 0.0
  %1782 = vmatprep.subr.mxu0 0.0
  %1783 = vmatpush1.msra.mxu0 0.0
  %1784 = vmatprep.subr.mxu0 0.0
  %1785 = vmatpush1.msra.mxu0 0.0
  %1786 = vmatprep.subr.mxu0 0.0
  %1787 = vmatpush1.msra.mxu0 0.0
  %1788 = vmatprep.subr.mxu0 0.0
  %1789 = vmatpush1.msra.mxu0 0.0
  %1790 = vmatprep.subr.mxu0 0.0
  %1791 = vmatpush1.msra.mxu0 0.0
  %1792 = vmatprep.subr.mxu0 0.0
  %1793 = vmatpush1.msra.mxu0 0.0
  %1794 = vmatprep.subr.mxu0 0.0
  %1795 = vmatpush1.msra.mxu0 0.0
  %1796 = vmatprep.subr.mxu0 0.0
  %1797 = vmatpush1.msra.mxu0 0.0
  %1798 = vmatprep.subr.mxu0 0.0
  %1799 = vmatpush1.msra.mxu0 0.0
  %1800 = vmatprep.subr.mxu0 0.0
  %1801 = vmatpush1.msra.mxu0 0.0
  %1802 = vmatprep.subr.mxu0 0.0
  %1803 = vmatpush1.msra.mxu0 0.0
  %1804 = vmatprep.subr.mxu0 0.0
  %1805 = vmatpush1.msra.mxu0 0.0
  %1806 = vmatprep.subr.mxu0 0.0
  %1807 = vmatpush1.msra.mxu0 0.0
  %1808 = vmatprep.subr.mxu0 0.0
  %1809 = vmatpush1.msra.mxu0 0.0
  %1810 = vmatprep.subr.mxu0 0.0
  %1811 = vmatpush1.msra.mxu0 0.0
  %1812 = vmatprep.subr.mxu0 0.0
  %1813 = vmatpush1.msra.mxu0 0.0
  %1814 = vmatprep.subr.mxu0 0.0
  %1815 = vmatpush1.msra.mxu0 0.0
  %1816 = vmatprep.subr.mxu0 0.0
  %1817 = vmatpush1.msra.mxu0 0.0
  %1818 = vmatprep.subr.mxu0 0.0
  %1819 = vmatpush1.msra.mxu0 0.0
  %1820 = vmatprep.subr.mxu0 0.0
  %1821 = vmatpush1.msra.mxu0 0.0
  %1822 = vmatprep.subr.mxu0 0.0
  %1823 = vmatpush1.msra.mxu0 0.0
  %1824 = vmatprep.subr.mxu0 0.0
  %1825 = vmatpush1.msra.mxu0 0.0
  %1826 = vmatprep.subr.mxu0 0.0
  %1827 = vmatpush1.msra.mxu0 0.0
  %1828 = vmatprep.subr.mxu0 0.0
  %1829 = vmatpush1.msra.mxu0 0.0
  %1830 = vmatprep.subr.mxu0 0.0
  %1831 = vmatpush1.msra.mxu0 0.0
  %1832 = vmatprep.subr.mxu0 0.0
  %1833 = vmatpush1.msra.mxu0 0.0
  %1834 = vmatprep.subr.mxu0 0.0
  %1835 = vmatpush1.msra.mxu0 0.0
  %1836 = vmatprep.subr.mxu0 0.0
  %1837 = vmatpush1.msra.mxu0 0.0
  %1838 = vmatprep.subr.mxu0 0.0
  %1839 = vmatpush1.msra.mxu0 0.0
  %1840 = vmatprep.mubr.f32.mxu0 0.0
  %1841 = vmatmul.mubr.f32.gmra.mrb[0].mxu0 %v1764
  %v1842 = vpop.f32.mrb[0].mxu0
  %v1843 = vadd.f32 0.0, %v1842
  %v1844 = vpop.f32.mrb[0].mxu0
  %v1845 = vadd.f32 0.0, %v1844
  %1846 = vdwg.mxu0
  %1847 = vmatprep.subr.mxu0 %v1772
  %1848 = vmatpush1.msra.mxu0 %v1770
  %1849 = vmatprep.subr.mxu0 0.0
  %1850 = vmatpush1.msra.mxu0 0.0
  %1851 = vmatprep.subr.mxu0 0.0
  %1852 = vmatpush1.msra.mxu0 0.0
  %1853 = vmatprep.subr.mxu0 0.0
  %1854 = vmatpush1.msra.mxu0 0.0
  %1855 = vmatprep.subr.mxu0 0.0
  %1856 = vmatpush1.msra.mxu0 0.0
  %1857 = vmatprep.subr.mxu0 0.0
  %1858 = vmatpush1.msra.mxu0 0.0
  %1859 = vmatprep.subr.mxu0 0.0
  %1860 = vmatpush1.msra.mxu0 0.0
  %1861 = vmatprep.subr.mxu0 0.0
  %1862 = vmatpush1.msra.mxu0 0.0
  %1863 = vmatprep.subr.mxu0 0.0
  %1864 = vmatpush1.msra.mxu0 0.0
  %1865 = vmatprep.subr.mxu0 0.0
  %1866 = vmatpush1.msra.mxu0 0.0
  %1867 = vmatprep.subr.mxu0 0.0
  %1868 = vmatpush1.msra.mxu0 0.0
  %1869 = vmatprep.subr.mxu0 0.0
  %1870 = vmatpush1.msra.mxu0 0.0
  %1871 = vmatprep.subr.mxu0 0.0
  %1872 = vmatpush1.msra.mxu0 0.0
  %1873 = vmatprep.subr.mxu0 0.0
  %1874 = vmatpush1.msra.mxu0 0.0
  %1875 = vmatprep.subr.mxu0 0.0
  %1876 = vmatpush1.msra.mxu0 0.0
  %1877 = vmatprep.subr.mxu0 0.0
  %1878 = vmatpush1.msra.mxu0 0.0
  %1879 = vmatprep.subr.mxu0 0.0
  %1880 = vmatpush1.msra.mxu0 0.0
  %1881 = vmatprep.subr.mxu0 0.0
  %1882 = vmatpush1.msra.mxu0 0.0
  %1883 = vmatprep.subr.mxu0 0.0
  %1884 = vmatpush1.msra.mxu0 0.0
  %1885 = vmatprep.subr.mxu0 0.0
  %1886 = vmatpush1.msra.mxu0 0.0
  %1887 = vmatprep.subr.mxu0 0.0
  %1888 = vmatpush1.msra.mxu0 0.0
  %1889 = vmatprep.subr.mxu0 0.0
  %1890 = vmatpush1.msra.mxu0 0.0
  %1891 = vmatprep.subr.mxu0 0.0
  %1892 = vmatpush1.msra.mxu0 0.0
  %1893 = vmatprep.subr.mxu0 0.0
  %1894 = vmatpush1.msra.mxu0 0.0
  %1895 = vmatprep.subr.mxu0 0.0
  %1896 = vmatpush1.msra.mxu0 0.0
  %1897 = vmatprep.subr.mxu0 0.0
  %1898 = vmatpush1.msra.mxu0 0.0
  %1899 = vmatprep.subr.mxu0 0.0
  %1900 = vmatpush1.msra.mxu0 0.0
  %1901 = vmatprep.subr.mxu0 0.0
  %1902 = vmatpush1.msra.mxu0 0.0
  %1903 = vmatprep.subr.mxu0 0.0
  %1904 = vmatpush1.msra.mxu0 0.0
  %1905 = vmatprep.subr.mxu0 0.0
  %1906 = vmatpush1.msra.mxu0 0.0
  %1907 = vmatprep.subr.mxu0 0.0
  %1908 = vmatpush1.msra.mxu0 0.0
  %1909 = vmatprep.subr.mxu0 0.0
  %1910 = vmatpush1.msra.mxu0 0.0
  %1911 = vmatprep.mubr.f32.mxu0 0.0
  %1912 = vmatmul.mubr.f32.gmra.mrb[0].mxu0 %v1764
  %v1913 = vpop.f32.mrb[0].mxu0
  %v1914 = vadd.f32 0.0, %v1913
  %v1915 = vpop.f32.mrb[0].mxu0
  %v1916 = vadd.f32 0.0, %v1915
  %1917 = vdwg.mxu0
  %1918 = vmatprep.subr.mxu0 0.0
  %1919 = vmatpush1.msra.mxu0 %v1774
  %1920 = vmatprep.subr.mxu0 0.0
  %1921 = vmatpush1.msra.mxu0 0.0
  %1922 = vmatprep.subr.mxu0 0.0
  %1923 = vmatpush1.msra.mxu0 0.0
  %1924 = vmatprep.subr.mxu0 0.0
  %1925 = vmatpush1.msra.mxu0 0.0
  %1926 = vmatprep.subr.mxu0 0.0
  %1927 = vmatpush1.msra.mxu0 0.0
  %1928 = vmatprep.subr.mxu0 0.0
  %1929 = vmatpush1.msra.mxu0 0.0
  %1930 = vmatprep.subr.mxu0 0.0
  %1931 = vmatpush1.msra.mxu0 0.0
  %1932 = vmatprep.subr.mxu0 0.0
  %1933 = vmatpush1.msra.mxu0 0.0
  %1934 = vmatprep.subr.mxu0 0.0
  %1935 = vmatpush1.msra.mxu0 0.0
  %1936 = vmatprep.subr.mxu0 0.0
  %1937 = vmatpush1.msra.mxu0 0.0
  %1938 = vmatprep.subr.mxu0 0.0
  %1939 = vmatpush1.msra.mxu0 0.0
  %1940 = vmatprep.subr.mxu0 0.0
  %1941 = vmatpush1.msra.mxu0 0.0
  %1942 = vmatprep.subr.mxu0 0.0
  %1943 = vmatpush1.msra.mxu0 0.0
  %1944 = vmatprep.subr.mxu0 0.0
  %1945 = vmatpush1.msra.mxu0 0.0
  %1946 = vmatprep.subr.mxu0 0.0
  %1947 = vmatpush1.msra.mxu0 0.0
  %1948 = vmatprep.subr.mxu0 0.0
  %1949 = vmatpush1.msra.mxu0 0.0
  %1950 = vmatprep.subr.mxu0 0.0
  %1951 = vmatpush1.msra.mxu0 0.0
  %1952 = vmatprep.subr.mxu0 0.0
  %1953 = vmatpush1.msra.mxu0 0.0
  %1954 = vmatprep.subr.mxu0 0.0
  %1955 = vmatpush1.msra.mxu0 0.0
  %1956 = vmatprep.subr.mxu0 0.0
  %1957 = vmatpush1.msra.mxu0 0.0
  %1958 = vmatprep.subr.mxu0 0.0
  %1959 = vmatpush1.msra.mxu0 0.0
  %1960 = vmatprep.subr.mxu0 0.0
  %1961 = vmatpush1.msra.mxu0 0.0
  %1962 = vmatprep.subr.mxu0 0.0
  %1963 = vmatpush1.msra.mxu0 0.0
  %1964 = vmatprep.subr.mxu0 0.0
  %1965 = vmatpush1.msra.mxu0 0.0
  %1966 = vmatprep.subr.mxu0 0.0
  %1967 = vmatpush1.msra.mxu0 0.0
  %1968 = vmatprep.subr.mxu0 0.0
  %1969 = vmatpush1.msra.mxu0 0.0
  %1970 = vmatprep.subr.mxu0 0.0
  %1971 = vmatpush1.msra.mxu0 0.0
  %1972 = vmatprep.subr.mxu0 0.0
  %1973 = vmatpush1.msra.mxu0 0.0
  %1974 = vmatprep.subr.mxu0 0.0
  %1975 = vmatpush1.msra.mxu0 0.0
  %1976 = vmatprep.subr.mxu0 0.0
  %1977 = vmatpush1.msra.mxu0 0.0
  %1978 = vmatprep.subr.mxu0 0.0
  %1979 = vmatpush1.msra.mxu0 0.0
  %1980 = vmatprep.subr.mxu0 0.0
  %1981 = vmatpush1.msra.mxu0 0.0
  %1982 = vmatprep.mubr.f32.mxu0 0.0
  %1983 = vmatmul.mubr.f32.gmra.mrb[0].mxu0 %v1764
  %v1984 = vpop.f32.mrb[0].mxu0
  %v1985 = vadd.f32 0.0, %v1984
  %v1986 = vpop.f32.mrb[0].mxu0
  %1987 = vdwg.mxu0
  %v1988 = vadd.f32 %v1738, %v1843
  %v1989 = vadd.f32 %v1739, %v1845
  %v1990 = vadd.f32 %v1740, %v1914
  %v1991 = vadd.f32 %v1741, %v1916
  %v1992 = vadd.f32 %v1742, %v1985
  %s1993 = scalar_lea.vmem %s1, 64
  %v1994 = vld [vmem:[%s1993] sm:$0xff]
  %1995 = vrot.lane.b32.xlu0 %v26, 90
  %v1996 = vpop.permute.xlu0 %1995
  %1997 = vrot.lane.b32.xlu0 %v35, 90
  %v1998 = vpop.permute.xlu0 %1997
  %1999 = vrot.lane.b32.xlu0 %v27, 90
  %v2000 = vpop.permute.xlu0 %1999
  %2001 = vrot.lane.b32.xlu0 %v36, 90
  %v2002 = vpop.permute.xlu0 %2001
  %2003 = vrot.lane.b32.xlu0 %v28, 90
  %v2004 = vpop.permute.xlu0 %2003
  %2005 = vrot.lane.b32.xlu0 %v1494, 90
  %v2006 = vpop.permute.xlu0 %2005
  %vm2007 = vcmask 736256
  %v2008 = vsel %vm2007, %v1996, %v1998
  %v2009 = vsel %vm2007, %v1998, %v2000
  %v2010 = vsel %vm2007, %v2000, %v2002
  %v2011 = vsel %vm2007, %v2002, %v2004
  %v2012 = vsel %vm2007, %v2004, %v2006
  %v2014 = vsel %vm52, %v1994, 0
  %v2016 = vsel %vm56, %v2008, 0
  %v2018 = vsel %vm56, %v2009, 0
  %v2020 = vsel %vm56, %v2010, 0
  %v2022 = vsel %vm56, %v2011, 0
  %v2024 = vsel %vm56, %v2012, 0
  %2026 = vmatprep.subr.mxu0 %v2018
  %2027 = vmatpush1.msra.mxu0 %v2016
  %2028 = vmatprep.subr.mxu0 0.0
  %2029 = vmatpush1.msra.mxu0 0.0
  %2030 = vmatprep.subr.mxu0 0.0
  %2031 = vmatpush1.msra.mxu0 0.0
  %2032 = vmatprep.subr.mxu0 0.0
  %2033 = vmatpush1.msra.mxu0 0.0
  %2034 = vmatprep.subr.mxu0 0.0
  %2035 = vmatpush1.msra.mxu0 0.0
  %2036 = vmatprep.subr.mxu0 0.0
  %2037 = vmatpush1.msra.mxu0 0.0
  %2038 = vmatprep.subr.mxu0 0.0
  %2039 = vmatpush1.msra.mxu0 0.0
  %2040 = vmatprep.subr.mxu0 0.0
  %2041 = vmatpush1.msra.mxu0 0.0
  %2042 = vmatprep.subr.mxu0 0.0
  %2043 = vmatpush1.msra.mxu0 0.0
  %2044 = vmatprep.subr.mxu0 0.0
  %2045 = vmatpush1.msra.mxu0 0.0
  %2046 = vmatprep.subr.mxu0 0.0
  %2047 = vmatpush1.msra.mxu0 0.0
  %2048 = vmatprep.subr.mxu0 0.0
  %2049 = vmatpush1.msra.mxu0 0.0
  %2050 = vmatprep.subr.mxu0 0.0
  %2051 = vmatpush1.msra.mxu0 0.0
  %2052 = vmatprep.subr.mxu0 0.0
  %2053 = vmatpush1.msra.mxu0 0.0
  %2054 = vmatprep.subr.mxu0 0.0
  %2055 = vmatpush1.msra.mxu0 0.0
  %2056 = vmatprep.subr.mxu0 0.0
  %2057 = vmatpush1.msra.mxu0 0.0
  %2058 = vmatprep.subr.mxu0 0.0
  %2059 = vmatpush1.msra.mxu0 0.0
  %2060 = vmatprep.subr.mxu0 0.0
  %2061 = vmatpush1.msra.mxu0 0.0
  %2062 = vmatprep.subr.mxu0 0.0
  %2063 = vmatpush1.msra.mxu0 0.0
  %2064 = vmatprep.subr.mxu0 0.0
  %2065 = vmatpush1.msra.mxu0 0.0
  %2066 = vmatprep.subr.mxu0 0.0
  %2067 = vmatpush1.msra.mxu0 0.0
  %2068 = vmatprep.subr.mxu0 0.0
  %2069 = vmatpush1.msra.mxu0 0.0
  %2070 = vmatprep.subr.mxu0 0.0
  %2071 = vmatpush1.msra.mxu0 0.0
  %2072 = vmatprep.subr.mxu0 0.0
  %2073 = vmatpush1.msra.mxu0 0.0
  %2074 = vmatprep.subr.mxu0 0.0
  %2075 = vmatpush1.msra.mxu0 0.0
  %2076 = vmatprep.subr.mxu0 0.0
  %2077 = vmatpush1.msra.mxu0 0.0
  %2078 = vmatprep.subr.mxu0 0.0
  %2079 = vmatpush1.msra.mxu0 0.0
  %2080 = vmatprep.subr.mxu0 0.0
  %2081 = vmatpush1.msra.mxu0 0.0
  %2082 = vmatprep.subr.mxu0 0.0
  %2083 = vmatpush1.msra.mxu0 0.0
  %2084 = vmatprep.subr.mxu0 0.0
  %2085 = vmatpush1.msra.mxu0 0.0
  %2086 = vmatprep.subr.mxu0 0.0
  %2087 = vmatpush1.msra.mxu0 0.0
  %2088 = vmatprep.subr.mxu0 0.0
  %2089 = vmatpush1.msra.mxu0 0.0
  %2090 = vmatprep.mubr.f32.mxu0 0.0
  %2091 = vmatmul.mubr.f32.gmra.mrb[0].mxu0 %v2014
  %v2092 = vpop.f32.mrb[0].mxu0
  %v2093 = vadd.f32 0.0, %v2092
  %v2094 = vpop.f32.mrb[0].mxu0
  %v2095 = vadd.f32 0.0, %v2094
  %2096 = vdwg.mxu0
  %2097 = vmatprep.subr.mxu0 %v2022
  %2098 = vmatpush1.msra.mxu0 %v2020
  %2099 = vmatprep.subr.mxu0 0.0
  %2100 = vmatpush1.msra.mxu0 0.0
  %2101 = vmatprep.subr.mxu0 0.0
  %2102 = vmatpush1.msra.mxu0 0.0
  %2103 = vmatprep.subr.mxu0 0.0
  %2104 = vmatpush1.msra.mxu0 0.0
  %2105 = vmatprep.subr.mxu0 0.0
  %2106 = vmatpush1.msra.mxu0 0.0
  %2107 = vmatprep.subr.mxu0 0.0
  %2108 = vmatpush1.msra.mxu0 0.0
  %2109 = vmatprep.subr.mxu0 0.0
  %2110 = vmatpush1.msra.mxu0 0.0
  %2111 = vmatprep.subr.mxu0 0.0
  %2112 = vmatpush1.msra.mxu0 0.0
  %2113 = vmatprep.subr.mxu0 0.0
  %2114 = vmatpush1.msra.mxu0 0.0
  %2115 = vmatprep.subr.mxu0 0.0
  %2116 = vmatpush1.msra.mxu0 0.0
  %2117 = vmatprep.subr.mxu0 0.0
  %2118 = vmatpush1.msra.mxu0 0.0
  %2119 = vmatprep.subr.mxu0 0.0
  %2120 = vmatpush1.msra.mxu0 0.0
  %2121 = vmatprep.subr.mxu0 0.0
  %2122 = vmatpush1.msra.mxu0 0.0
  %2123 = vmatprep.subr.mxu0 0.0
  %2124 = vmatpush1.msra.mxu0 0.0
  %2125 = vmatprep.subr.mxu0 0.0
  %2126 = vmatpush1.msra.mxu0 0.0
  %2127 = vmatprep.subr.mxu0 0.0
  %2128 = vmatpush1.msra.mxu0 0.0
  %2129 = vmatprep.subr.mxu0 0.0
  %2130 = vmatpush1.msra.mxu0 0.0
  %2131 = vmatprep.subr.mxu0 0.0
  %2132 = vmatpush1.msra.mxu0 0.0
  %2133 = vmatprep.subr.mxu0 0.0
  %2134 = vmatpush1.msra.mxu0 0.0
  %2135 = vmatprep.subr.mxu0 0.0
  %2136 = vmatpush1.msra.mxu0 0.0
  %2137 = vmatprep.subr.mxu0 0.0
  %2138 = vmatpush1.msra.mxu0 0.0
  %2139 = vmatprep.subr.mxu0 0.0
  %2140 = vmatpush1.msra.mxu0 0.0
  %2141 = vmatprep.subr.mxu0 0.0
  %2142 = vmatpush1.msra.mxu0 0.0
  %2143 = vmatprep.subr.mxu0 0.0
  %2144 = vmatpush1.msra.mxu0 0.0
  %2145 = vmatprep.subr.mxu0 0.0
  %2146 = vmatpush1.msra.mxu0 0.0
  %2147 = vmatprep.subr.mxu0 0.0
  %2148 = vmatpush1.msra.mxu0 0.0
  %2149 = vmatprep.subr.mxu0 0.0
  %2150 = vmatpush1.msra.mxu0 0.0
  %2151 = vmatprep.subr.mxu0 0.0
  %2152 = vmatpush1.msra.mxu0 0.0
  %2153 = vmatprep.subr.mxu0 0.0
  %2154 = vmatpush1.msra.mxu0 0.0
  %2155 = vmatprep.subr.mxu0 0.0
  %2156 = vmatpush1.msra.mxu0 0.0
  %2157 = vmatprep.subr.mxu0 0.0
  %2158 = vmatpush1.msra.mxu0 0.0
  %2159 = vmatprep.subr.mxu0 0.0
  %2160 = vmatpush1.msra.mxu0 0.0
  %2161 = vmatprep.mubr.f32.mxu0 0.0
  %2162 = vmatmul.mubr.f32.gmra.mrb[0].mxu0 %v2014
  %v2163 = vpop.f32.mrb[0].mxu0
  %v2164 = vadd.f32 0.0, %v2163
  %v2165 = vpop.f32.mrb[0].mxu0
  %v2166 = vadd.f32 0.0, %v2165
  %2167 = vdwg.mxu0
  %2168 = vmatprep.subr.mxu0 0.0
  %2169 = vmatpush1.msra.mxu0 %v2024
  %2170 = vmatprep.subr.mxu0 0.0
  %2171 = vmatpush1.msra.mxu0 0.0
  %2172 = vmatprep.subr.mxu0 0.0
  %2173 = vmatpush1.msra.mxu0 0.0
  %2174 = vmatprep.subr.mxu0 0.0
  %2175 = vmatpush1.msra.mxu0 0.0
  %2176 = vmatprep.subr.mxu0 0.0
  %2177 = vmatpush1.msra.mxu0 0.0
  %2178 = vmatprep.subr.mxu0 0.0
  %2179 = vmatpush1.msra.mxu0 0.0
  %2180 = vmatprep.subr.mxu0 0.0
  %2181 = vmatpush1.msra.mxu0 0.0
  %2182 = vmatprep.subr.mxu0 0.0
  %2183 = vmatpush1.msra.mxu0 0.0
  %2184 = vmatprep.subr.mxu0 0.0
  %2185 = vmatpush1.msra.mxu0 0.0
  %2186 = vmatprep.subr.mxu0 0.0
  %2187 = vmatpush1.msra.mxu0 0.0
  %2188 = vmatprep.subr.mxu0 0.0
  %2189 = vmatpush1.msra.mxu0 0.0
  %2190 = vmatprep.subr.mxu0 0.0
  %2191 = vmatpush1.msra.mxu0 0.0
  %2192 = vmatprep.subr.mxu0 0.0
  %2193 = vmatpush1.msra.mxu0 0.0
  %2194 = vmatprep.subr.mxu0 0.0
  %2195 = vmatpush1.msra.mxu0 0.0
  %2196 = vmatprep.subr.mxu0 0.0
  %2197 = vmatpush1.msra.mxu0 0.0
  %2198 = vmatprep.subr.mxu0 0.0
  %2199 = vmatpush1.msra.mxu0 0.0
  %2200 = vmatprep.subr.mxu0 0.0
  %2201 = vmatpush1.msra.mxu0 0.0
  %2202 = vmatprep.subr.mxu0 0.0
  %2203 = vmatpush1.msra.mxu0 0.0
  %2204 = vmatprep.subr.mxu0 0.0
  %2205 = vmatpush1.msra.mxu0 0.0
  %2206 = vmatprep.subr.mxu0 0.0
  %2207 = vmatpush1.msra.mxu0 0.0
  %2208 = vmatprep.subr.mxu0 0.0
  %2209 = vmatpush1.msra.mxu0 0.0
  %2210 = vmatprep.subr.mxu0 0.0
  %2211 = vmatpush1.msra.mxu0 0.0
  %2212 = vmatprep.subr.mxu0 0.0
  %2213 = vmatpush1.msra.mxu0 0.0
  %2214 = vmatprep.subr.mxu0 0.0
  %2215 = vmatpush1.msra.mxu0 0.0
  %2216 = vmatprep.subr.mxu0 0.0
  %2217 = vmatpush1.msra.mxu0 0.0
  %2218 = vmatprep.subr.mxu0 0.0
  %2219 = vmatpush1.msra.mxu0 0.0
  %2220 = vmatprep.subr.mxu0 0.0
  %2221 = vmatpush1.msra.mxu0 0.0
  %2222 = vmatprep.subr.mxu0 0.0
  %2223 = vmatpush1.msra.mxu0 0.0
  %2224 = vmatprep.subr.mxu0 0.0
  %2225 = vmatpush1.msra.mxu0 0.0
  %2226 = vmatprep.subr.mxu0 0.0
  %2227 = vmatpush1.msra.mxu0 0.0
  %2228 = vmatprep.subr.mxu0 0.0
  %2229 = vmatpush1.msra.mxu0 0.0
  %2230 = vmatprep.subr.mxu0 0.0
  %2231 = vmatpush1.msra.mxu0 0.0
  %2232 = vmatprep.mubr.f32.mxu0 0.0
  %2233 = vmatmul.mubr.f32.gmra.mrb[0].mxu0 %v2014
  %v2234 = vpop.f32.mrb[0].mxu0
  %v2235 = vadd.f32 0.0, %v2234
  %v2236 = vpop.f32.mrb[0].mxu0
  %2237 = vdwg.mxu0
  %v2238 = vadd.f32 %v1988, %v2093
  %v2239 = vadd.f32 %v1989, %v2095
  %v2240 = vadd.f32 %v1990, %v2164
  %v2241 = vadd.f32 %v1991, %v2166
  %v2242 = vadd.f32 %v1992, %v2235
  %v2243 = vld [vmem:[%s2] sm:$0xff]
  %2245 = vset.pattern.permute.xlu0 0
  %2246 = vperm.xlu0 %2245, %v2243
  %v2247 = vpop.permute.xlu0 %2246
  %v2249 = vadd.f32 %v2238, %v2247
  %v2250 = vadd.f32 %v2239, %v2247
  %v2251 = vadd.f32 %v2240, %v2247
  %v2252 = vadd.f32 %v2241, %v2247
  %v2253 = vadd.f32 %v2242, %v2247
  %v2254 = vmax.f32 %v2249, 0.0
  %v2255 = vmax.f32 %v2250, 0.0
  %v2256 = vmax.f32 %v2251, 0.0
  %v2257 = vmax.f32 %v2252, 0.0
  %v2258 = vmax.f32 %v2253, 0.0
  %2264 = vrot.lane.b32.xlu0 %v2254, 127
  %v2265 = vpop.permute.xlu0 %2264
  %2266 = vrot.lane.b32.xlu0 %v2255, 127
  %v2267 = vpop.permute.xlu0 %2266
  %2268 = vrot.lane.b32.xlu0 %v2256, 127
  %v2269 = vpop.permute.xlu0 %2268
  %2270 = vrot.lane.b32.xlu0 %v2257, 127
  %v2271 = vpop.permute.xlu0 %2270
  %2272 = vrot.lane.b32.xlu0 %v2258, 127
  %v2273 = vpop.permute.xlu0 %2272
  %v2274 = vsel %vm47, %v2265, %v2267
  %v2275 = vsel %vm47, %v2267, %v2269
  %v2276 = vsel %vm47, %v2269, %v2271
  %v2277 = vsel %vm47, %v2271, %v2273
  %v2283 = vmax.f32 %v2254, %v2274
  %v2284 = vmax.f32 %v2255, %v2275
  %v2285 = vmax.f32 %v2256, %v2276
  %v2286 = vmax.f32 %v2257, %v2277
  %v2287 = vmax.f32 %v2258, %v2273
  %2293 = vrot.lane.b32.xlu0 %v2283, 110
  %v2294 = vpop.permute.xlu0 %2293
  %2295 = vrot.lane.b32.xlu0 %v2284, 110
  %v2296 = vpop.permute.xlu0 %2295
  %2297 = vrot.lane.b32.xlu0 %v2285, 110
  %v2298 = vpop.permute.xlu0 %2297
  %2299 = vrot.lane.b32.xlu0 %v2286, 110
  %v2300 = vpop.permute.xlu0 %2299
  %2301 = vrot.lane.b32.xlu0 %v2287, 110
  %v2302 = vpop.permute.xlu0 %2301
  %v2303 = vsel %vm763, %v2294, %v2296
  %v2304 = vsel %vm763, %v2296, %v2298
  %v2305 = vsel %vm763, %v2298, %v2300
  %v2306 = vsel %vm763, %v2300, %v2302
  %v2312 = vmax.f32 %v2283, %v2303
  %v2313 = vmax.f32 %v2284, %v2304
  %v2314 = vmax.f32 %v2285, %v2305
  %v2315 = vmax.f32 %v2286, %v2306
  %v2316 = vmax.f32 %v2287, %v2302
  %v2317 = vld [vmem:[%s3] sm:$0xff]
  %v2318 = vld [vmem:[%s3 + $0x8] sm:$0xff]
  %v2319 = vld [vmem:[%s3 + $0x10] sm:$0xff]
  %v2320 = vld [vmem:[%s3 + $0x18] sm:$0xff]
  %v2321 = vld [vmem:[%s3 + $0x20] sm:$0xff]
  %v2322 = vld [vmem:[%s3 + $0x28] sm:$0xff]
  %v2323 = vld [vmem:[%s3 + $0x30] sm:$0xff]
  %v2324 = vld [vmem:[%s3 + $0x38] sm:$0xff]
  %v2325 = vld [vmem:[%s3 + $0x40] sm:$0xff]
  %v2326 = vld [vmem:[%s3 + $0x48] sm:$0xff]
  %v2327 = vld [vmem:[%s3 + $0x50] sm:$0xff]
  %v2328 = vld [vmem:[%s3 + $0x58] sm:$0xff]
  %v2329 = vld [vmem:[%s3 + $0x60] sm:$0xff]
  %v2330 = vld [vmem:[%s3 + $0x68] sm:$0xff]
  %v2331 = vld [vmem:[%s3 + $0x70] sm:$0xff]
  %v2332 = vld [vmem:[%s3 + $0x78] sm:$0xff]
  %v2333 = vld [vmem:[%s3 + $0x80] sm:$0xff]
  %v2334 = vld [vmem:[%s3 + $0x88] sm:$0xff]
  %v2335 = vld [vmem:[%s3 + $0x90] sm:$0xff]
  %v2336 = vld [vmem:[%s3 + $0x98] sm:$0xff]
  %v2337 = vld [vmem:[%s3 + $0xa0] sm:$0xff]
  %v2338 = vld [vmem:[%s3 + $0xa8] sm:$0xff]
  %v2339 = vld [vmem:[%s3 + $0xb0] sm:$0xff]
  %v2340 = vld [vmem:[%s3 + $0xb8] sm:$0xff]
  %v2341 = vld [vmem:[%s3 + $0xc0] sm:$0xff]
  %v2342 = vld [vmem:[%s3 + $0xc8] sm:$0xff]
  %v2343 = vld [vmem:[%s3 + $0xd0] sm:$0xff]
  %v2344 = vld [vmem:[%s3 + $0xd8] sm:$0xff]
  %v2345 = vld [vmem:[%s3 + $0xe0] sm:$0xff]
  %v2346 = vld [vmem:[%s3 + $0xe8] sm:$0xff]
  %v2347 = vld [vmem:[%s3 + $0xf0] sm:$0xff]
  %v2348 = vld [vmem:[%s3 + $0xf8] sm:$0xff]
  %v2349 = vld [vmem:[%s3 + $0x100] sm:$0xff]
  %v2350 = vld [vmem:[%s3 + $0x108] sm:$0xff]
  %v2351 = vld [vmem:[%s3 + $0x110] sm:$0xff]
  %v2352 = vld [vmem:[%s3 + $0x118] sm:$0xff]
  %v2353 = vld [vmem:[%s3 + $0x120] sm:$0xff]
  %v2354 = vld [vmem:[%s3 + $0x128] sm:$0xff]
  %v2355 = vld [vmem:[%s3 + $0x130] sm:$0xff]
  %v2356 = vld [vmem:[%s3 + $0x138] sm:$0xff]
  %v2357 = vld [vmem:[%s3 + $0x140] sm:$0xff]
  %v2358 = vld [vmem:[%s3 + $0x148] sm:$0xff]
  %v2359 = vld [vmem:[%s3 + $0x150] sm:$0xff]
  %v2360 = vld [vmem:[%s3 + $0x158] sm:$0xff]
  %v2361 = vld [vmem:[%s3 + $0x160] sm:$0xff]
  %v2362 = vld [vmem:[%s3 + $0x168] sm:$0xff]
  %v2363 = vld [vmem:[%s3 + $0x170] sm:$0xff]
  %v2364 = vld [vmem:[%s3 + $0x178] sm:$0xff]
  %v2365 = vld [vmem:[%s3 + $0x180] sm:$0xff]
  %v2366 = vld [vmem:[%s3 + $0x188] sm:$0xff]
  %v2367 = vld [vmem:[%s3 + $0x190] sm:$0xff]
  %v2368 = vld [vmem:[%s3 + $0x198] sm:$0xff]
  %v2369 = vld [vmem:[%s3 + $0x1a0] sm:$0xff]
  %v2370 = vld [vmem:[%s3 + $0x1a8] sm:$0xff]
  %v2371 = vld [vmem:[%s3 + $0x1b0] sm:$0xff]
  %v2372 = vld [vmem:[%s3 + $0x1b8] sm:$0xff]
  %v2373 = vld [vmem:[%s3 + $0x1c0] sm:$0xff]
  %v2374 = vld [vmem:[%s3 + $0x1c8] sm:$0xff]
  %v2375 = vld [vmem:[%s3 + $0x1d0] sm:$0xff]
  %v2376 = vld [vmem:[%s3 + $0x1d8] sm:$0xff]
  %v2377 = vld [vmem:[%s3 + $0x1e0] sm:$0xff]
  %v2378 = vld [vmem:[%s3 + $0x1e8] sm:$0xff]
  %v2379 = vld [vmem:[%s3 + $0x1f0] sm:$0xff]
  %v2380 = vld [vmem:[%s3 + $0x1f8] sm:$0xff]
  %v2381 = vld [vmem:[%s3 + $0x200] sm:$0xff]
  %v2382 = vld [vmem:[%s3 + $0x208] sm:$0xff]
  %v2383 = vld [vmem:[%s3 + $0x210] sm:$0xff]
  %v2384 = vld [vmem:[%s3 + $0x218] sm:$0xff]
  %v2385 = vld [vmem:[%s3 + $0x220] sm:$0xff]
  %v2386 = vld [vmem:[%s3 + $0x228] sm:$0xff]
  %v2387 = vld [vmem:[%s3 + $0x230] sm:$0xff]
  %v2388 = vld [vmem:[%s3 + $0x238] sm:$0xff]
  %v2389 = vld [vmem:[%s3 + $0x240] sm:$0xff]
  %v2390 = vld [vmem:[%s3 + $0x248] sm:$0x7f]
  %s2391 = scalar_lea.vmem %s3, 592
  %v2392 = vld [vmem:[%s2391] sm:$0xff]
  %v2393 = vld [vmem:[%s2391 + $0x8] sm:$0xff]
  %v2394 = vld [vmem:[%s2391 + $0x10] sm:$0xff]
  %v2395 = vld [vmem:[%s2391 + $0x18] sm:$0xff]
  %v2396 = vld [vmem:[%s2391 + $0x20] sm:$0xff]
  %v2397 = vld [vmem:[%s2391 + $0x28] sm:$0xff]
  %v2398 = vld [vmem:[%s2391 + $0x30] sm:$0xff]
  %v2399 = vld [vmem:[%s2391 + $0x38] sm:$0xff]
  %v2400 = vld [vmem:[%s2391 + $0x40] sm:$0xff]
  %v2401 = vld [vmem:[%s2391 + $0x48] sm:$0xff]
  %v2402 = vld [vmem:[%s2391 + $0x50] sm:$0xff]
  %v2403 = vld [vmem:[%s2391 + $0x58] sm:$0xff]
  %v2404 = vld [vmem:[%s2391 + $0x60] sm:$0xff]
  %v2405 = vld [vmem:[%s2391 + $0x68] sm:$0xff]
  %v2406 = vld [vmem:[%s2391 + $0x70] sm:$0xff]
  %v2407 = vld [vmem:[%s2391 + $0x78] sm:$0xff]
  %v2408 = vld [vmem:[%s2391 + $0x80] sm:$0xff]
  %v2409 = vld [vmem:[%s2391 + $0x88] sm:$0xff]
  %v2410 = vld [vmem:[%s2391 + $0x90] sm:$0xff]
  %v2411 = vld [vmem:[%s2391 + $0x98] sm:$0xff]
  %v2412 = vld [vmem:[%s2391 + $0xa0] sm:$0xff]
  %v2413 = vld [vmem:[%s2391 + $0xa8] sm:$0xff]
  %v2414 = vld [vmem:[%s2391 + $0xb0] sm:$0xff]
  %v2415 = vld [vmem:[%s2391 + $0xb8] sm:$0xff]
  %v2416 = vld [vmem:[%s2391 + $0xc0] sm:$0xff]
  %v2417 = vld [vmem:[%s2391 + $0xc8] sm:$0xff]
  %v2418 = vld [vmem:[%s2391 + $0xd0] sm:$0xff]
  %v2419 = vld [vmem:[%s2391 + $0xd8] sm:$0xff]
  %v2420 = vld [vmem:[%s2391 + $0xe0] sm:$0xff]
  %v2421 = vld [vmem:[%s2391 + $0xe8] sm:$0xff]
  %v2422 = vld [vmem:[%s2391 + $0xf0] sm:$0xff]
  %v2423 = vld [vmem:[%s2391 + $0xf8] sm:$0xff]
  %v2424 = vld [vmem:[%s2391 + $0x100] sm:$0xff]
  %v2425 = vld [vmem:[%s2391 + $0x108] sm:$0xff]
  %v2426 = vld [vmem:[%s2391 + $0x110] sm:$0xff]
  %v2427 = vld [vmem:[%s2391 + $0x118] sm:$0xff]
  %v2428 = vld [vmem:[%s2391 + $0x120] sm:$0xff]
  %v2429 = vld [vmem:[%s2391 + $0x128] sm:$0xff]
  %v2430 = vld [vmem:[%s2391 + $0x130] sm:$0xff]
  %v2431 = vld [vmem:[%s2391 + $0x138] sm:$0xff]
  %v2432 = vld [vmem:[%s2391 + $0x140] sm:$0xff]
  %v2433 = vld [vmem:[%s2391 + $0x148] sm:$0xff]
  %v2434 = vld [vmem:[%s2391 + $0x150] sm:$0xff]
  %v2435 = vld [vmem:[%s2391 + $0x158] sm:$0xff]
  %v2436 = vld [vmem:[%s2391 + $0x160] sm:$0xff]
  %v2437 = vld [vmem:[%s2391 + $0x168] sm:$0xff]
  %v2438 = vld [vmem:[%s2391 + $0x170] sm:$0xff]
  %v2439 = vld [vmem:[%s2391 + $0x178] sm:$0xff]
  %v2440 = vld [vmem:[%s2391 + $0x180] sm:$0xff]
  %v2441 = vld [vmem:[%s2391 + $0x188] sm:$0xff]
  %v2442 = vld [vmem:[%s2391 + $0x190] sm:$0xff]
  %v2443 = vld [vmem:[%s2391 + $0x198] sm:$0xff]
  %v2444 = vld [vmem:[%s2391 + $0x1a0] sm:$0xff]
  %v2445 = vld [vmem:[%s2391 + $0x1a8] sm:$0xff]
  %v2446 = vld [vmem:[%s2391 + $0x1b0] sm:$0xff]
  %v2447 = vld [vmem:[%s2391 + $0x1b8] sm:$0xff]
  %v2448 = vld [vmem:[%s2391 + $0x1c0] sm:$0xff]
  %v2449 = vld [vmem:[%s2391 + $0x1c8] sm:$0xff]
  %v2450 = vld [vmem:[%s2391 + $0x1d0] sm:$0xff]
  %v2451 = vld [vmem:[%s2391 + $0x1d8] sm:$0xff]
  %v2452 = vld [vmem:[%s2391 + $0x1e0] sm:$0xff]
  %v2453 = vld [vmem:[%s2391 + $0x1e8] sm:$0xff]
  %v2454 = vld [vmem:[%s2391 + $0x1f0] sm:$0xff]
  %v2455 = vld [vmem:[%s2391 + $0x1f8] sm:$0xff]
  %v2456 = vld [vmem:[%s2391 + $0x200] sm:$0xff]
  %v2457 = vld [vmem:[%s2391 + $0x208] sm:$0xff]
  %v2458 = vld [vmem:[%s2391 + $0x210] sm:$0xff]
  %v2459 = vld [vmem:[%s2391 + $0x218] sm:$0xff]
  %v2460 = vld [vmem:[%s2391 + $0x220] sm:$0xff]
  %v2461 = vld [vmem:[%s2391 + $0x228] sm:$0xff]
  %v2462 = vld [vmem:[%s2391 + $0x230] sm:$0xff]
  %v2463 = vld [vmem:[%s2391 + $0x238] sm:$0xff]
  %v2464 = vld [vmem:[%s2391 + $0x240] sm:$0xff]
  %v2465 = vld [vmem:[%s2391 + $0x248] sm:$0x7f]
  %v2471 = vrot.slane %v2312, 1
  %v2472 = vrot.slane %v2313, 1
  %v2473 = vrot.slane %v2314, 1
  %v2474 = vrot.slane %v2315, 1
  %v2475 = vrot.slane %v2316, 1
  %vm2480 = vcmask 646144
  %v2481 = vsel %vm2480, %v2475, 0
  %vm2483 = vcmask 1046528
  %v2485 = vsel %vm2483, %v2465, 0
  %2487 = vmatprep.subr.mxu0 0.0
  %2488 = vmatpush1.msra.mxu0 %v2392
  %2489 = vmatprep.subr.mxu0 0.0
  %2490 = vmatpush1.msra.mxu0 %v2393
  %2491 = vmatprep.subr.mxu0 0.0
  %2492 = vmatpush1.msra.mxu0 %v2394
  %2493 = vmatprep.subr.mxu0 0.0
  %2494 = vmatpush1.msra.mxu0 %v2395
  %2495 = vmatprep.subr.mxu0 0.0
  %2496 = vmatpush1.msra.mxu0 %v2396
  %2497 = vmatprep.subr.mxu0 0.0
  %2498 = vmatpush1.msra.mxu0 %v2397
  %2499 = vmatprep.subr.mxu0 0.0
  %2500 = vmatpush1.msra.mxu0 %v2398
  %2501 = vmatprep.subr.mxu0 0.0
  %2502 = vmatpush1.msra.mxu0 %v2399
  %2503 = vmatprep.subr.mxu0 0.0
  %2504 = vmatpush1.msra.mxu0 %v2400
  %2505 = vmatprep.subr.mxu0 0.0
  %2506 = vmatpush1.msra.mxu0 %v2401
  %2507 = vmatprep.subr.mxu0 0.0
  %2508 = vmatpush1.msra.mxu0 %v2402
  %2509 = vmatprep.subr.mxu0 0.0
  %2510 = vmatpush1.msra.mxu0 %v2403
  %2511 = vmatprep.subr.mxu0 0.0
  %2512 = vmatpush1.msra.mxu0 %v2404
  %2513 = vmatprep.subr.mxu0 0.0
  %2514 = vmatpush1.msra.mxu0 %v2405
  %2515 = vmatprep.subr.mxu0 0.0
  %2516 = vmatpush1.msra.mxu0 %v2406
  %2517 = vmatprep.subr.mxu0 0.0
  %2518 = vmatpush1.msra.mxu0 %v2407
  %2519 = vmatprep.subr.mxu0 0.0
  %2520 = vmatpush1.msra.mxu0 %v2408
  %2521 = vmatprep.subr.mxu0 0.0
  %2522 = vmatpush1.msra.mxu0 %v2409
  %2523 = vmatprep.subr.mxu0 0.0
  %2524 = vmatpush1.msra.mxu0 %v2410
  %2525 = vmatprep.subr.mxu0 0.0
  %2526 = vmatpush1.msra.mxu0 %v2411
  %2527 = vmatprep.subr.mxu0 0.0
  %2528 = vmatpush1.msra.mxu0 %v2412
  %2529 = vmatprep.subr.mxu0 0.0
  %2530 = vmatpush1.msra.mxu0 %v2413
  %2531 = vmatprep.subr.mxu0 0.0
  %2532 = vmatpush1.msra.mxu0 %v2414
  %2533 = vmatprep.subr.mxu0 0.0
  %2534 = vmatpush1.msra.mxu0 %v2415
  %2535 = vmatprep.subr.mxu0 0.0
  %2536 = vmatpush1.msra.mxu0 %v2416
  %2537 = vmatprep.subr.mxu0 0.0
  %2538 = vmatpush1.msra.mxu0 %v2417
  %2539 = vmatprep.subr.mxu0 0.0
  %2540 = vmatpush1.msra.mxu0 %v2418
  %2541 = vmatprep.subr.mxu0 0.0
  %2542 = vmatpush1.msra.mxu0 %v2419
  %2543 = vmatprep.subr.mxu0 0.0
  %2544 = vmatpush1.msra.mxu0 %v2420
  %2545 = vmatprep.subr.mxu0 0.0
  %2546 = vmatpush1.msra.mxu0 %v2421
  %2547 = vmatprep.subr.mxu0 0.0
  %2548 = vmatpush1.msra.mxu0 %v2422
  %2549 = vmatprep.subr.mxu0 0.0
  %2550 = vmatpush1.msra.mxu0 %v2423
  %2551 = vmatprep.mubr.f32.mxu0 %v2472
  %2552 = vmatmul.mubr.f32.gmra.mrb[0].mxu0 %v2471
  %v2553 = vpop.f32.mrb[0].mxu0
  %v2554 = vadd.f32 0.0, %v2553
  %v2555 = vpop.f32.mrb[0].mxu0
  %2556 = vdwg.mxu0
  %2557 = vmatprep.subr.mxu0 0.0
  %2558 = vmatpush1.msra.mxu0 %v2424
  %2559 = vmatprep.subr.mxu0 0.0
  %2560 = vmatpush1.msra.mxu0 %v2425
  %2561 = vmatprep.subr.mxu0 0.0
  %2562 = vmatpush1.msra.mxu0 %v2426
  %2563 = vmatprep.subr.mxu0 0.0
  %2564 = vmatpush1.msra.mxu0 %v2427
  %2565 = vmatprep.subr.mxu0 0.0
  %2566 = vmatpush1.msra.mxu0 %v2428
  %2567 = vmatprep.subr.mxu0 0.0
  %2568 = vmatpush1.msra.mxu0 %v2429
  %2569 = vmatprep.subr.mxu0 0.0
  %2570 = vmatpush1.msra.mxu0 %v2430
  %2571 = vmatprep.subr.mxu0 0.0
  %2572 = vmatpush1.msra.mxu0 %v2431
  %2573 = vmatprep.subr.mxu0 0.0
  %2574 = vmatpush1.msra.mxu0 %v2432
  %2575 = vmatprep.subr.mxu0 0.0
  %2576 = vmatpush1.msra.mxu0 %v2433
  %2577 = vmatprep.subr.mxu0 0.0
  %2578 = vmatpush1.msra.mxu0 %v2434
  %2579 = vmatprep.subr.mxu0 0.0
  %2580 = vmatpush1.msra.mxu0 %v2435
  %2581 = vmatprep.subr.mxu0 0.0
  %2582 = vmatpush1.msra.mxu0 %v2436
  %2583 = vmatprep.subr.mxu0 0.0
  %2584 = vmatpush1.msra.mxu0 %v2437
  %2585 = vmatprep.subr.mxu0 0.0
  %2586 = vmatpush1.msra.mxu0 %v2438
  %2587 = vmatprep.subr.mxu0 0.0
  %2588 = vmatpush1.msra.mxu0 %v2439
  %2589 = vmatprep.subr.mxu0 0.0
  %2590 = vmatpush1.msra.mxu0 %v2440
  %2591 = vmatprep.subr.mxu0 0.0
  %2592 = vmatpush1.msra.mxu0 %v2441
  %2593 = vmatprep.subr.mxu0 0.0
  %2594 = vmatpush1.msra.mxu0 %v2442
  %2595 = vmatprep.subr.mxu0 0.0
  %2596 = vmatpush1.msra.mxu0 %v2443
  %2597 = vmatprep.subr.mxu0 0.0
  %2598 = vmatpush1.msra.mxu0 %v2444
  %2599 = vmatprep.subr.mxu0 0.0
  %2600 = vmatpush1.msra.mxu0 %v2445
  %2601 = vmatprep.subr.mxu0 0.0
  %2602 = vmatpush1.msra.mxu0 %v2446
  %2603 = vmatprep.subr.mxu0 0.0
  %2604 = vmatpush1.msra.mxu0 %v2447
  %2605 = vmatprep.subr.mxu0 0.0
  %2606 = vmatpush1.msra.mxu0 %v2448
  %2607 = vmatprep.subr.mxu0 0.0
  %2608 = vmatpush1.msra.mxu0 %v2449
  %2609 = vmatprep.subr.mxu0 0.0
  %2610 = vmatpush1.msra.mxu0 %v2450
  %2611 = vmatprep.subr.mxu0 0.0
  %2612 = vmatpush1.msra.mxu0 %v2451
  %2613 = vmatprep.subr.mxu0 0.0
  %2614 = vmatpush1.msra.mxu0 %v2452
  %2615 = vmatprep.subr.mxu0 0.0
  %2616 = vmatpush1.msra.mxu0 %v2453
  %2617 = vmatprep.subr.mxu0 0.0
  %2618 = vmatpush1.msra.mxu0 %v2454
  %2619 = vmatprep.subr.mxu0 0.0
  %2620 = vmatpush1.msra.mxu0 %v2455
  %2621 = vmatprep.mubr.f32.mxu0 %v2474
  %2622 = vmatmul.mubr.f32.gmra.mrb[0].mxu0 %v2473
  %v2623 = vpop.f32.mrb[0].mxu0
  %v2624 = vadd.f32 %v2554, %v2623
  %v2625 = vpop.f32.mrb[0].mxu0
  %2626 = vdwg.mxu0
  %2627 = vmatprep.subr.mxu0 0.0
  %2628 = vmatpush1.msra.mxu0 %v2456
  %2629 = vmatprep.subr.mxu0 0.0
  %2630 = vmatpush1.msra.mxu0 %v2457
  %2631 = vmatprep.subr.mxu0 0.0
  %2632 = vmatpush1.msra.mxu0 %v2458
  %2633 = vmatprep.subr.mxu0 0.0
  %2634 = vmatpush1.msra.mxu0 %v2459
  %2635 = vmatprep.subr.mxu0 0.0
  %2636 = vmatpush1.msra.mxu0 %v2460
  %2637 = vmatprep.subr.mxu0 0.0
  %2638 = vmatpush1.msra.mxu0 %v2461
  %2639 = vmatprep.subr.mxu0 0.0
  %2640 = vmatpush1.msra.mxu0 %v2462
  %2641 = vmatprep.subr.mxu0 0.0
  %2642 = vmatpush1.msra.mxu0 %v2463
  %2643 = vmatprep.subr.mxu0 0.0
  %2644 = vmatpush1.msra.mxu0 %v2464
  %2645 = vmatprep.subr.mxu0 0.0
  %2646 = vmatpush1.msra.mxu0 %v2485
  %2647 = vmatprep.subr.mxu0 0.0
  %2648 = vmatpush1.msra.mxu0 0.0
  %2649 = vmatprep.subr.mxu0 0.0
  %2650 = vmatpush1.msra.mxu0 0.0
  %2651 = vmatprep.subr.mxu0 0.0
  %2652 = vmatpush1.msra.mxu0 0.0
  %2653 = vmatprep.subr.mxu0 0.0
  %2654 = vmatpush1.msra.mxu0 0.0
  %2655 = vmatprep.subr.mxu0 0.0
  %2656 = vmatpush1.msra.mxu0 0.0
  %2657 = vmatprep.subr.mxu0 0.0
  %2658 = vmatpush1.msra.mxu0 0.0
  %2659 = vmatprep.subr.mxu0 0.0
  %2660 = vmatpush1.msra.mxu0 0.0
  %2661 = vmatprep.subr.mxu0 0.0
  %2662 = vmatpush1.msra.mxu0 0.0
  %2663 = vmatprep.subr.mxu0 0.0
  %2664 = vmatpush1.msra.mxu0 0.0
  %2665 = vmatprep.subr.mxu0 0.0
  %2666 = vmatpush1.msra.mxu0 0.0
  %2667 = vmatprep.subr.mxu0 0.0
  %2668 = vmatpush1.msra.mxu0 0.0
  %2669 = vmatprep.subr.mxu0 0.0
  %2670 = vmatpush1.msra.mxu0 0.0
  %2671 = vmatprep.subr.mxu0 0.0
  %2672 = vmatpush1.msra.mxu0 0.0
  %2673 = vmatprep.subr.mxu0 0.0
  %2674 = vmatpush1.msra.mxu0 0.0
  %2675 = vmatprep.subr.mxu0 0.0
  %2676 = vmatpush1.msra.mxu0 0.0
  %2677 = vmatprep.subr.mxu0 0.0
  %2678 = vmatpush1.msra.mxu0 0.0
  %2679 = vmatprep.subr.mxu0 0.0
  %2680 = vmatpush1.msra.mxu0 0.0
  %2681 = vmatprep.subr.mxu0 0.0
  %2682 = vmatpush1.msra.mxu0 0.0
  %2683 = vmatprep.subr.mxu0 0.0
  %2684 = vmatpush1.msra.mxu0 0.0
  %2685 = vmatprep.subr.mxu0 0.0
  %2686 = vmatpush1.msra.mxu0 0.0
  %2687 = vmatprep.subr.mxu0 0.0
  %2688 = vmatpush1.msra.mxu0 0.0
  %2689 = vmatprep.subr.mxu0 0.0
  %2690 = vmatpush1.msra.mxu0 0.0
  %2691 = vmatprep.mubr.f32.mxu0 0.0
  %2692 = vmatmul.mubr.f32.gmra.mrb[0].mxu0 %v2481
  %v2693 = vpop.f32.mrb[0].mxu0
  %v2694 = vadd.f32 %v2624, %v2693
  %v2695 = vpop.f32.mrb[0].mxu0
  %2696 = vdwg.mxu0
  %v2697 = vsel %vm2480, %v2316, 0
  %v2700 = vsel %vm2483, %v2390, 0
  %2702 = vmatprep.subr.mxu0 0.0
  %2703 = vmatpush1.msra.mxu0 %v2317
  %2704 = vmatprep.subr.mxu0 0.0
  %2705 = vmatpush1.msra.mxu0 %v2318
  %2706 = vmatprep.subr.mxu0 0.0
  %2707 = vmatpush1.msra.mxu0 %v2319
  %2708 = vmatprep.subr.mxu0 0.0
  %2709 = vmatpush1.msra.mxu0 %v2320
  %2710 = vmatprep.subr.mxu0 0.0
  %2711 = vmatpush1.msra.mxu0 %v2321
  %2712 = vmatprep.subr.mxu0 0.0
  %2713 = vmatpush1.msra.mxu0 %v2322
  %2714 = vmatprep.subr.mxu0 0.0
  %2715 = vmatpush1.msra.mxu0 %v2323
  %2716 = vmatprep.subr.mxu0 0.0
  %2717 = vmatpush1.msra.mxu0 %v2324
  %2718 = vmatprep.subr.mxu0 0.0
  %2719 = vmatpush1.msra.mxu0 %v2325
  %2720 = vmatprep.subr.mxu0 0.0
  %2721 = vmatpush1.msra.mxu0 %v2326
  %2722 = vmatprep.subr.mxu0 0.0
  %2723 = vmatpush1.msra.mxu0 %v2327
  %2724 = vmatprep.subr.mxu0 0.0
  %2725 = vmatpush1.msra.mxu0 %v2328
  %2726 = vmatprep.subr.mxu0 0.0
  %2727 = vmatpush1.msra.mxu0 %v2329
  %2728 = vmatprep.subr.mxu0 0.0
  %2729 = vmatpush1.msra.mxu0 %v2330
  %2730 = vmatprep.subr.mxu0 0.0
  %2731 = vmatpush1.msra.mxu0 %v2331
  %2732 = vmatprep.subr.mxu0 0.0
  %2733 = vmatpush1.msra.mxu0 %v2332
  %2734 = vmatprep.subr.mxu0 0.0
  %2735 = vmatpush1.msra.mxu0 %v2333
  %2736 = vmatprep.subr.mxu0 0.0
  %2737 = vmatpush1.msra.mxu0 %v2334
  %2738 = vmatprep.subr.mxu0 0.0
  %2739 = vmatpush1.msra.mxu0 %v2335
  %2740 = vmatprep.subr.mxu0 0.0
  %2741 = vmatpush1.msra.mxu0 %v2336
  %2742 = vmatprep.subr.mxu0 0.0
  %2743 = vmatpush1.msra.mxu0 %v2337
  %2744 = vmatprep.subr.mxu0 0.0
  %2745 = vmatpush1.msra.mxu0 %v2338
  %2746 = vmatprep.subr.mxu0 0.0
  %2747 = vmatpush1.msra.mxu0 %v2339
  %2748 = vmatprep.subr.mxu0 0.0
  %2749 = vmatpush1.msra.mxu0 %v2340
  %2750 = vmatprep.subr.mxu0 0.0
  %2751 = vmatpush1.msra.mxu0 %v2341
  %2752 = vmatprep.subr.mxu0 0.0
  %2753 = vmatpush1.msra.mxu0 %v2342
  %2754 = vmatprep.subr.mxu0 0.0
  %2755 = vmatpush1.msra.mxu0 %v2343
  %2756 = vmatprep.subr.mxu0 0.0
  %2757 = vmatpush1.msra.mxu0 %v2344
  %2758 = vmatprep.subr.mxu0 0.0
  %2759 = vmatpush1.msra.mxu0 %v2345
  %2760 = vmatprep.subr.mxu0 0.0
  %2761 = vmatpush1.msra.mxu0 %v2346
  %2762 = vmatprep.subr.mxu0 0.0
  %2763 = vmatpush1.msra.mxu0 %v2347
  %2764 = vmatprep.subr.mxu0 0.0
  %2765 = vmatpush1.msra.mxu0 %v2348
  %2766 = vmatprep.mubr.f32.mxu0 %v2313
  %2767 = vmatmul.mubr.f32.gmra.mrb[0].mxu0 %v2312
  %v2768 = vpop.f32.mrb[0].mxu0
  %v2769 = vadd.f32 %v2694, %v2768
  %v2770 = vpop.f32.mrb[0].mxu0
  %2771 = vdwg.mxu0
  %2772 = vmatprep.subr.mxu0 0.0
  %2773 = vmatpush1.msra.mxu0 %v2349
  %2774 = vmatprep.subr.mxu0 0.0
  %2775 = vmatpush1.msra.mxu0 %v2350
  %2776 = vmatprep.subr.mxu0 0.0
  %2777 = vmatpush1.msra.mxu0 %v2351
  %2778 = vmatprep.subr.mxu0 0.0
  %2779 = vmatpush1.msra.mxu0 %v2352
  %2780 = vmatprep.subr.mxu0 0.0
  %2781 = vmatpush1.msra.mxu0 %v2353
  %2782 = vmatprep.subr.mxu0 0.0
  %2783 = vmatpush1.msra.mxu0 %v2354
  %2784 = vmatprep.subr.mxu0 0.0
  %2785 = vmatpush1.msra.mxu0 %v2355
  %2786 = vmatprep.subr.mxu0 0.0
  %2787 = vmatpush1.msra.mxu0 %v2356
  %2788 = vmatprep.subr.mxu0 0.0
  %2789 = vmatpush1.msra.mxu0 %v2357
  %2790 = vmatprep.subr.mxu0 0.0
  %2791 = vmatpush1.msra.mxu0 %v2358
  %2792 = vmatprep.subr.mxu0 0.0
  %2793 = vmatpush1.msra.mxu0 %v2359
  %2794 = vmatprep.subr.mxu0 0.0
  %2795 = vmatpush1.msra.mxu0 %v2360
  %2796 = vmatprep.subr.mxu0 0.0
  %2797 = vmatpush1.msra.mxu0 %v2361
  %2798 = vmatprep.subr.mxu0 0.0
  %2799 = vmatpush1.msra.mxu0 %v2362
  %2800 = vmatprep.subr.mxu0 0.0
  %2801 = vmatpush1.msra.mxu0 %v2363
  %2802 = vmatprep.subr.mxu0 0.0
  %2803 = vmatpush1.msra.mxu0 %v2364
  %2804 = vmatprep.subr.mxu0 0.0
  %2805 = vmatpush1.msra.mxu0 %v2365
  %2806 = vmatprep.subr.mxu0 0.0
  %2807 = vmatpush1.msra.mxu0 %v2366
  %2808 = vmatprep.subr.mxu0 0.0
  %2809 = vmatpush1.msra.mxu0 %v2367
  %2810 = vmatprep.subr.mxu0 0.0
  %2811 = vmatpush1.msra.mxu0 %v2368
  %2812 = vmatprep.subr.mxu0 0.0
  %2813 = vmatpush1.msra.mxu0 %v2369
  %2814 = vmatprep.subr.mxu0 0.0
  %2815 = vmatpush1.msra.mxu0 %v2370
  %2816 = vmatprep.subr.mxu0 0.0
  %2817 = vmatpush1.msra.mxu0 %v2371
  %2818 = vmatprep.subr.mxu0 0.0
  %2819 = vmatpush1.msra.mxu0 %v2372
  %2820 = vmatprep.subr.mxu0 0.0
  %2821 = vmatpush1.msra.mxu0 %v2373
  %2822 = vmatprep.subr.mxu0 0.0
  %2823 = vmatpush1.msra.mxu0 %v2374
  %2824 = vmatprep.subr.mxu0 0.0
  %2825 = vmatpush1.msra.mxu0 %v2375
  %2826 = vmatprep.subr.mxu0 0.0
  %2827 = vmatpush1.msra.mxu0 %v2376
  %2828 = vmatprep.subr.mxu0 0.0
  %2829 = vmatpush1.msra.mxu0 %v2377
  %2830 = vmatprep.subr.mxu0 0.0
  %2831 = vmatpush1.msra.mxu0 %v2378
  %2832 = vmatprep.subr.mxu0 0.0
  %2833 = vmatpush1.msra.mxu0 %v2379
  %2834 = vmatprep.subr.mxu0 0.0
  %2835 = vmatpush1.msra.mxu0 %v2380
  %2836 = vmatprep.mubr.f32.mxu0 %v2315
  %2837 = vmatmul.mubr.f32.gmra.mrb[0].mxu0 %v2314
  %v2838 = vpop.f32.mrb[0].mxu0
  %v2839 = vadd.f32 %v2769, %v2838
  %v2840 = vpop.f32.mrb[0].mxu0
  %2841 = vdwg.mxu0
  %2842 = vmatprep.subr.mxu0 0.0
  %2843 = vmatpush1.msra.mxu0 %v2381
  %2844 = vmatprep.subr.mxu0 0.0
  %2845 = vmatpush1.msra.mxu0 %v2382
  %2846 = vmatprep.subr.mxu0 0.0
  %2847 = vmatpush1.msra.mxu0 %v2383
  %2848 = vmatprep.subr.mxu0 0.0
  %2849 = vmatpush1.msra.mxu0 %v2384
  %2850 = vmatprep.subr.mxu0 0.0
  %2851 = vmatpush1.msra.mxu0 %v2385
  %2852 = vmatprep.subr.mxu0 0.0
  %2853 = vmatpush1.msra.mxu0 %v2386
  %2854 = vmatprep.subr.mxu0 0.0
  %2855 = vmatpush1.msra.mxu0 %v2387
  %2856 = vmatprep.subr.mxu0 0.0
  %2857 = vmatpush1.msra.mxu0 %v2388
  %2858 = vmatprep.subr.mxu0 0.0
  %2859 = vmatpush1.msra.mxu0 %v2389
  %2860 = vmatprep.subr.mxu0 0.0
  %2861 = vmatpush1.msra.mxu0 %v2700
  %2862 = vmatprep.subr.mxu0 0.0
  %2863 = vmatpush1.msra.mxu0 0.0
  %2864 = vmatprep.subr.mxu0 0.0
  %2865 = vmatpush1.msra.mxu0 0.0
  %2866 = vmatprep.subr.mxu0 0.0
  %2867 = vmatpush1.msra.mxu0 0.0
  %2868 = vmatprep.subr.mxu0 0.0
  %2869 = vmatpush1.msra.mxu0 0.0
  %2870 = vmatprep.subr.mxu0 0.0
  %2871 = vmatpush1.msra.mxu0 0.0
  %2872 = vmatprep.subr.mxu0 0.0
  %2873 = vmatpush1.msra.mxu0 0.0
  %2874 = vmatprep.subr.mxu0 0.0
  %2875 = vmatpush1.msra.mxu0 0.0
  %2876 = vmatprep.subr.mxu0 0.0
  %2877 = vmatpush1.msra.mxu0 0.0
  %2878 = vmatprep.subr.mxu0 0.0
  %2879 = vmatpush1.msra.mxu0 0.0
  %2880 = vmatprep.subr.mxu0 0.0
  %2881 = vmatpush1.msra.mxu0 0.0
  %2882 = vmatprep.subr.mxu0 0.0
  %2883 = vmatpush1.msra.mxu0 0.0
  %2884 = vmatprep.subr.mxu0 0.0
  %2885 = vmatpush1.msra.mxu0 0.0
  %2886 = vmatprep.subr.mxu0 0.0
  %2887 = vmatpush1.msra.mxu0 0.0
  %2888 = vmatprep.subr.mxu0 0.0
  %2889 = vmatpush1.msra.mxu0 0.0
  %2890 = vmatprep.subr.mxu0 0.0
  %2891 = vmatpush1.msra.mxu0 0.0
  %2892 = vmatprep.subr.mxu0 0.0
  %2893 = vmatpush1.msra.mxu0 0.0
  %2894 = vmatprep.subr.mxu0 0.0
  %2895 = vmatpush1.msra.mxu0 0.0
  %2896 = vmatprep.subr.mxu0 0.0
  %2897 = vmatpush1.msra.mxu0 0.0
  %2898 = vmatprep.subr.mxu0 0.0
  %2899 = vmatpush1.msra.mxu0 0.0
  %2900 = vmatprep.subr.mxu0 0.0
  %2901 = vmatpush1.msra.mxu0 0.0
  %2902 = vmatprep.subr.mxu0 0.0
  %2903 = vmatpush1.msra.mxu0 0.0
  %2904 = vmatprep.subr.mxu0 0.0
  %2905 = vmatpush1.msra.mxu0 0.0
  %2906 = vmatprep.mubr.f32.mxu0 0.0
  %2907 = vmatmul.mubr.f32.gmra.mrb[0].mxu0 %v2697
  %v2908 = vpop.f32.mrb[0].mxu0
  %v2909 = vadd.f32 %v2839, %v2908
  %v2910 = vpop.f32.mrb[0].mxu0
  %2911 = vdwg.mxu0
  %s2912 = scalar_lea.vmem %s3, 1184
  %v2913 = vld [vmem:[%s2912] sm:$0xff]
  %v2914 = vld [vmem:[%s2912 + $0x8] sm:$0xff]
  %v2915 = vld [vmem:[%s2912 + $0x10] sm:$0xff]
  %v2916 = vld [vmem:[%s2912 + $0x18] sm:$0xff]
  %v2917 = vld [vmem:[%s2912 + $0x20] sm:$0xff]
  %v2918 = vld [vmem:[%s2912 + $0x28] sm:$0xff]
  %v2919 = vld [vmem:[%s2912 + $0x30] sm:$0xff]
  %v2920 = vld [vmem:[%s2912 + $0x38] sm:$0xff]
  %v2921 = vld [vmem:[%s2912 + $0x40] sm:$0xff]
  %v2922 = vld [vmem:[%s2912 + $0x48] sm:$0xff]
  %v2923 = vld [vmem:[%s2912 + $0x50] sm:$0xff]
  %v2924 = vld [vmem:[%s2912 + $0x58] sm:$0xff]
  %v2925 = vld [vmem:[%s2912 + $0x60] sm:$0xff]
  %v2926 = vld [vmem:[%s2912 + $0x68] sm:$0xff]
  %v2927 = vld [vmem:[%s2912 + $0x70] sm:$0xff]
  %v2928 = vld [vmem:[%s2912 + $0x78] sm:$0xff]
  %v2929 = vld [vmem:[%s2912 + $0x80] sm:$0xff]
  %v2930 = vld [vmem:[%s2912 + $0x88] sm:$0xff]
  %v2931 = vld [vmem:[%s2912 + $0x90] sm:$0xff]
  %v2932 = vld [vmem:[%s2912 + $0x98] sm:$0xff]
  %v2933 = vld [vmem:[%s2912 + $0xa0] sm:$0xff]
  %v2934 = vld [vmem:[%s2912 + $0xa8] sm:$0xff]
  %v2935 = vld [vmem:[%s2912 + $0xb0] sm:$0xff]
  %v2936 = vld [vmem:[%s2912 + $0xb8] sm:$0xff]
  %v2937 = vld [vmem:[%s2912 + $0xc0] sm:$0xff]
  %v2938 = vld [vmem:[%s2912 + $0xc8] sm:$0xff]
  %v2939 = vld [vmem:[%s2912 + $0xd0] sm:$0xff]
  %v2940 = vld [vmem:[%s2912 + $0xd8] sm:$0xff]
  %v2941 = vld [vmem:[%s2912 + $0xe0] sm:$0xff]
  %v2942 = vld [vmem:[%s2912 + $0xe8] sm:$0xff]
  %v2943 = vld [vmem:[%s2912 + $0xf0] sm:$0xff]
  %v2944 = vld [vmem:[%s2912 + $0xf8] sm:$0xff]
  %v2945 = vld [vmem:[%s2912 + $0x100] sm:$0xff]
  %v2946 = vld [vmem:[%s2912 + $0x108] sm:$0xff]
  %v2947 = vld [vmem:[%s2912 + $0x110] sm:$0xff]
  %v2948 = vld [vmem:[%s2912 + $0x118] sm:$0xff]
  %v2949 = vld [vmem:[%s2912 + $0x120] sm:$0xff]
  %v2950 = vld [vmem:[%s2912 + $0x128] sm:$0xff]
  %v2951 = vld [vmem:[%s2912 + $0x130] sm:$0xff]
  %v2952 = vld [vmem:[%s2912 + $0x138] sm:$0xff]
  %v2953 = vld [vmem:[%s2912 + $0x140] sm:$0xff]
  %v2954 = vld [vmem:[%s2912 + $0x148] sm:$0xff]
  %v2955 = vld [vmem:[%s2912 + $0x150] sm:$0xff]
  %v2956 = vld [vmem:[%s2912 + $0x158] sm:$0xff]
  %v2957 = vld [vmem:[%s2912 + $0x160] sm:$0xff]
  %v2958 = vld [vmem:[%s2912 + $0x168] sm:$0xff]
  %v2959 = vld [vmem:[%s2912 + $0x170] sm:$0xff]
  %v2960 = vld [vmem:[%s2912 + $0x178] sm:$0xff]
  %v2961 = vld [vmem:[%s2912 + $0x180] sm:$0xff]
  %v2962 = vld [vmem:[%s2912 + $0x188] sm:$0xff]
  %v2963 = vld [vmem:[%s2912 + $0x190] sm:$0xff]
  %v2964 = vld [vmem:[%s2912 + $0x198] sm:$0xff]
  %v2965 = vld [vmem:[%s2912 + $0x1a0] sm:$0xff]
  %v2966 = vld [vmem:[%s2912 + $0x1a8] sm:$0xff]
  %v2967 = vld [vmem:[%s2912 + $0x1b0] sm:$0xff]
  %v2968 = vld [vmem:[%s2912 + $0x1b8] sm:$0xff]
  %v2969 = vld [vmem:[%s2912 + $0x1c0] sm:$0xff]
  %v2970 = vld [vmem:[%s2912 + $0x1c8] sm:$0xff]
  %v2971 = vld [vmem:[%s2912 + $0x1d0] sm:$0xff]
  %v2972 = vld [vmem:[%s2912 + $0x1d8] sm:$0xff]
  %v2973 = vld [vmem:[%s2912 + $0x1e0] sm:$0xff]
  %v2974 = vld [vmem:[%s2912 + $0x1e8] sm:$0xff]
  %v2975 = vld [vmem:[%s2912 + $0x1f0] sm:$0xff]
  %v2976 = vld [vmem:[%s2912 + $0x1f8] sm:$0xff]
  %v2977 = vld [vmem:[%s2912 + $0x200] sm:$0xff]
  %v2978 = vld [vmem:[%s2912 + $0x208] sm:$0xff]
  %v2979 = vld [vmem:[%s2912 + $0x210] sm:$0xff]
  %v2980 = vld [vmem:[%s2912 + $0x218] sm:$0xff]
  %v2981 = vld [vmem:[%s2912 + $0x220] sm:$0xff]
  %v2982 = vld [vmem:[%s2912 + $0x228] sm:$0xff]
  %v2983 = vld [vmem:[%s2912 + $0x230] sm:$0xff]
  %v2984 = vld [vmem:[%s2912 + $0x238] sm:$0xff]
  %v2985 = vld [vmem:[%s2912 + $0x240] sm:$0xff]
  %v2986 = vld [vmem:[%s2912 + $0x248] sm:$0x7f]
  %v2987 = vrot.slane %v2312, 2
  %v2988 = vrot.slane %v2313, 2
  %v2989 = vrot.slane %v2314, 2
  %v2990 = vrot.slane %v2315, 2
  %v2991 = vrot.slane %v2316, 2
  %v2996 = vsel %vm2480, %v2991, 0
  %v2999 = vsel %vm2483, %v2986, 0
  %3001 = vmatprep.subr.mxu0 0.0
  %3002 = vmatpush1.msra.mxu0 %v2913
  %3003 = vmatprep.subr.mxu0 0.0
  %3004 = vmatpush1.msra.mxu0 %v2914
  %3005 = vmatprep.subr.mxu0 0.0
  %3006 = vmatpush1.msra.mxu0 %v2915
  %3007 = vmatprep.subr.mxu0 0.0
  %3008 = vmatpush1.msra.mxu0 %v2916
  %3009 = vmatprep.subr.mxu0 0.0
  %3010 = vmatpush1.msra.mxu0 %v2917
  %3011 = vmatprep.subr.mxu0 0.0
  %3012 = vmatpush1.msra.mxu0 %v2918
  %3013 = vmatprep.subr.mxu0 0.0
  %3014 = vmatpush1.msra.mxu0 %v2919
  %3015 = vmatprep.subr.mxu0 0.0
  %3016 = vmatpush1.msra.mxu0 %v2920
  %3017 = vmatprep.subr.mxu0 0.0
  %3018 = vmatpush1.msra.mxu0 %v2921
  %3019 = vmatprep.subr.mxu0 0.0
  %3020 = vmatpush1.msra.mxu0 %v2922
  %3021 = vmatprep.subr.mxu0 0.0
  %3022 = vmatpush1.msra.mxu0 %v2923
  %3023 = vmatprep.subr.mxu0 0.0
  %3024 = vmatpush1.msra.mxu0 %v2924
  %3025 = vmatprep.subr.mxu0 0.0
  %3026 = vmatpush1.msra.mxu0 %v2925
  %3027 = vmatprep.subr.mxu0 0.0
  %3028 = vmatpush1.msra.mxu0 %v2926
  %3029 = vmatprep.subr.mxu0 0.0
  %3030 = vmatpush1.msra.mxu0 %v2927
  %3031 = vmatprep.subr.mxu0 0.0
  %3032 = vmatpush1.msra.mxu0 %v2928
  %3033 = vmatprep.subr.mxu0 0.0
  %3034 = vmatpush1.msra.mxu0 %v2929
  %3035 = vmatprep.subr.mxu0 0.0
  %3036 = vmatpush1.msra.mxu0 %v2930
  %3037 = vmatprep.subr.mxu0 0.0
  %3038 = vmatpush1.msra.mxu0 %v2931
  %3039 = vmatprep.subr.mxu0 0.0
  %3040 = vmatpush1.msra.mxu0 %v2932
  %3041 = vmatprep.subr.mxu0 0.0
  %3042 = vmatpush1.msra.mxu0 %v2933
  %3043 = vmatprep.subr.mxu0 0.0
  %3044 = vmatpush1.msra.mxu0 %v2934
  %3045 = vmatprep.subr.mxu0 0.0
  %3046 = vmatpush1.msra.mxu0 %v2935
  %3047 = vmatprep.subr.mxu0 0.0
  %3048 = vmatpush1.msra.mxu0 %v2936
  %3049 = vmatprep.subr.mxu0 0.0
  %3050 = vmatpush1.msra.mxu0 %v2937
  %3051 = vmatprep.subr.mxu0 0.0
  %3052 = vmatpush1.msra.mxu0 %v2938
  %3053 = vmatprep.subr.mxu0 0.0
  %3054 = vmatpush1.msra.mxu0 %v2939
  %3055 = vmatprep.subr.mxu0 0.0
  %3056 = vmatpush1.msra.mxu0 %v2940
  %3057 = vmatprep.subr.mxu0 0.0
  %3058 = vmatpush1.msra.mxu0 %v2941
  %3059 = vmatprep.subr.mxu0 0.0
  %3060 = vmatpush1.msra.mxu0 %v2942
  %3061 = vmatprep.subr.mxu0 0.0
  %3062 = vmatpush1.msra.mxu0 %v2943
  %3063 = vmatprep.subr.mxu0 0.0
  %3064 = vmatpush1.msra.mxu0 %v2944
  %3065 = vmatprep.mubr.f32.mxu0 %v2988
  %3066 = vmatmul.mubr.f32.gmra.mrb[0].mxu0 %v2987
  %v3067 = vpop.f32.mrb[0].mxu0
  %v3068 = vadd.f32 0.0, %v3067
  %v3069 = vpop.f32.mrb[0].mxu0
  %3070 = vdwg.mxu0
  %3071 = vmatprep.subr.mxu0 0.0
  %3072 = vmatpush1.msra.mxu0 %v2945
  %3073 = vmatprep.subr.mxu0 0.0
  %3074 = vmatpush1.msra.mxu0 %v2946
  %3075 = vmatprep.subr.mxu0 0.0
  %3076 = vmatpush1.msra.mxu0 %v2947
  %3077 = vmatprep.subr.mxu0 0.0
  %3078 = vmatpush1.msra.mxu0 %v2948
  %3079 = vmatprep.subr.mxu0 0.0
  %3080 = vmatpush1.msra.mxu0 %v2949
  %3081 = vmatprep.subr.mxu0 0.0
  %3082 = vmatpush1.msra.mxu0 %v2950
  %3083 = vmatprep.subr.mxu0 0.0
  %3084 = vmatpush1.msra.mxu0 %v2951
  %3085 = vmatprep.subr.mxu0 0.0
  %3086 = vmatpush1.msra.mxu0 %v2952
  %3087 = vmatprep.subr.mxu0 0.0
  %3088 = vmatpush1.msra.mxu0 %v2953
  %3089 = vmatprep.subr.mxu0 0.0
  %3090 = vmatpush1.msra.mxu0 %v2954
  %3091 = vmatprep.subr.mxu0 0.0
  %3092 = vmatpush1.msra.mxu0 %v2955
  %3093 = vmatprep.subr.mxu0 0.0
  %3094 = vmatpush1.msra.mxu0 %v2956
  %3095 = vmatprep.subr.mxu0 0.0
  %3096 = vmatpush1.msra.mxu0 %v2957
  %3097 = vmatprep.subr.mxu0 0.0
  %3098 = vmatpush1.msra.mxu0 %v2958
  %3099 = vmatprep.subr.mxu0 0.0
  %3100 = vmatpush1.msra.mxu0 %v2959
  %3101 = vmatprep.subr.mxu0 0.0
  %3102 = vmatpush1.msra.mxu0 %v2960
  %3103 = vmatprep.subr.mxu0 0.0
  %3104 = vmatpush1.msra.mxu0 %v2961
  %3105 = vmatprep.subr.mxu0 0.0
  %3106 = vmatpush1.msra.mxu0 %v2962
  %3107 = vmatprep.subr.mxu0 0.0
  %3108 = vmatpush1.msra.mxu0 %v2963
  %3109 = vmatprep.subr.mxu0 0.0
  %3110 = vmatpush1.msra.mxu0 %v2964
  %3111 = vmatprep.subr.mxu0 0.0
  %3112 = vmatpush1.msra.mxu0 %v2965
  %3113 = vmatprep.subr.mxu0 0.0
  %3114 = vmatpush1.msra.mxu0 %v2966
  %3115 = vmatprep.subr.mxu0 0.0
  %3116 = vmatpush1.msra.mxu0 %v2967
  %3117 = vmatprep.subr.mxu0 0.0
  %3118 = vmatpush1.msra.mxu0 %v2968
  %3119 = vmatprep.subr.mxu0 0.0
  %3120 = vmatpush1.msra.mxu0 %v2969
  %3121 = vmatprep.subr.mxu0 0.0
  %3122 = vmatpush1.msra.mxu0 %v2970
  %3123 = vmatprep.subr.mxu0 0.0
  %3124 = vmatpush1.msra.mxu0 %v2971
  %3125 = vmatprep.subr.mxu0 0.0
  %3126 = vmatpush1.msra.mxu0 %v2972
  %3127 = vmatprep.subr.mxu0 0.0
  %3128 = vmatpush1.msra.mxu0 %v2973
  %3129 = vmatprep.subr.mxu0 0.0
  %3130 = vmatpush1.msra.mxu0 %v2974
  %3131 = vmatprep.subr.mxu0 0.0
  %3132 = vmatpush1.msra.mxu0 %v2975
  %3133 = vmatprep.subr.mxu0 0.0
  %3134 = vmatpush1.msra.mxu0 %v2976
  %3135 = vmatprep.mubr.f32.mxu0 %v2990
  %3136 = vmatmul.mubr.f32.gmra.mrb[0].mxu0 %v2989
  %v3137 = vpop.f32.mrb[0].mxu0
  %v3138 = vadd.f32 %v3068, %v3137
  %v3139 = vpop.f32.mrb[0].mxu0
  %3140 = vdwg.mxu0
  %3141 = vmatprep.subr.mxu0 0.0
  %3142 = vmatpush1.msra.mxu0 %v2977
  %3143 = vmatprep.subr.mxu0 0.0
  %3144 = vmatpush1.msra.mxu0 %v2978
  %3145 = vmatprep.subr.mxu0 0.0
  %3146 = vmatpush1.msra.mxu0 %v2979
  %3147 = vmatprep.subr.mxu0 0.0
  %3148 = vmatpush1.msra.mxu0 %v2980
  %3149 = vmatprep.subr.mxu0 0.0
  %3150 = vmatpush1.msra.mxu0 %v2981
  %3151 = vmatprep.subr.mxu0 0.0
  %3152 = vmatpush1.msra.mxu0 %v2982
  %3153 = vmatprep.subr.mxu0 0.0
  %3154 = vmatpush1.msra.mxu0 %v2983
  %3155 = vmatprep.subr.mxu0 0.0
  %3156 = vmatpush1.msra.mxu0 %v2984
  %3157 = vmatprep.subr.mxu0 0.0
  %3158 = vmatpush1.msra.mxu0 %v2985
  %3159 = vmatprep.subr.mxu0 0.0
  %3160 = vmatpush1.msra.mxu0 %v2999
  %3161 = vmatprep.subr.mxu0 0.0
  %3162 = vmatpush1.msra.mxu0 0.0
  %3163 = vmatprep.subr.mxu0 0.0
  %3164 = vmatpush1.msra.mxu0 0.0
  %3165 = vmatprep.subr.mxu0 0.0
  %3166 = vmatpush1.msra.mxu0 0.0
  %3167 = vmatprep.subr.mxu0 0.0
  %3168 = vmatpush1.msra.mxu0 0.0
  %3169 = vmatprep.subr.mxu0 0.0
  %3170 = vmatpush1.msra.mxu0 0.0
  %3171 = vmatprep.subr.mxu0 0.0
  %3172 = vmatpush1.msra.mxu0 0.0
  %3173 = vmatprep.subr.mxu0 0.0
  %3174 = vmatpush1.msra.mxu0 0.0
  %3175 = vmatprep.subr.mxu0 0.0
  %3176 = vmatpush1.msra.mxu0 0.0
  %3177 = vmatprep.subr.mxu0 0.0
  %3178 = vmatpush1.msra.mxu0 0.0
  %3179 = vmatprep.subr.mxu0 0.0
  %3180 = vmatpush1.msra.mxu0 0.0
  %3181 = vmatprep.subr.mxu0 0.0
  %3182 = vmatpush1.msra.mxu0 0.0
  %3183 = vmatprep.subr.mxu0 0.0
  %3184 = vmatpush1.msra.mxu0 0.0
  %3185 = vmatprep.subr.mxu0 0.0
  %3186 = vmatpush1.msra.mxu0 0.0
  %3187 = vmatprep.subr.mxu0 0.0
  %3188 = vmatpush1.msra.mxu0 0.0
  %3189 = vmatprep.subr.mxu0 0.0
  %3190 = vmatpush1.msra.mxu0 0.0
  %3191 = vmatprep.subr.mxu0 0.0
  %3192 = vmatpush1.msra.mxu0 0.0
  %3193 = vmatprep.subr.mxu0 0.0
  %3194 = vmatpush1.msra.mxu0 0.0
  %3195 = vmatprep.subr.mxu0 0.0
  %3196 = vmatpush1.msra.mxu0 0.0
  %3197 = vmatprep.subr.mxu0 0.0
  %3198 = vmatpush1.msra.mxu0 0.0
  %3199 = vmatprep.subr.mxu0 0.0
  %3200 = vmatpush1.msra.mxu0 0.0
  %3201 = vmatprep.subr.mxu0 0.0
  %3202 = vmatpush1.msra.mxu0 0.0
  %3203 = vmatprep.subr.mxu0 0.0
  %3204 = vmatpush1.msra.mxu0 0.0
  %3205 = vmatprep.mubr.f32.mxu0 0.0
  %3206 = vmatmul.mubr.f32.gmra.mrb[0].mxu0 %v2996
  %v3207 = vpop.f32.mrb[0].mxu0
  %v3208 = vadd.f32 %v3138, %v3207
  %v3209 = vpop.f32.mrb[0].mxu0
  %3210 = vdwg.mxu0
  %v3211 = vadd.f32 %v2909, %v3208
  %s3212 = scalar_lea.vmem %s3, 1776
  %v3213 = vld [vmem:[%s3212] sm:$0xff]
  %v3214 = vld [vmem:[%s3212 + $0x8] sm:$0xff]
  %v3215 = vld [vmem:[%s3212 + $0x10] sm:$0xff]
  %v3216 = vld [vmem:[%s3212 + $0x18] sm:$0xff]
  %v3217 = vld [vmem:[%s3212 + $0x20] sm:$0xff]
  %v3218 = vld [vmem:[%s3212 + $0x28] sm:$0xff]
  %v3219 = vld [vmem:[%s3212 + $0x30] sm:$0xff]
  %v3220 = vld [vmem:[%s3212 + $0x38] sm:$0xff]
  %v3221 = vld [vmem:[%s3212 + $0x40] sm:$0xff]
  %v3222 = vld [vmem:[%s3212 + $0x48] sm:$0xff]
  %v3223 = vld [vmem:[%s3212 + $0x50] sm:$0xff]
  %v3224 = vld [vmem:[%s3212 + $0x58] sm:$0xff]
  %v3225 = vld [vmem:[%s3212 + $0x60] sm:$0xff]
  %v3226 = vld [vmem:[%s3212 + $0x68] sm:$0xff]
  %v3227 = vld [vmem:[%s3212 + $0x70] sm:$0xff]
  %v3228 = vld [vmem:[%s3212 + $0x78] sm:$0xff]
  %v3229 = vld [vmem:[%s3212 + $0x80] sm:$0xff]
  %v3230 = vld [vmem:[%s3212 + $0x88] sm:$0xff]
  %v3231 = vld [vmem:[%s3212 + $0x90] sm:$0xff]
  %v3232 = vld [vmem:[%s3212 + $0x98] sm:$0xff]
  %v3233 = vld [vmem:[%s3212 + $0xa0] sm:$0xff]
  %v3234 = vld [vmem:[%s3212 + $0xa8] sm:$0xff]
  %v3235 = vld [vmem:[%s3212 + $0xb0] sm:$0xff]
  %v3236 = vld [vmem:[%s3212 + $0xb8] sm:$0xff]
  %v3237 = vld [vmem:[%s3212 + $0xc0] sm:$0xff]
  %v3238 = vld [vmem:[%s3212 + $0xc8] sm:$0xff]
  %v3239 = vld [vmem:[%s3212 + $0xd0] sm:$0xff]
  %v3240 = vld [vmem:[%s3212 + $0xd8] sm:$0xff]
  %v3241 = vld [vmem:[%s3212 + $0xe0] sm:$0xff]
  %v3242 = vld [vmem:[%s3212 + $0xe8] sm:$0xff]
  %v3243 = vld [vmem:[%s3212 + $0xf0] sm:$0xff]
  %v3244 = vld [vmem:[%s3212 + $0xf8] sm:$0xff]
  %v3245 = vld [vmem:[%s3212 + $0x100] sm:$0xff]
  %v3246 = vld [vmem:[%s3212 + $0x108] sm:$0xff]
  %v3247 = vld [vmem:[%s3212 + $0x110] sm:$0xff]
  %v3248 = vld [vmem:[%s3212 + $0x118] sm:$0xff]
  %v3249 = vld [vmem:[%s3212 + $0x120] sm:$0xff]
  %v3250 = vld [vmem:[%s3212 + $0x128] sm:$0xff]
  %v3251 = vld [vmem:[%s3212 + $0x130] sm:$0xff]
  %v3252 = vld [vmem:[%s3212 + $0x138] sm:$0xff]
  %v3253 = vld [vmem:[%s3212 + $0x140] sm:$0xff]
  %v3254 = vld [vmem:[%s3212 + $0x148] sm:$0xff]
  %v3255 = vld [vmem:[%s3212 + $0x150] sm:$0xff]
  %v3256 = vld [vmem:[%s3212 + $0x158] sm:$0xff]
  %v3257 = vld [vmem:[%s3212 + $0x160] sm:$0xff]
  %v3258 = vld [vmem:[%s3212 + $0x168] sm:$0xff]
  %v3259 = vld [vmem:[%s3212 + $0x170] sm:$0xff]
  %v3260 = vld [vmem:[%s3212 + $0x178] sm:$0xff]
  %v3261 = vld [vmem:[%s3212 + $0x180] sm:$0xff]
  %v3262 = vld [vmem:[%s3212 + $0x188] sm:$0xff]
  %v3263 = vld [vmem:[%s3212 + $0x190] sm:$0xff]
  %v3264 = vld [vmem:[%s3212 + $0x198] sm:$0xff]
  %v3265 = vld [vmem:[%s3212 + $0x1a0] sm:$0xff]
  %v3266 = vld [vmem:[%s3212 + $0x1a8] sm:$0xff]
  %v3267 = vld [vmem:[%s3212 + $0x1b0] sm:$0xff]
  %v3268 = vld [vmem:[%s3212 + $0x1b8] sm:$0xff]
  %v3269 = vld [vmem:[%s3212 + $0x1c0] sm:$0xff]
  %v3270 = vld [vmem:[%s3212 + $0x1c8] sm:$0xff]
  %v3271 = vld [vmem:[%s3212 + $0x1d0] sm:$0xff]
  %v3272 = vld [vmem:[%s3212 + $0x1d8] sm:$0xff]
  %v3273 = vld [vmem:[%s3212 + $0x1e0] sm:$0xff]
  %v3274 = vld [vmem:[%s3212 + $0x1e8] sm:$0xff]
  %v3275 = vld [vmem:[%s3212 + $0x1f0] sm:$0xff]
  %v3276 = vld [vmem:[%s3212 + $0x1f8] sm:$0xff]
  %v3277 = vld [vmem:[%s3212 + $0x200] sm:$0xff]
  %v3278 = vld [vmem:[%s3212 + $0x208] sm:$0xff]
  %v3279 = vld [vmem:[%s3212 + $0x210] sm:$0xff]
  %v3280 = vld [vmem:[%s3212 + $0x218] sm:$0xff]
  %v3281 = vld [vmem:[%s3212 + $0x220] sm:$0xff]
  %v3282 = vld [vmem:[%s3212 + $0x228] sm:$0xff]
  %v3283 = vld [vmem:[%s3212 + $0x230] sm:$0xff]
  %v3284 = vld [vmem:[%s3212 + $0x238] sm:$0xff]
  %v3285 = vld [vmem:[%s3212 + $0x240] sm:$0xff]
  %v3286 = vld [vmem:[%s3212 + $0x248] sm:$0x7f]
  %v3287 = vrot.slane %v2312, 3
  %v3288 = vrot.slane %v2313, 3
  %v3289 = vrot.slane %v2314, 3
  %v3290 = vrot.slane %v2315, 3
  %v3291 = vrot.slane %v2316, 3
  %v3296 = vsel %vm2480, %v3291, 0
  %v3299 = vsel %vm2483, %v3286, 0
  %3301 = vmatprep.subr.mxu0 0.0
  %3302 = vmatpush1.msra.mxu0 %v3213
  %3303 = vmatprep.subr.mxu0 0.0
  %3304 = vmatpush1.msra.mxu0 %v3214
  %3305 = vmatprep.subr.mxu0 0.0
  %3306 = vmatpush1.msra.mxu0 %v3215
  %3307 = vmatprep.subr.mxu0 0.0
  %3308 = vmatpush1.msra.mxu0 %v3216
  %3309 = vmatprep.subr.mxu0 0.0
  %3310 = vmatpush1.msra.mxu0 %v3217
  %3311 = vmatprep.subr.mxu0 0.0
  %3312 = vmatpush1.msra.mxu0 %v3218
  %3313 = vmatprep.subr.mxu0 0.0
  %3314 = vmatpush1.msra.mxu0 %v3219
  %3315 = vmatprep.subr.mxu0 0.0
  %3316 = vmatpush1.msra.mxu0 %v3220
  %3317 = vmatprep.subr.mxu0 0.0
  %3318 = vmatpush1.msra.mxu0 %v3221
  %3319 = vmatprep.subr.mxu0 0.0
  %3320 = vmatpush1.msra.mxu0 %v3222
  %3321 = vmatprep.subr.mxu0 0.0
  %3322 = vmatpush1.msra.mxu0 %v3223
  %3323 = vmatprep.subr.mxu0 0.0
  %3324 = vmatpush1.msra.mxu0 %v3224
  %3325 = vmatprep.subr.mxu0 0.0
  %3326 = vmatpush1.msra.mxu0 %v3225
  %3327 = vmatprep.subr.mxu0 0.0
  %3328 = vmatpush1.msra.mxu0 %v3226
  %3329 = vmatprep.subr.mxu0 0.0
  %3330 = vmatpush1.msra.mxu0 %v3227
  %3331 = vmatprep.subr.mxu0 0.0
  %3332 = vmatpush1.msra.mxu0 %v3228
  %3333 = vmatprep.subr.mxu0 0.0
  %3334 = vmatpush1.msra.mxu0 %v3229
  %3335 = vmatprep.subr.mxu0 0.0
  %3336 = vmatpush1.msra.mxu0 %v3230
  %3337 = vmatprep.subr.mxu0 0.0
  %3338 = vmatpush1.msra.mxu0 %v3231
  %3339 = vmatprep.subr.mxu0 0.0
  %3340 = vmatpush1.msra.mxu0 %v3232
  %3341 = vmatprep.subr.mxu0 0.0
  %3342 = vmatpush1.msra.mxu0 %v3233
  %3343 = vmatprep.subr.mxu0 0.0
  %3344 = vmatpush1.msra.mxu0 %v3234
  %3345 = vmatprep.subr.mxu0 0.0
  %3346 = vmatpush1.msra.mxu0 %v3235
  %3347 = vmatprep.subr.mxu0 0.0
  %3348 = vmatpush1.msra.mxu0 %v3236
  %3349 = vmatprep.subr.mxu0 0.0
  %3350 = vmatpush1.msra.mxu0 %v3237
  %3351 = vmatprep.subr.mxu0 0.0
  %3352 = vmatpush1.msra.mxu0 %v3238
  %3353 = vmatprep.subr.mxu0 0.0
  %3354 = vmatpush1.msra.mxu0 %v3239
  %3355 = vmatprep.subr.mxu0 0.0
  %3356 = vmatpush1.msra.mxu0 %v3240
  %3357 = vmatprep.subr.mxu0 0.0
  %3358 = vmatpush1.msra.mxu0 %v3241
  %3359 = vmatprep.subr.mxu0 0.0
  %3360 = vmatpush1.msra.mxu0 %v3242
  %3361 = vmatprep.subr.mxu0 0.0
  %3362 = vmatpush1.msra.mxu0 %v3243
  %3363 = vmatprep.subr.mxu0 0.0
  %3364 = vmatpush1.msra.mxu0 %v3244
  %3365 = vmatprep.mubr.f32.mxu0 %v3288
  %3366 = vmatmul.mubr.f32.gmra.mrb[0].mxu0 %v3287
  %v3367 = vpop.f32.mrb[0].mxu0
  %v3368 = vadd.f32 0.0, %v3367
  %v3369 = vpop.f32.mrb[0].mxu0
  %3370 = vdwg.mxu0
  %3371 = vmatprep.subr.mxu0 0.0
  %3372 = vmatpush1.msra.mxu0 %v3245
  %3373 = vmatprep.subr.mxu0 0.0
  %3374 = vmatpush1.msra.mxu0 %v3246
  %3375 = vmatprep.subr.mxu0 0.0
  %3376 = vmatpush1.msra.mxu0 %v3247
  %3377 = vmatprep.subr.mxu0 0.0
  %3378 = vmatpush1.msra.mxu0 %v3248
  %3379 = vmatprep.subr.mxu0 0.0
  %3380 = vmatpush1.msra.mxu0 %v3249
  %3381 = vmatprep.subr.mxu0 0.0
  %3382 = vmatpush1.msra.mxu0 %v3250
  %3383 = vmatprep.subr.mxu0 0.0
  %3384 = vmatpush1.msra.mxu0 %v3251
  %3385 = vmatprep.subr.mxu0 0.0
  %3386 = vmatpush1.msra.mxu0 %v3252
  %3387 = vmatprep.subr.mxu0 0.0
  %3388 = vmatpush1.msra.mxu0 %v3253
  %3389 = vmatprep.subr.mxu0 0.0
  %3390 = vmatpush1.msra.mxu0 %v3254
  %3391 = vmatprep.subr.mxu0 0.0
  %3392 = vmatpush1.msra.mxu0 %v3255
  %3393 = vmatprep.subr.mxu0 0.0
  %3394 = vmatpush1.msra.mxu0 %v3256
  %3395 = vmatprep.subr.mxu0 0.0
  %3396 = vmatpush1.msra.mxu0 %v3257
  %3397 = vmatprep.subr.mxu0 0.0
  %3398 = vmatpush1.msra.mxu0 %v3258
  %3399 = vmatprep.subr.mxu0 0.0
  %3400 = vmatpush1.msra.mxu0 %v3259
  %3401 = vmatprep.subr.mxu0 0.0
  %3402 = vmatpush1.msra.mxu0 %v3260
  %3403 = vmatprep.subr.mxu0 0.0
  %3404 = vmatpush1.msra.mxu0 %v3261
  %3405 = vmatprep.subr.mxu0 0.0
  %3406 = vmatpush1.msra.mxu0 %v3262
  %3407 = vmatprep.subr.mxu0 0.0
  %3408 = vmatpush1.msra.mxu0 %v3263
  %3409 = vmatprep.subr.mxu0 0.0
  %3410 = vmatpush1.msra.mxu0 %v3264
  %3411 = vmatprep.subr.mxu0 0.0
  %3412 = vmatpush1.msra.mxu0 %v3265
  %3413 = vmatprep.subr.mxu0 0.0
  %3414 = vmatpush1.msra.mxu0 %v3266
  %3415 = vmatprep.subr.mxu0 0.0
  %3416 = vmatpush1.msra.mxu0 %v3267
  %3417 = vmatprep.subr.mxu0 0.0
  %3418 = vmatpush1.msra.mxu0 %v3268
  %3419 = vmatprep.subr.mxu0 0.0
  %3420 = vmatpush1.msra.mxu0 %v3269
  %3421 = vmatprep.subr.mxu0 0.0
  %3422 = vmatpush1.msra.mxu0 %v3270
  %3423 = vmatprep.subr.mxu0 0.0
  %3424 = vmatpush1.msra.mxu0 %v3271
  %3425 = vmatprep.subr.mxu0 0.0
  %3426 = vmatpush1.msra.mxu0 %v3272
  %3427 = vmatprep.subr.mxu0 0.0
  %3428 = vmatpush1.msra.mxu0 %v3273
  %3429 = vmatprep.subr.mxu0 0.0
  %3430 = vmatpush1.msra.mxu0 %v3274
  %3431 = vmatprep.subr.mxu0 0.0
  %3432 = vmatpush1.msra.mxu0 %v3275
  %3433 = vmatprep.subr.mxu0 0.0
  %3434 = vmatpush1.msra.mxu0 %v3276
  %3435 = vmatprep.mubr.f32.mxu0 %v3290
  %3436 = vmatmul.mubr.f32.gmra.mrb[0].mxu0 %v3289
  %v3437 = vpop.f32.mrb[0].mxu0
  %v3438 = vadd.f32 %v3368, %v3437
  %v3439 = vpop.f32.mrb[0].mxu0
  %3440 = vdwg.mxu0
  %3441 = vmatprep.subr.mxu0 0.0
  %3442 = vmatpush1.msra.mxu0 %v3277
  %3443 = vmatprep.subr.mxu0 0.0
  %3444 = vmatpush1.msra.mxu0 %v3278
  %3445 = vmatprep.subr.mxu0 0.0
  %3446 = vmatpush1.msra.mxu0 %v3279
  %3447 = vmatprep.subr.mxu0 0.0
  %3448 = vmatpush1.msra.mxu0 %v3280
  %3449 = vmatprep.subr.mxu0 0.0
  %3450 = vmatpush1.msra.mxu0 %v3281
  %3451 = vmatprep.subr.mxu0 0.0
  %3452 = vmatpush1.msra.mxu0 %v3282
  %3453 = vmatprep.subr.mxu0 0.0
  %3454 = vmatpush1.msra.mxu0 %v3283
  %3455 = vmatprep.subr.mxu0 0.0
  %3456 = vmatpush1.msra.mxu0 %v3284
  %3457 = vmatprep.subr.mxu0 0.0
  %3458 = vmatpush1.msra.mxu0 %v3285
  %3459 = vmatprep.subr.mxu0 0.0
  %3460 = vmatpush1.msra.mxu0 %v3299
  %3461 = vmatprep.subr.mxu0 0.0
  %3462 = vmatpush1.msra.mxu0 0.0
  %3463 = vmatprep.subr.mxu0 0.0
  %3464 = vmatpush1.msra.mxu0 0.0
  %3465 = vmatprep.subr.mxu0 0.0
  %3466 = vmatpush1.msra.mxu0 0.0
  %3467 = vmatprep.subr.mxu0 0.0
  %3468 = vmatpush1.msra.mxu0 0.0
  %3469 = vmatprep.subr.mxu0 0.0
  %3470 = vmatpush1.msra.mxu0 0.0
  %3471 = vmatprep.subr.mxu0 0.0
  %3472 = vmatpush1.msra.mxu0 0.0
  %3473 = vmatprep.subr.mxu0 0.0
  %3474 = vmatpush1.msra.mxu0 0.0
  %3475 = vmatprep.subr.mxu0 0.0
  %3476 = vmatpush1.msra.mxu0 0.0
  %3477 = vmatprep.subr.mxu0 0.0
  %3478 = vmatpush1.msra.mxu0 0.0
  %3479 = vmatprep.subr.mxu0 0.0
  %3480 = vmatpush1.msra.mxu0 0.0
  %3481 = vmatprep.subr.mxu0 0.0
  %3482 = vmatpush1.msra.mxu0 0.0
  %3483 = vmatprep.subr.mxu0 0.0
  %3484 = vmatpush1.msra.mxu0 0.0
  %3485 = vmatprep.subr.mxu0 0.0
  %3486 = vmatpush1.msra.mxu0 0.0
  %3487 = vmatprep.subr.mxu0 0.0
  %3488 = vmatpush1.msra.mxu0 0.0
  %3489 = vmatprep.subr.mxu0 0.0
  %3490 = vmatpush1.msra.mxu0 0.0
  %3491 = vmatprep.subr.mxu0 0.0
  %3492 = vmatpush1.msra.mxu0 0.0
  %3493 = vmatprep.subr.mxu0 0.0
  %3494 = vmatpush1.msra.mxu0 0.0
  %3495 = vmatprep.subr.mxu0 0.0
  %3496 = vmatpush1.msra.mxu0 0.0
  %3497 = vmatprep.subr.mxu0 0.0
  %3498 = vmatpush1.msra.mxu0 0.0
  %3499 = vmatprep.subr.mxu0 0.0
  %3500 = vmatpush1.msra.mxu0 0.0
  %3501 = vmatprep.subr.mxu0 0.0
  %3502 = vmatpush1.msra.mxu0 0.0
  %3503 = vmatprep.subr.mxu0 0.0
  %3504 = vmatpush1.msra.mxu0 0.0
  %3505 = vmatprep.mubr.f32.mxu0 0.0
  %3506 = vmatmul.mubr.f32.gmra.mrb[0].mxu0 %v3296
  %v3507 = vpop.f32.mrb[0].mxu0
  %v3508 = vadd.f32 %v3438, %v3507
  %v3509 = vpop.f32.mrb[0].mxu0
  %3510 = vdwg.mxu0
  %v3511 = vadd.f32 %v3211, %v3508
  %s3512 = scalar_lea.vmem %s3, 2368
  %v3513 = vld [vmem:[%s3512] sm:$0xff]
  %v3514 = vld [vmem:[%s3512 + $0x8] sm:$0xff]
  %v3515 = vld [vmem:[%s3512 + $0x10] sm:$0xff]
  %v3516 = vld [vmem:[%s3512 + $0x18] sm:$0xff]
  %v3517 = vld [vmem:[%s3512 + $0x20] sm:$0xff]
  %v3518 = vld [vmem:[%s3512 + $0x28] sm:$0xff]
  %v3519 = vld [vmem:[%s3512 + $0x30] sm:$0xff]
  %v3520 = vld [vmem:[%s3512 + $0x38] sm:$0xff]
  %v3521 = vld [vmem:[%s3512 + $0x40] sm:$0xff]
  %v3522 = vld [vmem:[%s3512 + $0x48] sm:$0xff]
  %v3523 = vld [vmem:[%s3512 + $0x50] sm:$0xff]
  %v3524 = vld [vmem:[%s3512 + $0x58] sm:$0xff]
  %v3525 = vld [vmem:[%s3512 + $0x60] sm:$0xff]
  %v3526 = vld [vmem:[%s3512 + $0x68] sm:$0xff]
  %v3527 = vld [vmem:[%s3512 + $0x70] sm:$0xff]
  %v3528 = vld [vmem:[%s3512 + $0x78] sm:$0xff]
  %v3529 = vld [vmem:[%s3512 + $0x80] sm:$0xff]
  %v3530 = vld [vmem:[%s3512 + $0x88] sm:$0xff]
  %v3531 = vld [vmem:[%s3512 + $0x90] sm:$0xff]
  %v3532 = vld [vmem:[%s3512 + $0x98] sm:$0xff]
  %v3533 = vld [vmem:[%s3512 + $0xa0] sm:$0xff]
  %v3534 = vld [vmem:[%s3512 + $0xa8] sm:$0xff]
  %v3535 = vld [vmem:[%s3512 + $0xb0] sm:$0xff]
  %v3536 = vld [vmem:[%s3512 + $0xb8] sm:$0xff]
  %v3537 = vld [vmem:[%s3512 + $0xc0] sm:$0xff]
  %v3538 = vld [vmem:[%s3512 + $0xc8] sm:$0xff]
  %v3539 = vld [vmem:[%s3512 + $0xd0] sm:$0xff]
  %v3540 = vld [vmem:[%s3512 + $0xd8] sm:$0xff]
  %v3541 = vld [vmem:[%s3512 + $0xe0] sm:$0xff]
  %v3542 = vld [vmem:[%s3512 + $0xe8] sm:$0xff]
  %v3543 = vld [vmem:[%s3512 + $0xf0] sm:$0xff]
  %v3544 = vld [vmem:[%s3512 + $0xf8] sm:$0xff]
  %v3545 = vld [vmem:[%s3512 + $0x100] sm:$0xff]
  %v3546 = vld [vmem:[%s3512 + $0x108] sm:$0xff]
  %v3547 = vld [vmem:[%s3512 + $0x110] sm:$0xff]
  %v3548 = vld [vmem:[%s3512 + $0x118] sm:$0xff]
  %v3549 = vld [vmem:[%s3512 + $0x120] sm:$0xff]
  %v3550 = vld [vmem:[%s3512 + $0x128] sm:$0xff]
  %v3551 = vld [vmem:[%s3512 + $0x130] sm:$0xff]
  %v3552 = vld [vmem:[%s3512 + $0x138] sm:$0xff]
  %v3553 = vld [vmem:[%s3512 + $0x140] sm:$0xff]
  %v3554 = vld [vmem:[%s3512 + $0x148] sm:$0xff]
  %v3555 = vld [vmem:[%s3512 + $0x150] sm:$0xff]
  %v3556 = vld [vmem:[%s3512 + $0x158] sm:$0xff]
  %v3557 = vld [vmem:[%s3512 + $0x160] sm:$0xff]
  %v3558 = vld [vmem:[%s3512 + $0x168] sm:$0xff]
  %v3559 = vld [vmem:[%s3512 + $0x170] sm:$0xff]
  %v3560 = vld [vmem:[%s3512 + $0x178] sm:$0xff]
  %v3561 = vld [vmem:[%s3512 + $0x180] sm:$0xff]
  %v3562 = vld [vmem:[%s3512 + $0x188] sm:$0xff]
  %v3563 = vld [vmem:[%s3512 + $0x190] sm:$0xff]
  %v3564 = vld [vmem:[%s3512 + $0x198] sm:$0xff]
  %v3565 = vld [vmem:[%s3512 + $0x1a0] sm:$0xff]
  %v3566 = vld [vmem:[%s3512 + $0x1a8] sm:$0xff]
  %v3567 = vld [vmem:[%s3512 + $0x1b0] sm:$0xff]
  %v3568 = vld [vmem:[%s3512 + $0x1b8] sm:$0xff]
  %v3569 = vld [vmem:[%s3512 + $0x1c0] sm:$0xff]
  %v3570 = vld [vmem:[%s3512 + $0x1c8] sm:$0xff]
  %v3571 = vld [vmem:[%s3512 + $0x1d0] sm:$0xff]
  %v3572 = vld [vmem:[%s3512 + $0x1d8] sm:$0xff]
  %v3573 = vld [vmem:[%s3512 + $0x1e0] sm:$0xff]
  %v3574 = vld [vmem:[%s3512 + $0x1e8] sm:$0xff]
  %v3575 = vld [vmem:[%s3512 + $0x1f0] sm:$0xff]
  %v3576 = vld [vmem:[%s3512 + $0x1f8] sm:$0xff]
  %v3577 = vld [vmem:[%s3512 + $0x200] sm:$0xff]
  %v3578 = vld [vmem:[%s3512 + $0x208] sm:$0xff]
  %v3579 = vld [vmem:[%s3512 + $0x210] sm:$0xff]
  %v3580 = vld [vmem:[%s3512 + $0x218] sm:$0xff]
  %v3581 = vld [vmem:[%s3512 + $0x220] sm:$0xff]
  %v3582 = vld [vmem:[%s3512 + $0x228] sm:$0xff]
  %v3583 = vld [vmem:[%s3512 + $0x230] sm:$0xff]
  %v3584 = vld [vmem:[%s3512 + $0x238] sm:$0xff]
  %v3585 = vld [vmem:[%s3512 + $0x240] sm:$0xff]
  %v3586 = vld [vmem:[%s3512 + $0x248] sm:$0x7f]
  %v3587 = vrot.slane %v2312, 4
  %v3588 = vrot.slane %v2313, 4
  %v3589 = vrot.slane %v2314, 4
  %v3590 = vrot.slane %v2315, 4
  %v3591 = vrot.slane %v2316, 4
  %v3596 = vsel %vm2480, %v3591, 0
  %v3599 = vsel %vm2483, %v3586, 0
  %3601 = vmatprep.subr.mxu0 0.0
  %3602 = vmatpush1.msra.mxu0 %v3513
  %3603 = vmatprep.subr.mxu0 0.0
  %3604 = vmatpush1.msra.mxu0 %v3514
  %3605 = vmatprep.subr.mxu0 0.0
  %3606 = vmatpush1.msra.mxu0 %v3515
  %3607 = vmatprep.subr.mxu0 0.0
  %3608 = vmatpush1.msra.mxu0 %v3516
  %3609 = vmatprep.subr.mxu0 0.0
  %3610 = vmatpush1.msra.mxu0 %v3517
  %3611 = vmatprep.subr.mxu0 0.0
  %3612 = vmatpush1.msra.mxu0 %v3518
  %3613 = vmatprep.subr.mxu0 0.0
  %3614 = vmatpush1.msra.mxu0 %v3519
  %3615 = vmatprep.subr.mxu0 0.0
  %3616 = vmatpush1.msra.mxu0 %v3520
  %3617 = vmatprep.subr.mxu0 0.0
  %3618 = vmatpush1.msra.mxu0 %v3521
  %3619 = vmatprep.subr.mxu0 0.0
  %3620 = vmatpush1.msra.mxu0 %v3522
  %3621 = vmatprep.subr.mxu0 0.0
  %3622 = vmatpush1.msra.mxu0 %v3523
  %3623 = vmatprep.subr.mxu0 0.0
  %3624 = vmatpush1.msra.mxu0 %v3524
  %3625 = vmatprep.subr.mxu0 0.0
  %3626 = vmatpush1.msra.mxu0 %v3525
  %3627 = vmatprep.subr.mxu0 0.0
  %3628 = vmatpush1.msra.mxu0 %v3526
  %3629 = vmatprep.subr.mxu0 0.0
  %3630 = vmatpush1.msra.mxu0 %v3527
  %3631 = vmatprep.subr.mxu0 0.0
  %3632 = vmatpush1.msra.mxu0 %v3528
  %3633 = vmatprep.subr.mxu0 0.0
  %3634 = vmatpush1.msra.mxu0 %v3529
  %3635 = vmatprep.subr.mxu0 0.0
  %3636 = vmatpush1.msra.mxu0 %v3530
  %3637 = vmatprep.subr.mxu0 0.0
  %3638 = vmatpush1.msra.mxu0 %v3531
  %3639 = vmatprep.subr.mxu0 0.0
  %3640 = vmatpush1.msra.mxu0 %v3532
  %3641 = vmatprep.subr.mxu0 0.0
  %3642 = vmatpush1.msra.mxu0 %v3533
  %3643 = vmatprep.subr.mxu0 0.0
  %3644 = vmatpush1.msra.mxu0 %v3534
  %3645 = vmatprep.subr.mxu0 0.0
  %3646 = vmatpush1.msra.mxu0 %v3535
  %3647 = vmatprep.subr.mxu0 0.0
  %3648 = vmatpush1.msra.mxu0 %v3536
  %3649 = vmatprep.subr.mxu0 0.0
  %3650 = vmatpush1.msra.mxu0 %v3537
  %3651 = vmatprep.subr.mxu0 0.0
  %3652 = vmatpush1.msra.mxu0 %v3538
  %3653 = vmatprep.subr.mxu0 0.0
  %3654 = vmatpush1.msra.mxu0 %v3539
  %3655 = vmatprep.subr.mxu0 0.0
  %3656 = vmatpush1.msra.mxu0 %v3540
  %3657 = vmatprep.subr.mxu0 0.0
  %3658 = vmatpush1.msra.mxu0 %v3541
  %3659 = vmatprep.subr.mxu0 0.0
  %3660 = vmatpush1.msra.mxu0 %v3542
  %3661 = vmatprep.subr.mxu0 0.0
  %3662 = vmatpush1.msra.mxu0 %v3543
  %3663 = vmatprep.subr.mxu0 0.0
  %3664 = vmatpush1.msra.mxu0 %v3544
  %3665 = vmatprep.mubr.f32.mxu0 %v3588
  %3666 = vmatmul.mubr.f32.gmra.mrb[0].mxu0 %v3587
  %v3667 = vpop.f32.mrb[0].mxu0
  %v3668 = vadd.f32 0.0, %v3667
  %v3669 = vpop.f32.mrb[0].mxu0
  %3670 = vdwg.mxu0
  %3671 = vmatprep.subr.mxu0 0.0
  %3672 = vmatpush1.msra.mxu0 %v3545
  %3673 = vmatprep.subr.mxu0 0.0
  %3674 = vmatpush1.msra.mxu0 %v3546
  %3675 = vmatprep.subr.mxu0 0.0
  %3676 = vmatpush1.msra.mxu0 %v3547
  %3677 = vmatprep.subr.mxu0 0.0
  %3678 = vmatpush1.msra.mxu0 %v3548
  %3679 = vmatprep.subr.mxu0 0.0
  %3680 = vmatpush1.msra.mxu0 %v3549
  %3681 = vmatprep.subr.mxu0 0.0
  %3682 = vmatpush1.msra.mxu0 %v3550
  %3683 = vmatprep.subr.mxu0 0.0
  %3684 = vmatpush1.msra.mxu0 %v3551
  %3685 = vmatprep.subr.mxu0 0.0
  %3686 = vmatpush1.msra.mxu0 %v3552
  %3687 = vmatprep.subr.mxu0 0.0
  %3688 = vmatpush1.msra.mxu0 %v3553
  %3689 = vmatprep.subr.mxu0 0.0
  %3690 = vmatpush1.msra.mxu0 %v3554
  %3691 = vmatprep.subr.mxu0 0.0
  %3692 = vmatpush1.msra.mxu0 %v3555
  %3693 = vmatprep.subr.mxu0 0.0
  %3694 = vmatpush1.msra.mxu0 %v3556
  %3695 = vmatprep.subr.mxu0 0.0
  %3696 = vmatpush1.msra.mxu0 %v3557
  %3697 = vmatprep.subr.mxu0 0.0
  %3698 = vmatpush1.msra.mxu0 %v3558
  %3699 = vmatprep.subr.mxu0 0.0
  %3700 = vmatpush1.msra.mxu0 %v3559
  %3701 = vmatprep.subr.mxu0 0.0
  %3702 = vmatpush1.msra.mxu0 %v3560
  %3703 = vmatprep.subr.mxu0 0.0
  %3704 = vmatpush1.msra.mxu0 %v3561
  %3705 = vmatprep.subr.mxu0 0.0
  %3706 = vmatpush1.msra.mxu0 %v3562
  %3707 = vmatprep.subr.mxu0 0.0
  %3708 = vmatpush1.msra.mxu0 %v3563
  %3709 = vmatprep.subr.mxu0 0.0
  %3710 = vmatpush1.msra.mxu0 %v3564
  %3711 = vmatprep.subr.mxu0 0.0
  %3712 = vmatpush1.msra.mxu0 %v3565
  %3713 = vmatprep.subr.mxu0 0.0
  %3714 = vmatpush1.msra.mxu0 %v3566
  %3715 = vmatprep.subr.mxu0 0.0
  %3716 = vmatpush1.msra.mxu0 %v3567
  %3717 = vmatprep.subr.mxu0 0.0
  %3718 = vmatpush1.msra.mxu0 %v3568
  %3719 = vmatprep.subr.mxu0 0.0
  %3720 = vmatpush1.msra.mxu0 %v3569
  %3721 = vmatprep.subr.mxu0 0.0
  %3722 = vmatpush1.msra.mxu0 %v3570
  %3723 = vmatprep.subr.mxu0 0.0
  %3724 = vmatpush1.msra.mxu0 %v3571
  %3725 = vmatprep.subr.mxu0 0.0
  %3726 = vmatpush1.msra.mxu0 %v3572
  %3727 = vmatprep.subr.mxu0 0.0
  %3728 = vmatpush1.msra.mxu0 %v3573
  %3729 = vmatprep.subr.mxu0 0.0
  %3730 = vmatpush1.msra.mxu0 %v3574
  %3731 = vmatprep.subr.mxu0 0.0
  %3732 = vmatpush1.msra.mxu0 %v3575
  %3733 = vmatprep.subr.mxu0 0.0
  %3734 = vmatpush1.msra.mxu0 %v3576
  %3735 = vmatprep.mubr.f32.mxu0 %v3590
  %3736 = vmatmul.mubr.f32.gmra.mrb[0].mxu0 %v3589
  %v3737 = vpop.f32.mrb[0].mxu0
  %v3738 = vadd.f32 %v3668, %v3737
  %v3739 = vpop.f32.mrb[0].mxu0
  %3740 = vdwg.mxu0
  %3741 = vmatprep.subr.mxu0 0.0
  %3742 = vmatpush1.msra.mxu0 %v3577
  %3743 = vmatprep.subr.mxu0 0.0
  %3744 = vmatpush1.msra.mxu0 %v3578
  %3745 = vmatprep.subr.mxu0 0.0
  %3746 = vmatpush1.msra.mxu0 %v3579
  %3747 = vmatprep.subr.mxu0 0.0
  %3748 = vmatpush1.msra.mxu0 %v3580
  %3749 = vmatprep.subr.mxu0 0.0
  %3750 = vmatpush1.msra.mxu0 %v3581
  %3751 = vmatprep.subr.mxu0 0.0
  %3752 = vmatpush1.msra.mxu0 %v3582
  %3753 = vmatprep.subr.mxu0 0.0
  %3754 = vmatpush1.msra.mxu0 %v3583
  %3755 = vmatprep.subr.mxu0 0.0
  %3756 = vmatpush1.msra.mxu0 %v3584
  %3757 = vmatprep.subr.mxu0 0.0
  %3758 = vmatpush1.msra.mxu0 %v3585
  %3759 = vmatprep.subr.mxu0 0.0
  %3760 = vmatpush1.msra.mxu0 %v3599
  %3761 = vmatprep.subr.mxu0 0.0
  %3762 = vmatpush1.msra.mxu0 0.0
  %3763 = vmatprep.subr.mxu0 0.0
  %3764 = vmatpush1.msra.mxu0 0.0
  %3765 = vmatprep.subr.mxu0 0.0
  %3766 = vmatpush1.msra.mxu0 0.0
  %3767 = vmatprep.subr.mxu0 0.0
  %3768 = vmatpush1.msra.mxu0 0.0
  %3769 = vmatprep.subr.mxu0 0.0
  %3770 = vmatpush1.msra.mxu0 0.0
  %3771 = vmatprep.subr.mxu0 0.0
  %3772 = vmatpush1.msra.mxu0 0.0
  %3773 = vmatprep.subr.mxu0 0.0
  %3774 = vmatpush1.msra.mxu0 0.0
  %3775 = vmatprep.subr.mxu0 0.0
  %3776 = vmatpush1.msra.mxu0 0.0
  %3777 = vmatprep.subr.mxu0 0.0
  %3778 = vmatpush1.msra.mxu0 0.0
  %3779 = vmatprep.subr.mxu0 0.0
  %3780 = vmatpush1.msra.mxu0 0.0
  %3781 = vmatprep.subr.mxu0 0.0
  %3782 = vmatpush1.msra.mxu0 0.0
  %3783 = vmatprep.subr.mxu0 0.0
  %3784 = vmatpush1.msra.mxu0 0.0
  %3785 = vmatprep.subr.mxu0 0.0
  %3786 = vmatpush1.msra.mxu0 0.0
  %3787 = vmatprep.subr.mxu0 0.0
  %3788 = vmatpush1.msra.mxu0 0.0
  %3789 = vmatprep.subr.mxu0 0.0
  %3790 = vmatpush1.msra.mxu0 0.0
  %3791 = vmatprep.subr.mxu0 0.0
  %3792 = vmatpush1.msra.mxu0 0.0
  %3793 = vmatprep.subr.mxu0 0.0
  %3794 = vmatpush1.msra.mxu0 0.0
  %3795 = vmatprep.subr.mxu0 0.0
  %3796 = vmatpush1.msra.mxu0 0.0
  %3797 = vmatprep.subr.mxu0 0.0
  %3798 = vmatpush1.msra.mxu0 0.0
  %3799 = vmatprep.subr.mxu0 0.0
  %3800 = vmatpush1.msra.mxu0 0.0
  %3801 = vmatprep.subr.mxu0 0.0
  %3802 = vmatpush1.msra.mxu0 0.0
  %3803 = vmatprep.subr.mxu0 0.0
  %3804 = vmatpush1.msra.mxu0 0.0
  %3805 = vmatprep.mubr.f32.mxu0 0.0
  %3806 = vmatmul.mubr.f32.gmra.mrb[0].mxu0 %v3596
  %v3807 = vpop.f32.mrb[0].mxu0
  %v3808 = vadd.f32 %v3738, %v3807
  %v3809 = vpop.f32.mrb[0].mxu0
  %3810 = vdwg.mxu0
  %v3811 = vadd.f32 %v3511, %v3808
  %s3812 = scalar_lea.vmem %s3, 2960
  %v3813 = vld [vmem:[%s3812] sm:$0xff]
  %v3814 = vld [vmem:[%s3812 + $0x8] sm:$0xff]
  %v3815 = vld [vmem:[%s3812 + $0x10] sm:$0xff]
  %v3816 = vld [vmem:[%s3812 + $0x18] sm:$0xff]
  %v3817 = vld [vmem:[%s3812 + $0x20] sm:$0xff]
  %v3818 = vld [vmem:[%s3812 + $0x28] sm:$0xff]
  %v3819 = vld [vmem:[%s3812 + $0x30] sm:$0xff]
  %v3820 = vld [vmem:[%s3812 + $0x38] sm:$0xff]
  %v3821 = vld [vmem:[%s3812 + $0x40] sm:$0xff]
  %v3822 = vld [vmem:[%s3812 + $0x48] sm:$0xff]
  %v3823 = vld [vmem:[%s3812 + $0x50] sm:$0xff]
  %v3824 = vld [vmem:[%s3812 + $0x58] sm:$0xff]
  %v3825 = vld [vmem:[%s3812 + $0x60] sm:$0xff]
  %v3826 = vld [vmem:[%s3812 + $0x68] sm:$0xff]
  %v3827 = vld [vmem:[%s3812 + $0x70] sm:$0xff]
  %v3828 = vld [vmem:[%s3812 + $0x78] sm:$0xff]
  %v3829 = vld [vmem:[%s3812 + $0x80] sm:$0xff]
  %v3830 = vld [vmem:[%s3812 + $0x88] sm:$0xff]
  %v3831 = vld [vmem:[%s3812 + $0x90] sm:$0xff]
  %v3832 = vld [vmem:[%s3812 + $0x98] sm:$0xff]
  %v3833 = vld [vmem:[%s3812 + $0xa0] sm:$0xff]
  %v3834 = vld [vmem:[%s3812 + $0xa8] sm:$0xff]
  %v3835 = vld [vmem:[%s3812 + $0xb0] sm:$0xff]
  %v3836 = vld [vmem:[%s3812 + $0xb8] sm:$0xff]
  %v3837 = vld [vmem:[%s3812 + $0xc0] sm:$0xff]
  %v3838 = vld [vmem:[%s3812 + $0xc8] sm:$0xff]
  %v3839 = vld [vmem:[%s3812 + $0xd0] sm:$0xff]
  %v3840 = vld [vmem:[%s3812 + $0xd8] sm:$0xff]
  %v3841 = vld [vmem:[%s3812 + $0xe0] sm:$0xff]
  %v3842 = vld [vmem:[%s3812 + $0xe8] sm:$0xff]
  %v3843 = vld [vmem:[%s3812 + $0xf0] sm:$0xff]
  %v3844 = vld [vmem:[%s3812 + $0xf8] sm:$0xff]
  %v3845 = vld [vmem:[%s3812 + $0x100] sm:$0xff]
  %v3846 = vld [vmem:[%s3812 + $0x108] sm:$0xff]
  %v3847 = vld [vmem:[%s3812 + $0x110] sm:$0xff]
  %v3848 = vld [vmem:[%s3812 + $0x118] sm:$0xff]
  %v3849 = vld [vmem:[%s3812 + $0x120] sm:$0xff]
  %v3850 = vld [vmem:[%s3812 + $0x128] sm:$0xff]
  %v3851 = vld [vmem:[%s3812 + $0x130] sm:$0xff]
  %v3852 = vld [vmem:[%s3812 + $0x138] sm:$0xff]
  %v3853 = vld [vmem:[%s3812 + $0x140] sm:$0xff]
  %v3854 = vld [vmem:[%s3812 + $0x148] sm:$0xff]
  %v3855 = vld [vmem:[%s3812 + $0x150] sm:$0xff]
  %v3856 = vld [vmem:[%s3812 + $0x158] sm:$0xff]
  %v3857 = vld [vmem:[%s3812 + $0x160] sm:$0xff]
  %v3858 = vld [vmem:[%s3812 + $0x168] sm:$0xff]
  %v3859 = vld [vmem:[%s3812 + $0x170] sm:$0xff]
  %v3860 = vld [vmem:[%s3812 + $0x178] sm:$0xff]
  %v3861 = vld [vmem:[%s3812 + $0x180] sm:$0xff]
  %v3862 = vld [vmem:[%s3812 + $0x188] sm:$0xff]
  %v3863 = vld [vmem:[%s3812 + $0x190] sm:$0xff]
  %v3864 = vld [vmem:[%s3812 + $0x198] sm:$0xff]
  %v3865 = vld [vmem:[%s3812 + $0x1a0] sm:$0xff]
  %v3866 = vld [vmem:[%s3812 + $0x1a8] sm:$0xff]
  %v3867 = vld [vmem:[%s3812 + $0x1b0] sm:$0xff]
  %v3868 = vld [vmem:[%s3812 + $0x1b8] sm:$0xff]
  %v3869 = vld [vmem:[%s3812 + $0x1c0] sm:$0xff]
  %v3870 = vld [vmem:[%s3812 + $0x1c8] sm:$0xff]
  %v3871 = vld [vmem:[%s3812 + $0x1d0] sm:$0xff]
  %v3872 = vld [vmem:[%s3812 + $0x1d8] sm:$0xff]
  %v3873 = vld [vmem:[%s3812 + $0x1e0] sm:$0xff]
  %v3874 = vld [vmem:[%s3812 + $0x1e8] sm:$0xff]
  %v3875 = vld [vmem:[%s3812 + $0x1f0] sm:$0xff]
  %v3876 = vld [vmem:[%s3812 + $0x1f8] sm:$0xff]
  %v3877 = vld [vmem:[%s3812 + $0x200] sm:$0xff]
  %v3878 = vld [vmem:[%s3812 + $0x208] sm:$0xff]
  %v3879 = vld [vmem:[%s3812 + $0x210] sm:$0xff]
  %v3880 = vld [vmem:[%s3812 + $0x218] sm:$0xff]
  %v3881 = vld [vmem:[%s3812 + $0x220] sm:$0xff]
  %v3882 = vld [vmem:[%s3812 + $0x228] sm:$0xff]
  %v3883 = vld [vmem:[%s3812 + $0x230] sm:$0xff]
  %v3884 = vld [vmem:[%s3812 + $0x238] sm:$0xff]
  %v3885 = vld [vmem:[%s3812 + $0x240] sm:$0xff]
  %v3886 = vld [vmem:[%s3812 + $0x248] sm:$0x7f]
  %v3887 = vrot.slane %v2312, 5
  %v3888 = vrot.slane %v2313, 5
  %v3889 = vrot.slane %v2314, 5
  %v3890 = vrot.slane %v2315, 5
  %v3891 = vrot.slane %v2316, 5
  %v3896 = vsel %vm2480, %v3891, 0
  %v3899 = vsel %vm2483, %v3886, 0
  %3901 = vmatprep.subr.mxu0 0.0
  %3902 = vmatpush1.msra.mxu0 %v3813
  %3903 = vmatprep.subr.mxu0 0.0
  %3904 = vmatpush1.msra.mxu0 %v3814
  %3905 = vmatprep.subr.mxu0 0.0
  %3906 = vmatpush1.msra.mxu0 %v3815
  %3907 = vmatprep.subr.mxu0 0.0
  %3908 = vmatpush1.msra.mxu0 %v3816
  %3909 = vmatprep.subr.mxu0 0.0
  %3910 = vmatpush1.msra.mxu0 %v3817
  %3911 = vmatprep.subr.mxu0 0.0
  %3912 = vmatpush1.msra.mxu0 %v3818
  %3913 = vmatprep.subr.mxu0 0.0
  %3914 = vmatpush1.msra.mxu0 %v3819
  %3915 = vmatprep.subr.mxu0 0.0
  %3916 = vmatpush1.msra.mxu0 %v3820
  %3917 = vmatprep.subr.mxu0 0.0
  %3918 = vmatpush1.msra.mxu0 %v3821
  %3919 = vmatprep.subr.mxu0 0.0
  %3920 = vmatpush1.msra.mxu0 %v3822
  %3921 = vmatprep.subr.mxu0 0.0
  %3922 = vmatpush1.msra.mxu0 %v3823
  %3923 = vmatprep.subr.mxu0 0.0
  %3924 = vmatpush1.msra.mxu0 %v3824
  %3925 = vmatprep.subr.mxu0 0.0
  %3926 = vmatpush1.msra.mxu0 %v3825
  %3927 = vmatprep.subr.mxu0 0.0
  %3928 = vmatpush1.msra.mxu0 %v3826
  %3929 = vmatprep.subr.mxu0 0.0
  %3930 = vmatpush1.msra.mxu0 %v3827
  %3931 = vmatprep.subr.mxu0 0.0
  %3932 = vmatpush1.msra.mxu0 %v3828
  %3933 = vmatprep.subr.mxu0 0.0
  %3934 = vmatpush1.msra.mxu0 %v3829
  %3935 = vmatprep.subr.mxu0 0.0
  %3936 = vmatpush1.msra.mxu0 %v3830
  %3937 = vmatprep.subr.mxu0 0.0
  %3938 = vmatpush1.msra.mxu0 %v3831
  %3939 = vmatprep.subr.mxu0 0.0
  %3940 = vmatpush1.msra.mxu0 %v3832
  %3941 = vmatprep.subr.mxu0 0.0
  %3942 = vmatpush1.msra.mxu0 %v3833
  %3943 = vmatprep.subr.mxu0 0.0
  %3944 = vmatpush1.msra.mxu0 %v3834
  %3945 = vmatprep.subr.mxu0 0.0
  %3946 = vmatpush1.msra.mxu0 %v3835
  %3947 = vmatprep.subr.mxu0 0.0
  %3948 = vmatpush1.msra.mxu0 %v3836
  %3949 = vmatprep.subr.mxu0 0.0
  %3950 = vmatpush1.msra.mxu0 %v3837
  %3951 = vmatprep.subr.mxu0 0.0
  %3952 = vmatpush1.msra.mxu0 %v3838
  %3953 = vmatprep.subr.mxu0 0.0
  %3954 = vmatpush1.msra.mxu0 %v3839
  %3955 = vmatprep.subr.mxu0 0.0
  %3956 = vmatpush1.msra.mxu0 %v3840
  %3957 = vmatprep.subr.mxu0 0.0
  %3958 = vmatpush1.msra.mxu0 %v3841
  %3959 = vmatprep.subr.mxu0 0.0
  %3960 = vmatpush1.msra.mxu0 %v3842
  %3961 = vmatprep.subr.mxu0 0.0
  %3962 = vmatpush1.msra.mxu0 %v3843
  %3963 = vmatprep.subr.mxu0 0.0
  %3964 = vmatpush1.msra.mxu0 %v3844
  %3965 = vmatprep.mubr.f32.mxu0 %v3888
  %3966 = vmatmul.mubr.f32.gmra.mrb[0].mxu0 %v3887
  %v3967 = vpop.f32.mrb[0].mxu0
  %v3968 = vadd.f32 0.0, %v3967
  %v3969 = vpop.f32.mrb[0].mxu0
  %3970 = vdwg.mxu0
  %3971 = vmatprep.subr.mxu0 0.0
  %3972 = vmatpush1.msra.mxu0 %v3845
  %3973 = vmatprep.subr.mxu0 0.0
  %3974 = vmatpush1.msra.mxu0 %v3846
  %3975 = vmatprep.subr.mxu0 0.0
  %3976 = vmatpush1.msra.mxu0 %v3847
  %3977 = vmatprep.subr.mxu0 0.0
  %3978 = vmatpush1.msra.mxu0 %v3848
  %3979 = vmatprep.subr.mxu0 0.0
  %3980 = vmatpush1.msra.mxu0 %v3849
  %3981 = vmatprep.subr.mxu0 0.0
  %3982 = vmatpush1.msra.mxu0 %v3850
  %3983 = vmatprep.subr.mxu0 0.0
  %3984 = vmatpush1.msra.mxu0 %v3851
  %3985 = vmatprep.subr.mxu0 0.0
  %3986 = vmatpush1.msra.mxu0 %v3852
  %3987 = vmatprep.subr.mxu0 0.0
  %3988 = vmatpush1.msra.mxu0 %v3853
  %3989 = vmatprep.subr.mxu0 0.0
  %3990 = vmatpush1.msra.mxu0 %v3854
  %3991 = vmatprep.subr.mxu0 0.0
  %3992 = vmatpush1.msra.mxu0 %v3855
  %3993 = vmatprep.subr.mxu0 0.0
  %3994 = vmatpush1.msra.mxu0 %v3856
  %3995 = vmatprep.subr.mxu0 0.0
  %3996 = vmatpush1.msra.mxu0 %v3857
  %3997 = vmatprep.subr.mxu0 0.0
  %3998 = vmatpush1.msra.mxu0 %v3858
  %3999 = vmatprep.subr.mxu0 0.0
  %4000 = vmatpush1.msra.mxu0 %v3859
  %4001 = vmatprep.subr.mxu0 0.0
  %4002 = vmatpush1.msra.mxu0 %v3860
  %4003 = vmatprep.subr.mxu0 0.0
  %4004 = vmatpush1.msra.mxu0 %v3861
  %4005 = vmatprep.subr.mxu0 0.0
  %4006 = vmatpush1.msra.mxu0 %v3862
  %4007 = vmatprep.subr.mxu0 0.0
  %4008 = vmatpush1.msra.mxu0 %v3863
  %4009 = vmatprep.subr.mxu0 0.0
  %4010 = vmatpush1.msra.mxu0 %v3864
  %4011 = vmatprep.subr.mxu0 0.0
  %4012 = vmatpush1.msra.mxu0 %v3865
  %4013 = vmatprep.subr.mxu0 0.0
  %4014 = vmatpush1.msra.mxu0 %v3866
  %4015 = vmatprep.subr.mxu0 0.0
  %4016 = vmatpush1.msra.mxu0 %v3867
  %4017 = vmatprep.subr.mxu0 0.0
  %4018 = vmatpush1.msra.mxu0 %v3868
  %4019 = vmatprep.subr.mxu0 0.0
  %4020 = vmatpush1.msra.mxu0 %v3869
  %4021 = vmatprep.subr.mxu0 0.0
  %4022 = vmatpush1.msra.mxu0 %v3870
  %4023 = vmatprep.subr.mxu0 0.0
  %4024 = vmatpush1.msra.mxu0 %v3871
  %4025 = vmatprep.subr.mxu0 0.0
  %4026 = vmatpush1.msra.mxu0 %v3872
  %4027 = vmatprep.subr.mxu0 0.0
  %4028 = vmatpush1.msra.mxu0 %v3873
  %4029 = vmatprep.subr.mxu0 0.0
  %4030 = vmatpush1.msra.mxu0 %v3874
  %4031 = vmatprep.subr.mxu0 0.0
  %4032 = vmatpush1.msra.mxu0 %v3875
  %4033 = vmatprep.subr.mxu0 0.0
  %4034 = vmatpush1.msra.mxu0 %v3876
  %4035 = vmatprep.mubr.f32.mxu0 %v3890
  %4036 = vmatmul.mubr.f32.gmra.mrb[0].mxu0 %v3889
  %v4037 = vpop.f32.mrb[0].mxu0
  %v4038 = vadd.f32 %v3968, %v4037
  %v4039 = vpop.f32.mrb[0].mxu0
  %4040 = vdwg.mxu0
  %4041 = vmatprep.subr.mxu0 0.0
  %4042 = vmatpush1.msra.mxu0 %v3877
  %4043 = vmatprep.subr.mxu0 0.0
  %4044 = vmatpush1.msra.mxu0 %v3878
  %4045 = vmatprep.subr.mxu0 0.0
  %4046 = vmatpush1.msra.mxu0 %v3879
  %4047 = vmatprep.subr.mxu0 0.0
  %4048 = vmatpush1.msra.mxu0 %v3880
  %4049 = vmatprep.subr.mxu0 0.0
  %4050 = vmatpush1.msra.mxu0 %v3881
  %4051 = vmatprep.subr.mxu0 0.0
  %4052 = vmatpush1.msra.mxu0 %v3882
  %4053 = vmatprep.subr.mxu0 0.0
  %4054 = vmatpush1.msra.mxu0 %v3883
  %4055 = vmatprep.subr.mxu0 0.0
  %4056 = vmatpush1.msra.mxu0 %v3884
  %4057 = vmatprep.subr.mxu0 0.0
  %4058 = vmatpush1.msra.mxu0 %v3885
  %4059 = vmatprep.subr.mxu0 0.0
  %4060 = vmatpush1.msra.mxu0 %v3899
  %4061 = vmatprep.subr.mxu0 0.0
  %4062 = vmatpush1.msra.mxu0 0.0
  %4063 = vmatprep.subr.mxu0 0.0
  %4064 = vmatpush1.msra.mxu0 0.0
  %4065 = vmatprep.subr.mxu0 0.0
  %4066 = vmatpush1.msra.mxu0 0.0
  %4067 = vmatprep.subr.mxu0 0.0
  %4068 = vmatpush1.msra.mxu0 0.0
  %4069 = vmatprep.subr.mxu0 0.0
  %4070 = vmatpush1.msra.mxu0 0.0
  %4071 = vmatprep.subr.mxu0 0.0
  %4072 = vmatpush1.msra.mxu0 0.0
  %4073 = vmatprep.subr.mxu0 0.0
  %4074 = vmatpush1.msra.mxu0 0.0
  %4075 = vmatprep.subr.mxu0 0.0
  %4076 = vmatpush1.msra.mxu0 0.0
  %4077 = vmatprep.subr.mxu0 0.0
  %4078 = vmatpush1.msra.mxu0 0.0
  %4079 = vmatprep.subr.mxu0 0.0
  %4080 = vmatpush1.msra.mxu0 0.0
  %4081 = vmatprep.subr.mxu0 0.0
  %4082 = vmatpush1.msra.mxu0 0.0
  %4083 = vmatprep.subr.mxu0 0.0
  %4084 = vmatpush1.msra.mxu0 0.0
  %4085 = vmatprep.subr.mxu0 0.0
  %4086 = vmatpush1.msra.mxu0 0.0
  %4087 = vmatprep.subr.mxu0 0.0
  %4088 = vmatpush1.msra.mxu0 0.0
  %4089 = vmatprep.subr.mxu0 0.0
  %4090 = vmatpush1.msra.mxu0 0.0
  %4091 = vmatprep.subr.mxu0 0.0
  %4092 = vmatpush1.msra.mxu0 0.0
  %4093 = vmatprep.subr.mxu0 0.0
  %4094 = vmatpush1.msra.mxu0 0.0
  %4095 = vmatprep.subr.mxu0 0.0
  %4096 = vmatpush1.msra.mxu0 0.0
  %4097 = vmatprep.subr.mxu0 0.0
  %4098 = vmatpush1.msra.mxu0 0.0
  %4099 = vmatprep.subr.mxu0 0.0
  %4100 = vmatpush1.msra.mxu0 0.0
  %4101 = vmatprep.subr.mxu0 0.0
  %4102 = vmatpush1.msra.mxu0 0.0
  %4103 = vmatprep.subr.mxu0 0.0
  %4104 = vmatpush1.msra.mxu0 0.0
  %4105 = vmatprep.mubr.f32.mxu0 0.0
  %4106 = vmatmul.mubr.f32.gmra.mrb[0].mxu0 %v3896
  %v4107 = vpop.f32.mrb[0].mxu0
  %v4108 = vadd.f32 %v4038, %v4107
  %v4109 = vpop.f32.mrb[0].mxu0
  %4110 = vdwg.mxu0
  %v4111 = vadd.f32 %v3811, %v4108
  %s4112 = scalar_lea.vmem %s3, 3552
  %v4113 = vld [vmem:[%s4112] sm:$0xff]
  %v4114 = vld [vmem:[%s4112 + $0x8] sm:$0xff]
  %v4115 = vld [vmem:[%s4112 + $0x10] sm:$0xff]
  %v4116 = vld [vmem:[%s4112 + $0x18] sm:$0xff]
  %v4117 = vld [vmem:[%s4112 + $0x20] sm:$0xff]
  %v4118 = vld [vmem:[%s4112 + $0x28] sm:$0xff]
  %v4119 = vld [vmem:[%s4112 + $0x30] sm:$0xff]
  %v4120 = vld [vmem:[%s4112 + $0x38] sm:$0xff]
  %v4121 = vld [vmem:[%s4112 + $0x40] sm:$0xff]
  %v4122 = vld [vmem:[%s4112 + $0x48] sm:$0xff]
  %v4123 = vld [vmem:[%s4112 + $0x50] sm:$0xff]
  %v4124 = vld [vmem:[%s4112 + $0x58] sm:$0xff]
  %v4125 = vld [vmem:[%s4112 + $0x60] sm:$0xff]
  %v4126 = vld [vmem:[%s4112 + $0x68] sm:$0xff]
  %v4127 = vld [vmem:[%s4112 + $0x70] sm:$0xff]
  %v4128 = vld [vmem:[%s4112 + $0x78] sm:$0xff]
  %v4129 = vld [vmem:[%s4112 + $0x80] sm:$0xff]
  %v4130 = vld [vmem:[%s4112 + $0x88] sm:$0xff]
  %v4131 = vld [vmem:[%s4112 + $0x90] sm:$0xff]
  %v4132 = vld [vmem:[%s4112 + $0x98] sm:$0xff]
  %v4133 = vld [vmem:[%s4112 + $0xa0] sm:$0xff]
  %v4134 = vld [vmem:[%s4112 + $0xa8] sm:$0xff]
  %v4135 = vld [vmem:[%s4112 + $0xb0] sm:$0xff]
  %v4136 = vld [vmem:[%s4112 + $0xb8] sm:$0xff]
  %v4137 = vld [vmem:[%s4112 + $0xc0] sm:$0xff]
  %v4138 = vld [vmem:[%s4112 + $0xc8] sm:$0xff]
  %v4139 = vld [vmem:[%s4112 + $0xd0] sm:$0xff]
  %v4140 = vld [vmem:[%s4112 + $0xd8] sm:$0xff]
  %v4141 = vld [vmem:[%s4112 + $0xe0] sm:$0xff]
  %v4142 = vld [vmem:[%s4112 + $0xe8] sm:$0xff]
  %v4143 = vld [vmem:[%s4112 + $0xf0] sm:$0xff]
  %v4144 = vld [vmem:[%s4112 + $0xf8] sm:$0xff]
  %v4145 = vld [vmem:[%s4112 + $0x100] sm:$0xff]
  %v4146 = vld [vmem:[%s4112 + $0x108] sm:$0xff]
  %v4147 = vld [vmem:[%s4112 + $0x110] sm:$0xff]
  %v4148 = vld [vmem:[%s4112 + $0x118] sm:$0xff]
  %v4149 = vld [vmem:[%s4112 + $0x120] sm:$0xff]
  %v4150 = vld [vmem:[%s4112 + $0x128] sm:$0xff]
  %v4151 = vld [vmem:[%s4112 + $0x130] sm:$0xff]
  %v4152 = vld [vmem:[%s4112 + $0x138] sm:$0xff]
  %v4153 = vld [vmem:[%s4112 + $0x140] sm:$0xff]
  %v4154 = vld [vmem:[%s4112 + $0x148] sm:$0xff]
  %v4155 = vld [vmem:[%s4112 + $0x150] sm:$0xff]
  %v4156 = vld [vmem:[%s4112 + $0x158] sm:$0xff]
  %v4157 = vld [vmem:[%s4112 + $0x160] sm:$0xff]
  %v4158 = vld [vmem:[%s4112 + $0x168] sm:$0xff]
  %v4159 = vld [vmem:[%s4112 + $0x170] sm:$0xff]
  %v4160 = vld [vmem:[%s4112 + $0x178] sm:$0xff]
  %v4161 = vld [vmem:[%s4112 + $0x180] sm:$0xff]
  %v4162 = vld [vmem:[%s4112 + $0x188] sm:$0xff]
  %v4163 = vld [vmem:[%s4112 + $0x190] sm:$0xff]
  %v4164 = vld [vmem:[%s4112 + $0x198] sm:$0xff]
  %v4165 = vld [vmem:[%s4112 + $0x1a0] sm:$0xff]
  %v4166 = vld [vmem:[%s4112 + $0x1a8] sm:$0xff]
  %v4167 = vld [vmem:[%s4112 + $0x1b0] sm:$0xff]
  %v4168 = vld [vmem:[%s4112 + $0x1b8] sm:$0xff]
  %v4169 = vld [vmem:[%s4112 + $0x1c0] sm:$0xff]
  %v4170 = vld [vmem:[%s4112 + $0x1c8] sm:$0xff]
  %v4171 = vld [vmem:[%s4112 + $0x1d0] sm:$0xff]
  %v4172 = vld [vmem:[%s4112 + $0x1d8] sm:$0xff]
  %v4173 = vld [vmem:[%s4112 + $0x1e0] sm:$0xff]
  %v4174 = vld [vmem:[%s4112 + $0x1e8] sm:$0xff]
  %v4175 = vld [vmem:[%s4112 + $0x1f0] sm:$0xff]
  %v4176 = vld [vmem:[%s4112 + $0x1f8] sm:$0xff]
  %v4177 = vld [vmem:[%s4112 + $0x200] sm:$0xff]
  %v4178 = vld [vmem:[%s4112 + $0x208] sm:$0xff]
  %v4179 = vld [vmem:[%s4112 + $0x210] sm:$0xff]
  %v4180 = vld [vmem:[%s4112 + $0x218] sm:$0xff]
  %v4181 = vld [vmem:[%s4112 + $0x220] sm:$0xff]
  %v4182 = vld [vmem:[%s4112 + $0x228] sm:$0xff]
  %v4183 = vld [vmem:[%s4112 + $0x230] sm:$0xff]
  %v4184 = vld [vmem:[%s4112 + $0x238] sm:$0xff]
  %v4185 = vld [vmem:[%s4112 + $0x240] sm:$0xff]
  %v4186 = vld [vmem:[%s4112 + $0x248] sm:$0x7f]
  %v4187 = vrot.slane %v2312, 6
  %v4188 = vrot.slane %v2313, 6
  %v4189 = vrot.slane %v2314, 6
  %v4190 = vrot.slane %v2315, 6
  %v4191 = vrot.slane %v2316, 6
  %v4196 = vsel %vm2480, %v4191, 0
  %v4199 = vsel %vm2483, %v4186, 0
  %4201 = vmatprep.subr.mxu0 0.0
  %4202 = vmatpush1.msra.mxu0 %v4113
  %4203 = vmatprep.subr.mxu0 0.0
  %4204 = vmatpush1.msra.mxu0 %v4114
  %4205 = vmatprep.subr.mxu0 0.0
  %4206 = vmatpush1.msra.mxu0 %v4115
  %4207 = vmatprep.subr.mxu0 0.0
  %4208 = vmatpush1.msra.mxu0 %v4116
  %4209 = vmatprep.subr.mxu0 0.0
  %4210 = vmatpush1.msra.mxu0 %v4117
  %4211 = vmatprep.subr.mxu0 0.0
  %4212 = vmatpush1.msra.mxu0 %v4118
  %4213 = vmatprep.subr.mxu0 0.0
  %4214 = vmatpush1.msra.mxu0 %v4119
  %4215 = vmatprep.subr.mxu0 0.0
  %4216 = vmatpush1.msra.mxu0 %v4120
  %4217 = vmatprep.subr.mxu0 0.0
  %4218 = vmatpush1.msra.mxu0 %v4121
  %4219 = vmatprep.subr.mxu0 0.0
  %4220 = vmatpush1.msra.mxu0 %v4122
  %4221 = vmatprep.subr.mxu0 0.0
  %4222 = vmatpush1.msra.mxu0 %v4123
  %4223 = vmatprep.subr.mxu0 0.0
  %4224 = vmatpush1.msra.mxu0 %v4124
  %4225 = vmatprep.subr.mxu0 0.0
  %4226 = vmatpush1.msra.mxu0 %v4125
  %4227 = vmatprep.subr.mxu0 0.0
  %4228 = vmatpush1.msra.mxu0 %v4126
  %4229 = vmatprep.subr.mxu0 0.0
  %4230 = vmatpush1.msra.mxu0 %v4127
  %4231 = vmatprep.subr.mxu0 0.0
  %4232 = vmatpush1.msra.mxu0 %v4128
  %4233 = vmatprep.subr.mxu0 0.0
  %4234 = vmatpush1.msra.mxu0 %v4129
  %4235 = vmatprep.subr.mxu0 0.0
  %4236 = vmatpush1.msra.mxu0 %v4130
  %4237 = vmatprep.subr.mxu0 0.0
  %4238 = vmatpush1.msra.mxu0 %v4131
  %4239 = vmatprep.subr.mxu0 0.0
  %4240 = vmatpush1.msra.mxu0 %v4132
  %4241 = vmatprep.subr.mxu0 0.0
  %4242 = vmatpush1.msra.mxu0 %v4133
  %4243 = vmatprep.subr.mxu0 0.0
  %4244 = vmatpush1.msra.mxu0 %v4134
  %4245 = vmatprep.subr.mxu0 0.0
  %4246 = vmatpush1.msra.mxu0 %v4135
  %4247 = vmatprep.subr.mxu0 0.0
  %4248 = vmatpush1.msra.mxu0 %v4136
  %4249 = vmatprep.subr.mxu0 0.0
  %4250 = vmatpush1.msra.mxu0 %v4137
  %4251 = vmatprep.subr.mxu0 0.0
  %4252 = vmatpush1.msra.mxu0 %v4138
  %4253 = vmatprep.subr.mxu0 0.0
  %4254 = vmatpush1.msra.mxu0 %v4139
  %4255 = vmatprep.subr.mxu0 0.0
  %4256 = vmatpush1.msra.mxu0 %v4140
  %4257 = vmatprep.subr.mxu0 0.0
  %4258 = vmatpush1.msra.mxu0 %v4141
  %4259 = vmatprep.subr.mxu0 0.0
  %4260 = vmatpush1.msra.mxu0 %v4142
  %4261 = vmatprep.subr.mxu0 0.0
  %4262 = vmatpush1.msra.mxu0 %v4143
  %4263 = vmatprep.subr.mxu0 0.0
  %4264 = vmatpush1.msra.mxu0 %v4144
  %4265 = vmatprep.mubr.f32.mxu0 %v4188
  %4266 = vmatmul.mubr.f32.gmra.mrb[0].mxu0 %v4187
  %v4267 = vpop.f32.mrb[0].mxu0
  %v4268 = vadd.f32 0.0, %v4267
  %v4269 = vpop.f32.mrb[0].mxu0
  %4270 = vdwg.mxu0
  %4271 = vmatprep.subr.mxu0 0.0
  %4272 = vmatpush1.msra.mxu0 %v4145
  %4273 = vmatprep.subr.mxu0 0.0
  %4274 = vmatpush1.msra.mxu0 %v4146
  %4275 = vmatprep.subr.mxu0 0.0
  %4276 = vmatpush1.msra.mxu0 %v4147
  %4277 = vmatprep.subr.mxu0 0.0
  %4278 = vmatpush1.msra.mxu0 %v4148
  %4279 = vmatprep.subr.mxu0 0.0
  %4280 = vmatpush1.msra.mxu0 %v4149
  %4281 = vmatprep.subr.mxu0 0.0
  %4282 = vmatpush1.msra.mxu0 %v4150
  %4283 = vmatprep.subr.mxu0 0.0
  %4284 = vmatpush1.msra.mxu0 %v4151
  %4285 = vmatprep.subr.mxu0 0.0
  %4286 = vmatpush1.msra.mxu0 %v4152
  %4287 = vmatprep.subr.mxu0 0.0
  %4288 = vmatpush1.msra.mxu0 %v4153
  %4289 = vmatprep.subr.mxu0 0.0
  %4290 = vmatpush1.msra.mxu0 %v4154
  %4291 = vmatprep.subr.mxu0 0.0
  %4292 = vmatpush1.msra.mxu0 %v4155
  %4293 = vmatprep.subr.mxu0 0.0
  %4294 = vmatpush1.msra.mxu0 %v4156
  %4295 = vmatprep.subr.mxu0 0.0
  %4296 = vmatpush1.msra.mxu0 %v4157
  %4297 = vmatprep.subr.mxu0 0.0
  %4298 = vmatpush1.msra.mxu0 %v4158
  %4299 = vmatprep.subr.mxu0 0.0
  %4300 = vmatpush1.msra.mxu0 %v4159
  %4301 = vmatprep.subr.mxu0 0.0
  %4302 = vmatpush1.msra.mxu0 %v4160
  %4303 = vmatprep.subr.mxu0 0.0
  %4304 = vmatpush1.msra.mxu0 %v4161
  %4305 = vmatprep.subr.mxu0 0.0
  %4306 = vmatpush1.msra.mxu0 %v4162
  %4307 = vmatprep.subr.mxu0 0.0
  %4308 = vmatpush1.msra.mxu0 %v4163
  %4309 = vmatprep.subr.mxu0 0.0
  %4310 = vmatpush1.msra.mxu0 %v4164
  %4311 = vmatprep.subr.mxu0 0.0
  %4312 = vmatpush1.msra.mxu0 %v4165
  %4313 = vmatprep.subr.mxu0 0.0
  %4314 = vmatpush1.msra.mxu0 %v4166
  %4315 = vmatprep.subr.mxu0 0.0
  %4316 = vmatpush1.msra.mxu0 %v4167
  %4317 = vmatprep.subr.mxu0 0.0
  %4318 = vmatpush1.msra.mxu0 %v4168
  %4319 = vmatprep.subr.mxu0 0.0
  %4320 = vmatpush1.msra.mxu0 %v4169
  %4321 = vmatprep.subr.mxu0 0.0
  %4322 = vmatpush1.msra.mxu0 %v4170
  %4323 = vmatprep.subr.mxu0 0.0
  %4324 = vmatpush1.msra.mxu0 %v4171
  %4325 = vmatprep.subr.mxu0 0.0
  %4326 = vmatpush1.msra.mxu0 %v4172
  %4327 = vmatprep.subr.mxu0 0.0
  %4328 = vmatpush1.msra.mxu0 %v4173
  %4329 = vmatprep.subr.mxu0 0.0
  %4330 = vmatpush1.msra.mxu0 %v4174
  %4331 = vmatprep.subr.mxu0 0.0
  %4332 = vmatpush1.msra.mxu0 %v4175
  %4333 = vmatprep.subr.mxu0 0.0
  %4334 = vmatpush1.msra.mxu0 %v4176
  %4335 = vmatprep.mubr.f32.mxu0 %v4190
  %4336 = vmatmul.mubr.f32.gmra.mrb[0].mxu0 %v4189
  %v4337 = vpop.f32.mrb[0].mxu0
  %v4338 = vadd.f32 %v4268, %v4337
  %v4339 = vpop.f32.mrb[0].mxu0
  %4340 = vdwg.mxu0
  %4341 = vmatprep.subr.mxu0 0.0
  %4342 = vmatpush1.msra.mxu0 %v4177
  %4343 = vmatprep.subr.mxu0 0.0
  %4344 = vmatpush1.msra.mxu0 %v4178
  %4345 = vmatprep.subr.mxu0 0.0
  %4346 = vmatpush1.msra.mxu0 %v4179
  %4347 = vmatprep.subr.mxu0 0.0
  %4348 = vmatpush1.msra.mxu0 %v4180
  %4349 = vmatprep.subr.mxu0 0.0
  %4350 = vmatpush1.msra.mxu0 %v4181
  %4351 = vmatprep.subr.mxu0 0.0
  %4352 = vmatpush1.msra.mxu0 %v4182
  %4353 = vmatprep.subr.mxu0 0.0
  %4354 = vmatpush1.msra.mxu0 %v4183
  %4355 = vmatprep.subr.mxu0 0.0
  %4356 = vmatpush1.msra.mxu0 %v4184
  %4357 = vmatprep.subr.mxu0 0.0
  %4358 = vmatpush1.msra.mxu0 %v4185
  %4359 = vmatprep.subr.mxu0 0.0
  %4360 = vmatpush1.msra.mxu0 %v4199
  %4361 = vmatprep.subr.mxu0 0.0
  %4362 = vmatpush1.msra.mxu0 0.0
  %4363 = vmatprep.subr.mxu0 0.0
  %4364 = vmatpush1.msra.mxu0 0.0
  %4365 = vmatprep.subr.mxu0 0.0
  %4366 = vmatpush1.msra.mxu0 0.0
  %4367 = vmatprep.subr.mxu0 0.0
  %4368 = vmatpush1.msra.mxu0 0.0
  %4369 = vmatprep.subr.mxu0 0.0
  %4370 = vmatpush1.msra.mxu0 0.0
  %4371 = vmatprep.subr.mxu0 0.0
  %4372 = vmatpush1.msra.mxu0 0.0
  %4373 = vmatprep.subr.mxu0 0.0
  %4374 = vmatpush1.msra.mxu0 0.0
  %4375 = vmatprep.subr.mxu0 0.0
  %4376 = vmatpush1.msra.mxu0 0.0
  %4377 = vmatprep.subr.mxu0 0.0
  %4378 = vmatpush1.msra.mxu0 0.0
  %4379 = vmatprep.subr.mxu0 0.0
  %4380 = vmatpush1.msra.mxu0 0.0
  %4381 = vmatprep.subr.mxu0 0.0
  %4382 = vmatpush1.msra.mxu0 0.0
  %4383 = vmatprep.subr.mxu0 0.0
  %4384 = vmatpush1.msra.mxu0 0.0
  %4385 = vmatprep.subr.mxu0 0.0
  %4386 = vmatpush1.msra.mxu0 0.0
  %4387 = vmatprep.subr.mxu0 0.0
  %4388 = vmatpush1.msra.mxu0 0.0
  %4389 = vmatprep.subr.mxu0 0.0
  %4390 = vmatpush1.msra.mxu0 0.0
  %4391 = vmatprep.subr.mxu0 0.0
  %4392 = vmatpush1.msra.mxu0 0.0
  %4393 = vmatprep.subr.mxu0 0.0
  %4394 = vmatpush1.msra.mxu0 0.0
  %4395 = vmatprep.subr.mxu0 0.0
  %4396 = vmatpush1.msra.mxu0 0.0
  %4397 = vmatprep.subr.mxu0 0.0
  %4398 = vmatpush1.msra.mxu0 0.0
  %4399 = vmatprep.subr.mxu0 0.0
  %4400 = vmatpush1.msra.mxu0 0.0
  %4401 = vmatprep.subr.mxu0 0.0
  %4402 = vmatpush1.msra.mxu0 0.0
  %4403 = vmatprep.subr.mxu0 0.0
  %4404 = vmatpush1.msra.mxu0 0.0
  %4405 = vmatprep.mubr.f32.mxu0 0.0
  %4406 = vmatmul.mubr.f32.gmra.mrb[0].mxu0 %v4196
  %v4407 = vpop.f32.mrb[0].mxu0
  %v4408 = vadd.f32 %v4338, %v4407
  %v4409 = vpop.f32.mrb[0].mxu0
  %4410 = vdwg.mxu0
  %v4411 = vadd.f32 %v4111, %v4408
  %s4412 = scalar_lea.vmem %s3, 4144
  %v4413 = vld [vmem:[%s4412] sm:$0xff]
  %v4414 = vld [vmem:[%s4412 + $0x8] sm:$0xff]
  %v4415 = vld [vmem:[%s4412 + $0x10] sm:$0xff]
  %v4416 = vld [vmem:[%s4412 + $0x18] sm:$0xff]
  %v4417 = vld [vmem:[%s4412 + $0x20] sm:$0xff]
  %v4418 = vld [vmem:[%s4412 + $0x28] sm:$0xff]
  %v4419 = vld [vmem:[%s4412 + $0x30] sm:$0xff]
  %v4420 = vld [vmem:[%s4412 + $0x38] sm:$0xff]
  %v4421 = vld [vmem:[%s4412 + $0x40] sm:$0xff]
  %v4422 = vld [vmem:[%s4412 + $0x48] sm:$0xff]
  %v4423 = vld [vmem:[%s4412 + $0x50] sm:$0xff]
  %v4424 = vld [vmem:[%s4412 + $0x58] sm:$0xff]
  %v4425 = vld [vmem:[%s4412 + $0x60] sm:$0xff]
  %v4426 = vld [vmem:[%s4412 + $0x68] sm:$0xff]
  %v4427 = vld [vmem:[%s4412 + $0x70] sm:$0xff]
  %v4428 = vld [vmem:[%s4412 + $0x78] sm:$0xff]
  %v4429 = vld [vmem:[%s4412 + $0x80] sm:$0xff]
  %v4430 = vld [vmem:[%s4412 + $0x88] sm:$0xff]
  %v4431 = vld [vmem:[%s4412 + $0x90] sm:$0xff]
  %v4432 = vld [vmem:[%s4412 + $0x98] sm:$0xff]
  %v4433 = vld [vmem:[%s4412 + $0xa0] sm:$0xff]
  %v4434 = vld [vmem:[%s4412 + $0xa8] sm:$0xff]
  %v4435 = vld [vmem:[%s4412 + $0xb0] sm:$0xff]
  %v4436 = vld [vmem:[%s4412 + $0xb8] sm:$0xff]
  %v4437 = vld [vmem:[%s4412 + $0xc0] sm:$0xff]
  %v4438 = vld [vmem:[%s4412 + $0xc8] sm:$0xff]
  %v4439 = vld [vmem:[%s4412 + $0xd0] sm:$0xff]
  %v4440 = vld [vmem:[%s4412 + $0xd8] sm:$0xff]
  %v4441 = vld [vmem:[%s4412 + $0xe0] sm:$0xff]
  %v4442 = vld [vmem:[%s4412 + $0xe8] sm:$0xff]
  %v4443 = vld [vmem:[%s4412 + $0xf0] sm:$0xff]
  %v4444 = vld [vmem:[%s4412 + $0xf8] sm:$0xff]
  %v4445 = vld [vmem:[%s4412 + $0x100] sm:$0xff]
  %v4446 = vld [vmem:[%s4412 + $0x108] sm:$0xff]
  %v4447 = vld [vmem:[%s4412 + $0x110] sm:$0xff]
  %v4448 = vld [vmem:[%s4412 + $0x118] sm:$0xff]
  %v4449 = vld [vmem:[%s4412 + $0x120] sm:$0xff]
  %v4450 = vld [vmem:[%s4412 + $0x128] sm:$0xff]
  %v4451 = vld [vmem:[%s4412 + $0x130] sm:$0xff]
  %v4452 = vld [vmem:[%s4412 + $0x138] sm:$0xff]
  %v4453 = vld [vmem:[%s4412 + $0x140] sm:$0xff]
  %v4454 = vld [vmem:[%s4412 + $0x148] sm:$0xff]
  %v4455 = vld [vmem:[%s4412 + $0x150] sm:$0xff]
  %v4456 = vld [vmem:[%s4412 + $0x158] sm:$0xff]
  %v4457 = vld [vmem:[%s4412 + $0x160] sm:$0xff]
  %v4458 = vld [vmem:[%s4412 + $0x168] sm:$0xff]
  %v4459 = vld [vmem:[%s4412 + $0x170] sm:$0xff]
  %v4460 = vld [vmem:[%s4412 + $0x178] sm:$0xff]
  %v4461 = vld [vmem:[%s4412 + $0x180] sm:$0xff]
  %v4462 = vld [vmem:[%s4412 + $0x188] sm:$0xff]
  %v4463 = vld [vmem:[%s4412 + $0x190] sm:$0xff]
  %v4464 = vld [vmem:[%s4412 + $0x198] sm:$0xff]
  %v4465 = vld [vmem:[%s4412 + $0x1a0] sm:$0xff]
  %v4466 = vld [vmem:[%s4412 + $0x1a8] sm:$0xff]
  %v4467 = vld [vmem:[%s4412 + $0x1b0] sm:$0xff]
  %v4468 = vld [vmem:[%s4412 + $0x1b8] sm:$0xff]
  %v4469 = vld [vmem:[%s4412 + $0x1c0] sm:$0xff]
  %v4470 = vld [vmem:[%s4412 + $0x1c8] sm:$0xff]
  %v4471 = vld [vmem:[%s4412 + $0x1d0] sm:$0xff]
  %v4472 = vld [vmem:[%s4412 + $0x1d8] sm:$0xff]
  %v4473 = vld [vmem:[%s4412 + $0x1e0] sm:$0xff]
  %v4474 = vld [vmem:[%s4412 + $0x1e8] sm:$0xff]
  %v4475 = vld [vmem:[%s4412 + $0x1f0] sm:$0xff]
  %v4476 = vld [vmem:[%s4412 + $0x1f8] sm:$0xff]
  %v4477 = vld [vmem:[%s4412 + $0x200] sm:$0xff]
  %v4478 = vld [vmem:[%s4412 + $0x208] sm:$0xff]
  %v4479 = vld [vmem:[%s4412 + $0x210] sm:$0xff]
  %v4480 = vld [vmem:[%s4412 + $0x218] sm:$0xff]
  %v4481 = vld [vmem:[%s4412 + $0x220] sm:$0xff]
  %v4482 = vld [vmem:[%s4412 + $0x228] sm:$0xff]
  %v4483 = vld [vmem:[%s4412 + $0x230] sm:$0xff]
  %v4484 = vld [vmem:[%s4412 + $0x238] sm:$0xff]
  %v4485 = vld [vmem:[%s4412 + $0x240] sm:$0xff]
  %v4486 = vld [vmem:[%s4412 + $0x248] sm:$0x7f]
  %v4487 = vrot.slane %v2312, 7
  %v4488 = vrot.slane %v2313, 7
  %v4489 = vrot.slane %v2314, 7
  %v4490 = vrot.slane %v2315, 7
  %v4491 = vrot.slane %v2316, 7
  %v4496 = vsel %vm2480, %v4491, 0
  %v4499 = vsel %vm2483, %v4486, 0
  %4501 = vmatprep.subr.mxu0 0.0
  %4502 = vmatpush1.msra.mxu0 %v4413
  %4503 = vmatprep.subr.mxu0 0.0
  %4504 = vmatpush1.msra.mxu0 %v4414
  %4505 = vmatprep.subr.mxu0 0.0
  %4506 = vmatpush1.msra.mxu0 %v4415
  %4507 = vmatprep.subr.mxu0 0.0
  %4508 = vmatpush1.msra.mxu0 %v4416
  %4509 = vmatprep.subr.mxu0 0.0
  %4510 = vmatpush1.msra.mxu0 %v4417
  %4511 = vmatprep.subr.mxu0 0.0
  %4512 = vmatpush1.msra.mxu0 %v4418
  %4513 = vmatprep.subr.mxu0 0.0
  %4514 = vmatpush1.msra.mxu0 %v4419
  %4515 = vmatprep.subr.mxu0 0.0
  %4516 = vmatpush1.msra.mxu0 %v4420
  %4517 = vmatprep.subr.mxu0 0.0
  %4518 = vmatpush1.msra.mxu0 %v4421
  %4519 = vmatprep.subr.mxu0 0.0
  %4520 = vmatpush1.msra.mxu0 %v4422
  %4521 = vmatprep.subr.mxu0 0.0
  %4522 = vmatpush1.msra.mxu0 %v4423
  %4523 = vmatprep.subr.mxu0 0.0
  %4524 = vmatpush1.msra.mxu0 %v4424
  %4525 = vmatprep.subr.mxu0 0.0
  %4526 = vmatpush1.msra.mxu0 %v4425
  %4527 = vmatprep.subr.mxu0 0.0
  %4528 = vmatpush1.msra.mxu0 %v4426
  %4529 = vmatprep.subr.mxu0 0.0
  %4530 = vmatpush1.msra.mxu0 %v4427
  %4531 = vmatprep.subr.mxu0 0.0
  %4532 = vmatpush1.msra.mxu0 %v4428
  %4533 = vmatprep.subr.mxu0 0.0
  %4534 = vmatpush1.msra.mxu0 %v4429
  %4535 = vmatprep.subr.mxu0 0.0
  %4536 = vmatpush1.msra.mxu0 %v4430
  %4537 = vmatprep.subr.mxu0 0.0
  %4538 = vmatpush1.msra.mxu0 %v4431
  %4539 = vmatprep.subr.mxu0 0.0
  %4540 = vmatpush1.msra.mxu0 %v4432
  %4541 = vmatprep.subr.mxu0 0.0
  %4542 = vmatpush1.msra.mxu0 %v4433
  %4543 = vmatprep.subr.mxu0 0.0
  %4544 = vmatpush1.msra.mxu0 %v4434
  %4545 = vmatprep.subr.mxu0 0.0
  %4546 = vmatpush1.msra.mxu0 %v4435
  %4547 = vmatprep.subr.mxu0 0.0
  %4548 = vmatpush1.msra.mxu0 %v4436
  %4549 = vmatprep.subr.mxu0 0.0
  %4550 = vmatpush1.msra.mxu0 %v4437
  %4551 = vmatprep.subr.mxu0 0.0
  %4552 = vmatpush1.msra.mxu0 %v4438
  %4553 = vmatprep.subr.mxu0 0.0
  %4554 = vmatpush1.msra.mxu0 %v4439
  %4555 = vmatprep.subr.mxu0 0.0
  %4556 = vmatpush1.msra.mxu0 %v4440
  %4557 = vmatprep.subr.mxu0 0.0
  %4558 = vmatpush1.msra.mxu0 %v4441
  %4559 = vmatprep.subr.mxu0 0.0
  %4560 = vmatpush1.msra.mxu0 %v4442
  %4561 = vmatprep.subr.mxu0 0.0
  %4562 = vmatpush1.msra.mxu0 %v4443
  %4563 = vmatprep.subr.mxu0 0.0
  %4564 = vmatpush1.msra.mxu0 %v4444
  %4565 = vmatprep.mubr.f32.mxu0 %v4488
  %4566 = vmatmul.mubr.f32.gmra.mrb[0].mxu0 %v4487
  %v4567 = vpop.f32.mrb[0].mxu0
  %v4568 = vadd.f32 0.0, %v4567
  %v4569 = vpop.f32.mrb[0].mxu0
  %4570 = vdwg.mxu0
  %4571 = vmatprep.subr.mxu0 0.0
  %4572 = vmatpush1.msra.mxu0 %v4445
  %4573 = vmatprep.subr.mxu0 0.0
  %4574 = vmatpush1.msra.mxu0 %v4446
  %4575 = vmatprep.subr.mxu0 0.0
  %4576 = vmatpush1.msra.mxu0 %v4447
  %4577 = vmatprep.subr.mxu0 0.0
  %4578 = vmatpush1.msra.mxu0 %v4448
  %4579 = vmatprep.subr.mxu0 0.0
  %4580 = vmatpush1.msra.mxu0 %v4449
  %4581 = vmatprep.subr.mxu0 0.0
  %4582 = vmatpush1.msra.mxu0 %v4450
  %4583 = vmatprep.subr.mxu0 0.0
  %4584 = vmatpush1.msra.mxu0 %v4451
  %4585 = vmatprep.subr.mxu0 0.0
  %4586 = vmatpush1.msra.mxu0 %v4452
  %4587 = vmatprep.subr.mxu0 0.0
  %4588 = vmatpush1.msra.mxu0 %v4453
  %4589 = vmatprep.subr.mxu0 0.0
  %4590 = vmatpush1.msra.mxu0 %v4454
  %4591 = vmatprep.subr.mxu0 0.0
  %4592 = vmatpush1.msra.mxu0 %v4455
  %4593 = vmatprep.subr.mxu0 0.0
  %4594 = vmatpush1.msra.mxu0 %v4456
  %4595 = vmatprep.subr.mxu0 0.0
  %4596 = vmatpush1.msra.mxu0 %v4457
  %4597 = vmatprep.subr.mxu0 0.0
  %4598 = vmatpush1.msra.mxu0 %v4458
  %4599 = vmatprep.subr.mxu0 0.0
  %4600 = vmatpush1.msra.mxu0 %v4459
  %4601 = vmatprep.subr.mxu0 0.0
  %4602 = vmatpush1.msra.mxu0 %v4460
  %4603 = vmatprep.subr.mxu0 0.0
  %4604 = vmatpush1.msra.mxu0 %v4461
  %4605 = vmatprep.subr.mxu0 0.0
  %4606 = vmatpush1.msra.mxu0 %v4462
  %4607 = vmatprep.subr.mxu0 0.0
  %4608 = vmatpush1.msra.mxu0 %v4463
  %4609 = vmatprep.subr.mxu0 0.0
  %4610 = vmatpush1.msra.mxu0 %v4464
  %4611 = vmatprep.subr.mxu0 0.0
  %4612 = vmatpush1.msra.mxu0 %v4465
  %4613 = vmatprep.subr.mxu0 0.0
  %4614 = vmatpush1.msra.mxu0 %v4466
  %4615 = vmatprep.subr.mxu0 0.0
  %4616 = vmatpush1.msra.mxu0 %v4467
  %4617 = vmatprep.subr.mxu0 0.0
  %4618 = vmatpush1.msra.mxu0 %v4468
  %4619 = vmatprep.subr.mxu0 0.0
  %4620 = vmatpush1.msra.mxu0 %v4469
  %4621 = vmatprep.subr.mxu0 0.0
  %4622 = vmatpush1.msra.mxu0 %v4470
  %4623 = vmatprep.subr.mxu0 0.0
  %4624 = vmatpush1.msra.mxu0 %v4471
  %4625 = vmatprep.subr.mxu0 0.0
  %4626 = vmatpush1.msra.mxu0 %v4472
  %4627 = vmatprep.subr.mxu0 0.0
  %4628 = vmatpush1.msra.mxu0 %v4473
  %4629 = vmatprep.subr.mxu0 0.0
  %4630 = vmatpush1.msra.mxu0 %v4474
  %4631 = vmatprep.subr.mxu0 0.0
  %4632 = vmatpush1.msra.mxu0 %v4475
  %4633 = vmatprep.subr.mxu0 0.0
  %4634 = vmatpush1.msra.mxu0 %v4476
  %4635 = vmatprep.mubr.f32.mxu0 %v4490
  %4636 = vmatmul.mubr.f32.gmra.mrb[0].mxu0 %v4489
  %v4637 = vpop.f32.mrb[0].mxu0
  %v4638 = vadd.f32 %v4568, %v4637
  %v4639 = vpop.f32.mrb[0].mxu0
  %4640 = vdwg.mxu0
  %4641 = vmatprep.subr.mxu0 0.0
  %4642 = vmatpush1.msra.mxu0 %v4477
  %4643 = vmatprep.subr.mxu0 0.0
  %4644 = vmatpush1.msra.mxu0 %v4478
  %4645 = vmatprep.subr.mxu0 0.0
  %4646 = vmatpush1.msra.mxu0 %v4479
  %4647 = vmatprep.subr.mxu0 0.0
  %4648 = vmatpush1.msra.mxu0 %v4480
  %4649 = vmatprep.subr.mxu0 0.0
  %4650 = vmatpush1.msra.mxu0 %v4481
  %4651 = vmatprep.subr.mxu0 0.0
  %4652 = vmatpush1.msra.mxu0 %v4482
  %4653 = vmatprep.subr.mxu0 0.0
  %4654 = vmatpush1.msra.mxu0 %v4483
  %4655 = vmatprep.subr.mxu0 0.0
  %4656 = vmatpush1.msra.mxu0 %v4484
  %4657 = vmatprep.subr.mxu0 0.0
  %4658 = vmatpush1.msra.mxu0 %v4485
  %4659 = vmatprep.subr.mxu0 0.0
  %4660 = vmatpush1.msra.mxu0 %v4499
  %4661 = vmatprep.subr.mxu0 0.0
  %4662 = vmatpush1.msra.mxu0 0.0
  %4663 = vmatprep.subr.mxu0 0.0
  %4664 = vmatpush1.msra.mxu0 0.0
  %4665 = vmatprep.subr.mxu0 0.0
  %4666 = vmatpush1.msra.mxu0 0.0
  %4667 = vmatprep.subr.mxu0 0.0
  %4668 = vmatpush1.msra.mxu0 0.0
  %4669 = vmatprep.subr.mxu0 0.0
  %4670 = vmatpush1.msra.mxu0 0.0
  %4671 = vmatprep.subr.mxu0 0.0
  %4672 = vmatpush1.msra.mxu0 0.0
  %4673 = vmatprep.subr.mxu0 0.0
  %4674 = vmatpush1.msra.mxu0 0.0
  %4675 = vmatprep.subr.mxu0 0.0
  %4676 = vmatpush1.msra.mxu0 0.0
  %4677 = vmatprep.subr.mxu0 0.0
  %4678 = vmatpush1.msra.mxu0 0.0
  %4679 = vmatprep.subr.mxu0 0.0
  %4680 = vmatpush1.msra.mxu0 0.0
  %4681 = vmatprep.subr.mxu0 0.0
  %4682 = vmatpush1.msra.mxu0 0.0
  %4683 = vmatprep.subr.mxu0 0.0
  %4684 = vmatpush1.msra.mxu0 0.0
  %4685 = vmatprep.subr.mxu0 0.0
  %4686 = vmatpush1.msra.mxu0 0.0
  %4687 = vmatprep.subr.mxu0 0.0
  %4688 = vmatpush1.msra.mxu0 0.0
  %4689 = vmatprep.subr.mxu0 0.0
  %4690 = vmatpush1.msra.mxu0 0.0
  %4691 = vmatprep.subr.mxu0 0.0
  %4692 = vmatpush1.msra.mxu0 0.0
  %4693 = vmatprep.subr.mxu0 0.0
  %4694 = vmatpush1.msra.mxu0 0.0
  %4695 = vmatprep.subr.mxu0 0.0
  %4696 = vmatpush1.msra.mxu0 0.0
  %4697 = vmatprep.subr.mxu0 0.0
  %4698 = vmatpush1.msra.mxu0 0.0
  %4699 = vmatprep.subr.mxu0 0.0
  %4700 = vmatpush1.msra.mxu0 0.0
  %4701 = vmatprep.subr.mxu0 0.0
  %4702 = vmatpush1.msra.mxu0 0.0
  %4703 = vmatprep.subr.mxu0 0.0
  %4704 = vmatpush1.msra.mxu0 0.0
  %4705 = vmatprep.mubr.f32.mxu0 0.0
  %4706 = vmatmul.mubr.f32.gmra.mrb[0].mxu0 %v4496
  %v4707 = vpop.f32.mrb[0].mxu0
  %v4708 = vadd.f32 %v4638, %v4707
  %v4709 = vpop.f32.mrb[0].mxu0
  %4710 = vdwg.mxu0
  %v4711 = vadd.f32 %v4411, %v4708
  %v4712 = vld [vmem:[%s4] sm:$0x1]
  %v4713 = vadd.f32 %v4711, %v4712
  %v4714 = vmax.f32 %v4713, 0.0
  %v4715 = vld [vmem:[%s5] sm:$0xff]
  %v4716 = vld [vmem:[%s5 + $0x8] sm:$0xff]
  %v4717 = vld [vmem:[%s5 + $0x10] sm:$0xff]
  %v4718 = vld [vmem:[%s5 + $0x18] sm:$0xff]
  %v4719 = vld [vmem:[%s5 + $0x20] sm:$0xff]
  %v4720 = vld [vmem:[%s5 + $0x28] sm:$0xff]
  %v4721 = vld [vmem:[%s5 + $0x30] sm:$0xff]
  %v4722 = vld [vmem:[%s5 + $0x38] sm:$0xff]
  %v4723 = vld [vmem:[%s6] sm:$0x1]
  %vm4724 = vcmask 523264
  %v4726 = vsel %vm4724, %v4714, 0
  %4728 = vmatprep.subr.mxu0 0.0
  %4729 = vmatpush1.msra.mxu0 %v4715
  %4730 = vmatprep.subr.mxu0 0.0
  %4731 = vmatpush1.msra.mxu0 %v4716
  %4732 = vmatprep.subr.mxu0 0.0
  %4733 = vmatpush1.msra.mxu0 %v4717
  %4734 = vmatprep.subr.mxu0 0.0
  %4735 = vmatpush1.msra.mxu0 %v4718
  %4736 = vmatprep.subr.mxu0 0.0
  %4737 = vmatpush1.msra.mxu0 %v4719
  %4738 = vmatprep.subr.mxu0 0.0
  %4739 = vmatpush1.msra.mxu0 %v4720
  %4740 = vmatprep.subr.mxu0 0.0
  %4741 = vmatpush1.msra.mxu0 %v4721
  %4742 = vmatprep.subr.mxu0 0.0
  %4743 = vmatpush1.msra.mxu0 %v4722
  %4744 = vmatprep.subr.mxu0 0.0
  %4745 = vmatpush1.msra.mxu0 0.0
  %4746 = vmatprep.subr.mxu0 0.0
  %4747 = vmatpush1.msra.mxu0 0.0
  %4748 = vmatprep.subr.mxu0 0.0
  %4749 = vmatpush1.msra.mxu0 0.0
  %4750 = vmatprep.subr.mxu0 0.0
  %4751 = vmatpush1.msra.mxu0 0.0
  %4752 = vmatprep.subr.mxu0 0.0
  %4753 = vmatpush1.msra.mxu0 0.0
  %4754 = vmatprep.subr.mxu0 0.0
  %4755 = vmatpush1.msra.mxu0 0.0
  %4756 = vmatprep.subr.mxu0 0.0
  %4757 = vmatpush1.msra.mxu0 0.0
  %4758 = vmatprep.subr.mxu0 0.0
  %4759 = vmatpush1.msra.mxu0 0.0
  %4760 = vmatprep.subr.mxu0 0.0
  %4761 = vmatpush1.msra.mxu0 0.0
  %4762 = vmatprep.subr.mxu0 0.0
  %4763 = vmatpush1.msra.mxu0 0.0
  %4764 = vmatprep.subr.mxu0 0.0
  %4765 = vmatpush1.msra.mxu0 0.0
  %4766 = vmatprep.subr.mxu0 0.0
  %4767 = vmatpush1.msra.mxu0 0.0
  %4768 = vmatprep.subr.mxu0 0.0
  %4769 = vmatpush1.msra.mxu0 0.0
  %4770 = vmatprep.subr.mxu0 0.0
  %4771 = vmatpush1.msra.mxu0 0.0
  %4772 = vmatprep.subr.mxu0 0.0
  %4773 = vmatpush1.msra.mxu0 0.0
  %4774 = vmatprep.subr.mxu0 0.0
  %4775 = vmatpush1.msra.mxu0 0.0
  %4776 = vmatprep.subr.mxu0 0.0
  %4777 = vmatpush1.msra.mxu0 0.0
  %4778 = vmatprep.subr.mxu0 0.0
  %4779 = vmatpush1.msra.mxu0 0.0
  %4780 = vmatprep.subr.mxu0 0.0
  %4781 = vmatpush1.msra.mxu0 0.0
  %4782 = vmatprep.subr.mxu0 0.0
  %4783 = vmatpush1.msra.mxu0 0.0
  %4784 = vmatprep.subr.mxu0 0.0
  %4785 = vmatpush1.msra.mxu0 0.0
  %4786 = vmatprep.subr.mxu0 0.0
  %4787 = vmatpush1.msra.mxu0 0.0
  %4788 = vmatprep.subr.mxu0 0.0
  %4789 = vmatpush1.msra.mxu0 0.0
  %4790 = vmatprep.subr.mxu0 0.0
  %4791 = vmatpush1.msra.mxu0 0.0
  %4792 = vmatprep.mubr.f32.mxu0 0.0
  %4793 = vmatmul.mubr.f32.gmra.mrb[0].mxu0 %v4726
  %v4794 = vpop.f32.mrb[0].mxu0
  %v4795 = vadd.f32 %v4723, %v4794
  %v4796 = vpop.f32.mrb[0].mxu0
  %4797 = vdwg.mxu0
  %vm4798 = vcmask 155648
  %4799 = vst.msk [vmem:[%s7] sm:$0x1] %vm4798, %v4795
  // Predicated region
  $region30: #{conv_model_forward.1} parent=0 // pred_check
    _
  $region31: #{conv_model_forward.1} parent=0 // pred_check_branch
    %4801 = sbr.rel (0) target = $region33
  $region32: #{conv_model_forward.1} parent=0 // pred_region
    _
  $region33: #{conv_model_forward.1} parent=0 // pred_fallthru
    _
  // Predicated region
  $region34: #{conv_model_forward.1} parent=0 // pred_check
    _
  $region35: #{conv_model_forward.1} parent=0 // pred_check_branch
    %4803 = sbr.rel (0) target = $region37
  $region36: #{conv_model_forward.1} parent=0 // pred_region
    _
  $region37: #{conv_model_forward.1} parent=0 // pred_fallthru
    _

</llo_original>
